<compile_context>
chip_gen: v7x
topology: tpu7x:2x2x1
jax: 0.10.0
libtpu: 0.0.40
codegen_flags: <defaults>
</compile_context>

<pallas_src>
import math
from functools import partial

import jax
import jax.numpy as jnp
from jax import lax
from jax.experimental import pallas as pl
from jax.experimental.pallas import tpu as pltpu

_VMEM_LIMIT = 32 * 1024 * 1024   # safe on v5e/v6e (128 MiB) and v7x (64 MiB)
_TILE_BYTES = 2 * 1024 * 1024    # target size of one (rows, S) f32 tile


def _row_tile(R, S):
    """Row-tile: divides R, multiple of 8 (or == R), (tile, S) f32 <= ~2 MiB."""
    cap = max(8, (_TILE_BYTES // (4 * S)) // 8 * 8)
    if R <= cap:
        return R
    t = cap
    while t >= 8:
        if R % t == 0:
            return t
        t -= 8
    return R


# ----------------------------------------------------------------------------
# In-kernel helpers
# ----------------------------------------------------------------------------

def _row_norm(x, eps=1e-5):
    """InstanceNorm over the spatial (last) axis: biased var, eps=1e-5."""
    mean = jnp.mean(x, axis=-1, keepdims=True)
    xc = x - mean
    var = jnp.mean(xc * xc, axis=-1, keepdims=True)
    return xc * lax.rsqrt(var + eps)


def _erf(x):
    # Abramowitz & Stegun 7.1.26 polynomial (max abs err ~1.5e-7): uses only
    # exp/mul/add/div, which always lower in Mosaic (lax.erf may not).
    a1, a2, a3, a4, a5 = (0.254829592, -0.284496736, 1.421413741,
                          -1.453152027, 1.061405429)
    p = 0.3275911
    ax = jnp.abs(x)
    t = 1.0 / (1.0 + p * ax)
    poly = ((((a5 * t + a4) * t + a3) * t + a2) * t + a1) * t
    y = 1.0 - poly * jnp.exp(-ax * ax)
    return jnp.where(x < 0.0, -y, y)


def _gelu(x):
    # Exact (erf-based) GELU to match F.gelu(approximate='none').
    return 0.5 * x * (1.0 + _erf(x * 0.7071067811865476))


# ----------------------------------------------------------------------------
# Pallas kernels
# ----------------------------------------------------------------------------

def _norm_affine_kernel(x_ref, s_ref, o_ref):
    """o = instance_norm(x) * gamma + beta   (gamma/beta scalars in SMEM)."""
    x = x_ref[...].astype(jnp.float32)
    o_ref[...] = (_row_norm(x) * s_ref[0] + s_ref[1]).astype(o_ref.dtype)


def _attn_mixer_in_kernel(attn_ref, tok_ref, s_ref, attn_o_ref, mix_o_ref):
    """attention = norm(attn + tokens)*g1 + b1 ; mixer_in = norm(attention)*g2 + b2."""
    a = attn_ref[...].astype(jnp.float32) + tok_ref[...].astype(jnp.float32)
    attn_n = _row_norm(a) * s_ref[0] + s_ref[1]
    attn_o_ref[...] = attn_n.astype(attn_o_ref.dtype)
    mix_o_ref[...] = (_row_norm(attn_n) * s_ref[2] + s_ref[3]).astype(mix_o_ref.dtype)


def _norm_plus_residual_kernel(x_ref, res_ref, s_ref, o_ref):
    """o = instance_norm(x) * gamma + beta + residual."""
    x = x_ref[...].astype(jnp.float32)
    r = res_ref[...].astype(jnp.float32)
    o_ref[...] = (_row_norm(x) * s_ref[0] + s_ref[1] + r).astype(o_ref.dtype)


def _fno_post_kernel(xfno_ref, xrs_ref, s_ref, o_ref, *, use_norm, apply_act):
    """Everything after the spectral conv of one FNOBlocks layer (C == 1).

    s_ref (SMEM): [spec_bias, w_fno_skip, w_mlp_skip, w_mlp1, b_mlp1, w_mlp2, b_mlp2]
    """
    xf = xfno_ref[...].astype(jnp.float32) + s_ref[0]      # SpectralConv bias
    xr = xrs_ref[...].astype(jnp.float32)                  # resampled block input
    if use_norm:
        xf = _row_norm(xf)                                 # affine=False in FNOBlocks
    x = xf + s_ref[1] * xr                                 # 'linear' fno skip
    if apply_act:
        x = _gelu(x)
    h = x * s_ref[3] + s_ref[4]                            # ChannelMLP layer 1
    h = _gelu(h)
    h = h * s_ref[5] + s_ref[6]                            # ChannelMLP layer 2
    x = h + s_ref[2] * xr                                  # 'linear' channel-mlp skip
    if use_norm:
        x = _row_norm(x)
    if apply_act:
        x = _gelu(x)
    o_ref[...] = x.astype(o_ref.dtype)


def _attention_kernel(q_ref, k_ref, v_ref, o_ref, *, scale, bh):
    """softmax(q k^T * scale) v for all (batch*head) slices in one launch."""
    for i in range(bh):                                    # bh is tiny; static unroll
        q = q_ref[i].astype(jnp.float32)                   # (t, Dk)
        k = k_ref[i].astype(jnp.float32)                   # (t, Dk)
        v = v_ref[i].astype(jnp.float32)                   # (t, Dv)
        s = lax.dot_general(q, k, (((1,), (1,)), ((), ())),
                            preferred_element_type=jnp.float32) * scale
        m = jnp.max(s, axis=-1, keepdims=True)
        p = jnp.exp(s - m)
        p = p * pl.reciprocal(jnp.sum(p, axis=-1, keepdims=True), approx=True)
        o_ref[i] = jnp.dot(p, v, preferred_element_type=jnp.float32).astype(o_ref.dtype)


# ----------------------------------------------------------------------------
# Pallas wrappers
# ----------------------------------------------------------------------------

def _call_rowwise(kernel, blocked_inputs, scalars, num_outputs):
    """Launch kernel on (R, S) operands, row-tiled grid, scalars in SMEM."""
    R, S = blocked_inputs[0].shape
    dtype = blocked_inputs[0].dtype
    tr = _row_tile(R, S)
    blk = pl.BlockSpec((tr, S), lambda i: (i, 0))
    smem = pl.BlockSpec(scalars.shape, lambda i: (0,),
                        memory_space=pltpu.MemorySpace.SMEM)
    out_shape = tuple(jax.ShapeDtypeStruct((R, S), dtype) for _ in range(num_outputs))
    out_specs = tuple(pl.BlockSpec((tr, S), lambda i: (i, 0))
                      for _ in range(num_outputs))
    if num_outputs == 1:
        out_shape, out_specs = out_shape[0], out_specs[0]
    return pl.pallas_call(
        kernel,
        out_shape=out_shape,
        grid=(R // tr,),
        in_specs=[blk] * len(blocked_inputs) + [smem],
        out_specs=out_specs,
        compiler_params=pltpu.CompilerParams(
            dimension_semantics=("parallel",),   # lets v7x shard rows over 2 TCs
            vmem_limit_bytes=_VMEM_LIMIT),
    )(*blocked_inputs, scalars)


def norm_affine(x, g, b):
    R, H, W = x.shape
    sc = jnp.stack([g[0], b[0]]).astype(jnp.float32)
    out = _call_rowwise(_norm_affine_kernel, [x.reshape(R, H * W)], sc, 1)
    return out.reshape(R, H, W)


def attn_and_mixer_in_norm(attn, tokens, g1, b1, g2, b2):
    R, H, W = attn.shape
    sc = jnp.stack([g1[0], b1[0], g2[0], b2[0]]).astype(jnp.float32)
    a, m = _call_rowwise(_attn_mixer_in_kernel,
                         [attn.reshape(R, H * W), tokens.reshape(R, H * W)], sc, 2)
    return a.reshape(R, H, W), m.reshape(R, H, W)


def norm_plus_residual(x, res, g, b):
    R, H, W = x.shape
    sc = jnp.stack([g[0], b[0]]).astype(jnp.float32)
    out = _call_rowwise(_norm_plus_residual_kernel,
                        [x.reshape(R, H * W), res.reshape(R, H * W)], sc, 1)
    return out.reshape(R, H, W)


def fno_post_fused(x_fno, x_rs, scalars, *, use_norm, apply_act):
    R, Ho, Wo = x_fno.shape
    S = Ho * Wo
    out = _call_rowwise(
        partial(_fno_post_kernel, use_norm=use_norm, apply_act=apply_act),
        [x_fno.reshape(R, S), x_rs.reshape(R, S)], scalars, 1)
    return out.reshape(R, Ho, Wo)


def token_attention(q, k, v, temperature):
    """q, k: (B, Hh, t, Dk); v: (B, Hh, t, Dv) -> (B, Hh, t, Dv)."""
    B, Hh, t, Dk = q.shape
    Dv = v.shape[-1]
    BH = B * Hh
    scale = 1.0 / (math.sqrt(Dk) * temperature)
    out = pl.pallas_call(
        partial(_attention_kernel, scale=scale, bh=BH),
        out_shape=jax.ShapeDtypeStruct((BH, t, Dv), q.dtype),
        in_specs=[pl.BlockSpec(memory_space=pltpu.MemorySpace.VMEM)] * 3,
        out_specs=pl.BlockSpec(memory_space=pltpu.MemorySpace.VMEM),
        compiler_params=pltpu.CompilerParams(vmem_limit_bytes=_VMEM_LIMIT),
    )(q.reshape(BH, t, Dk), k.reshape(BH, t, Dk), v.reshape(BH, t, Dv))
    return out.reshape(B, Hh, t, Dv)


# ----------------------------------------------------------------------------
# FFT glue (no clean Pallas equivalent)
# ----------------------------------------------------------------------------

def spectral_conv2d(x, w1, w2, out_hw):
    """Truncated-mode spectral conv with Cin=Cout=1. x: (R, H, W)."""
    R, H, W = x.shape
    Ho, Wo = out_hw
    m1, m2 = w1.shape[-2:]
    x_ft = jnp.fft.rfft2(x, norm="forward")
    out_ft = jnp.zeros((R, Ho, Wo // 2 + 1), dtype=x_ft.dtype)
    out_ft = out_ft.at[:, :m1, :m2].set(x_ft[:, :m1, :m2] * w1[0, 0][None])
    out_ft = out_ft.at[:, Ho - m1:, :m2].set(x_ft[:, H - m1:, :m2] * w2[0, 0][None])
    return jnp.fft.irfft2(out_ft, s=(Ho, Wo), norm="forward")


def fourier_resample(x, out_hw):
    """Fourier interpolation of the skip branch (SpectralConv.transform)."""
    H, W = x.shape[-2:]
    Ho, Wo = out_hw
    if (Ho, Wo) == (H, W):
        return x
    X = jnp.fft.rfft2(x, norm="forward")
    Wf = Wo // 2 + 1
    kh = min(H, Ho) // 2
    kw = min(W // 2 + 1, Wf)
    out = jnp.zeros(x.shape[:-2] + (Ho, Wf), dtype=X.dtype)
    out = out.at[..., :kh, :kw].set(X[..., :kh, :kw])
    out = out.at[..., Ho - kh:, :kw].set(X[..., H - kh:, :kw])
    return jnp.fft.irfft2(out, s=(Ho, Wo), norm="forward")


def fno_block_apply(x, p, out_hw, *, apply_act, use_norm, x_rs=None):
    """One FNOBlocks layer (Cin=Cout=hidden=1): FFT glue + one fused Pallas kernel.

    Matches forward_with_postactivation: norm(x_fno) before the fno skip add,
    norm again after ChannelMLP+skip; GELU only when not the last layer.
    """
    H, W = x.shape[-2:]
    if x_rs is None:
        x_rs = x if out_hw == (H, W) else fourier_resample(x, out_hw)
    x_fno = spectral_conv2d(x, p["w1"], p["w2"], out_hw)
    # 1x1 convs on a single channel are scalar multiplies/adds -> SMEM scalars.
    sc = jnp.stack([
        p["spec_bias"][0],
        p["fno_skip_w"][0, 0],
        p["mlp_skip_w"][0, 0],
        p["mlp_w1"][0, 0], p["mlp_b1"][0],
        p["mlp_w2"][0, 0], p["mlp_b2"][0],
    ]).astype(jnp.float32)
    return fno_post_fused(x_fno, x_rs, sc, use_norm=use_norm, apply_act=apply_act)


# ----------------------------------------------------------------------------
# Parameters (deterministic, synthetic)
# ----------------------------------------------------------------------------

def init_fno_block(key, cin, cout, n_modes, expansion=1.0):
    m1, m2 = max(1, n_modes[0] // 2), max(1, n_modes[1] // 2)
    hidden = max(1, round(cout * expansion))
    ks = jax.random.split(key, 9)
    spec_scale = 1.0 / (cin * cout)

    def cplx(k, shape):
        kr, ki = jax.random.split(k)
        return spec_scale * (jax.random.normal(kr, shape)
                             + 1j * jax.random.normal(ki, shape)).astype(jnp.complex64)

    return {
        "w1": cplx(ks[0], (cin, cout, m1, m2)),
        "w2": cplx(ks[1], (cin, cout, m1, m2)),
        "spec_bias": 0.1 * jax.random.normal(ks[2], (cout,), jnp.float32),
        "fno_skip_w": jax.random.normal(ks[3], (cout, cin), jnp.float32) / math.sqrt(cin),
        "mlp_skip_w": jax.random.normal(ks[4], (cout, cin), jnp.float32) / math.sqrt(cin),
        "mlp_w1": jax.random.normal(ks[5], (hidden, cout), jnp.float32) / math.sqrt(cout),
        "mlp_b1": 0.1 * jax.random.normal(ks[6], (hidden,), jnp.float32),
        "mlp_w2": jax.random.normal(ks[7], (cout, hidden), jnp.float32) / math.sqrt(hidden),
        "mlp_b2": 0.1 * jax.random.normal(ks[8], (cout,), jnp.float32),
    }


def init_coda_params(key, n_modes=(4, 4), n_heads=1, token_codim=1, head_codim=1,
                     channel_mlp_expansion=1.0):
    # per_channel_attention=True -> token_codim = head_codim = 1, scale = min(n_heads, 0.5)
    scale = min(n_heads, 0.5)
    kqv_modes = tuple(int(m * scale) for m in n_modes)
    keys = jax.random.split(key, 5)
    params = {
        "Key": init_fno_block(keys[0], token_codim, n_heads * head_codim, kqv_modes, channel_mlp_expansion),
        "Query": init_fno_block(keys[1], token_codim, n_heads * head_codim, kqv_modes, channel_mlp_expansion),
        "Value": init_fno_block(keys[2], token_codim, n_heads * head_codim, kqv_modes, channel_mlp_expansion),
        "mixer0": init_fno_block(keys[3], token_codim, token_codim, n_modes, channel_mlp_expansion),
        "mixer1": init_fno_block(keys[4], token_codim, token_codim, n_modes, channel_mlp_expansion),
        # affine InstanceNorm params (PyTorch init: weight=1, bias=0)
        "norm1_w": jnp.ones((token_codim,), jnp.float32),
        "norm1_b": jnp.zeros((token_codim,), jnp.float32),
        "attn_norm_w": jnp.ones((token_codim,), jnp.float32),
        "attn_norm_b": jnp.zeros((token_codim,), jnp.float32),
        "mixer_in_w": jnp.ones((token_codim,), jnp.float32),
        "mixer_in_b": jnp.zeros((token_codim,), jnp.float32),
        "mixer_out_w": jnp.ones((token_codim,), jnp.float32),
        "mixer_out_b": jnp.zeros((token_codim,), jnp.float32),
    }
    return params, scale


# ----------------------------------------------------------------------------
# CODALayer forward (permutation-equivariant path)
# ----------------------------------------------------------------------------

def coda_forward(params, x, *, n_heads=1, token_codim=1, head_codim=1,
                 temperature=1.0, kqv_scale=0.5):
    b = x.shape[0]
    H, W = x.shape[-2:]
    t = x.shape[1] // token_codim
    # per_channel_attention=True config: one channel per token / head.
    assert token_codim == 1 and head_codim == 1 and n_heads * head_codim == token_codim
    R = b * t
    tokens = x.reshape(R, H, W)            # (b*t, d=1, H, W) with d squeezed

    tokens_norm = norm_affine(tokens, params["norm1_w"], params["norm1_b"])

    # ---- compute_attention(tokens_norm, b) ----
    kq_hw = (int(H * kqv_scale), int(W * kqv_scale))
    # Shared resampled skip input for both Key and Query (scalar skip weights
    # commute with the linear Fourier resampling).
    tokens_norm_kq = fourier_resample(tokens_norm, kq_hw)

    k = fno_block_apply(tokens_norm, params["Key"], kq_hw,
                        apply_act=False, use_norm=False, x_rs=tokens_norm_kq)
    q = fno_block_apply(tokens_norm, params["Query"], kq_hw,
                        apply_act=False, use_norm=False, x_rs=tokens_norm_kq)
    v = fno_block_apply(tokens_norm, params["Value"], (H, W),
                        apply_act=False, use_norm=False)

    kh, kw = kq_hw
    # n_heads == head_codim == 1: the head split/transpose is a free reshape.
    qf = q.reshape(b, n_heads, t, kh * kw)
    kf = k.reshape(b, n_heads, t, kh * kw)
    vf = v.reshape(b, n_heads, t, H * W)

    attn = token_attention(qf, kf, vf, temperature)        # (b, heads, t, H*W)
    attn = attn.reshape(R, H, W)

    # multi_head_proj is None (n_heads * head_codim == token_codimension).
    attention, mixer_in = attn_and_mixer_in_norm(
        attn, tokens, params["attn_norm_w"], params["attn_norm_b"],
        params["mixer_in_w"], params["mixer_in_b"])

    out = fno_block_apply(mixer_in, params["mixer0"], (H, W), apply_act=True, use_norm=True)
    out = fno_block_apply(out, params["mixer1"], (H, W), apply_act=False, use_norm=True)

    out = norm_plus_residual(out, attention, params["mixer_out_w"], params["mixer_out_b"])
    return out.reshape(b, t * token_codim, H, W)


# ----------------------------------------------------------------------------
# Main
# ----------------------------------------------------------------------------

if __name__ == "__main__":
    key = jax.random.PRNGKey(0)
    k_param, k_x = jax.random.split(key)

    n_modes = (4, 4)
    params, kqv_scale = init_coda_params(k_param, n_modes=n_modes)

    # x: (b, t*d, h, w) with b=2, t=4 tokens, d=token_codimension=1, h=w=16
    b, t, H, W = 2, 4, 16, 16
    x = jax.random.normal(k_x, (b, t, H, W), jnp.float32)

    fwd = jax.jit(partial(coda_forward, kqv_scale=kqv_scale))
    y = jax.block_until_ready(fwd(params, x))

    assert y.shape == (b, t, H, W), y.shape
    assert bool(jnp.all(jnp.isfinite(y)))
    print("KERNEL_OK")
</pallas_src>

<mosaic_0001>
module attributes {stable_mosaic.version = 11 : i64} {
  func.func @_norm_affine_kernel(%arg0: i32, %arg1: memref<8x256xf32, #tpu.memory_space<vmem>>, %arg2: memref<2xf32, #tpu.memory_space<smem>>, %arg3: memref<8x256xf32, #tpu.memory_space<vmem>>) attributes {dimension_semantics = [#tpu.dimension_semantics<parallel>], iteration_bounds = array<i64: 1>, scalar_prefetch = 0 : i64, scratch_operands = 0 : i64, tpu.core_type = #tpu.core_type<tc>, window_params = [{transform_indices = @transform_0, window_bounds = array<i64: 8, 256>}, {transform_indices = @transform_1, window_bounds = array<i64: 2>}, {transform_indices = @transform_2, window_bounds = array<i64: 8, 256>}]} {
    %c0 = arith.constant 0 : index
    %c0_0 = arith.constant 0 : index
    %0 = vector.load %arg1[%c0, %c0_0] : memref<8x256xf32, #tpu.memory_space<vmem>>, vector<8x256xf32>
    %cst = arith.constant dense<0.000000e+00> : vector<8xf32>
    %1 = vector.multi_reduction <add>, %0, %cst [1] : vector<8x256xf32> to vector<8xf32>
    %2 = vector.shape_cast %1 : vector<8xf32> to vector<8x1xf32>
    %cst_1 = arith.constant 2.560000e+02 : f32
    %3 = vector.broadcast %cst_1 : f32 to vector<8x1xf32>
    %4 = arith.divf %2, %3 : vector<8x1xf32>
    %5 = vector.broadcast %4 : vector<8x1xf32> to vector<8x256xf32>
    %6 = arith.subf %0, %5 : vector<8x256xf32>
    %7 = arith.mulf %6, %6 : vector<8x256xf32>
    %cst_2 = arith.constant dense<0.000000e+00> : vector<8xf32>
    %8 = vector.multi_reduction <add>, %7, %cst_2 [1] : vector<8x256xf32> to vector<8xf32>
    %9 = vector.shape_cast %8 : vector<8xf32> to vector<8x1xf32>
    %cst_3 = arith.constant 2.560000e+02 : f32
    %10 = vector.broadcast %cst_3 : f32 to vector<8x1xf32>
    %11 = arith.divf %9, %10 : vector<8x1xf32>
    %cst_4 = arith.constant 9.99999974E-6 : f32
    %12 = vector.broadcast %cst_4 : f32 to vector<8x1xf32>
    %13 = arith.addf %11, %12 : vector<8x1xf32>
    %14 = math.rsqrt %13 : vector<8x1xf32>
    %15 = vector.broadcast %14 : vector<8x1xf32> to vector<8x256xf32>
    %16 = arith.mulf %6, %15 : vector<8x256xf32>
    %c0_5 = arith.constant 0 : index
    %17 = memref.load %arg2[%c0_5] : memref<2xf32, #tpu.memory_space<smem>>
    %18 = vector.broadcast %17 : f32 to vector<8x256xf32>
    %19 = arith.mulf %16, %18 : vector<8x256xf32>
    %c1 = arith.constant 1 : index
    %20 = memref.load %arg2[%c1] : memref<2xf32, #tpu.memory_space<smem>>
    %21 = vector.broadcast %20 : f32 to vector<8x256xf32>
    %22 = arith.addf %19, %21 : vector<8x256xf32>
    %c0_6 = arith.constant 0 : index
    %c0_7 = arith.constant 0 : index
    %23 = vector.load %arg3[%c0_6, %c0_7] : memref<8x256xf32, #tpu.memory_space<vmem>>, vector<8x256xf32>
    tpu.vector_store %arg3[%c0_6, %c0_7], %22 {strides = array<i32>} : memref<8x256xf32, #tpu.memory_space<vmem>>, vector<8x256xf32>,
    return
  }
  func.func @transform_0(%arg0: i32) -> (i32, i32) {
    %c0_i32 = arith.constant 0 : i32
    %c0_i32_0 = arith.constant 0 : i32
    return %arg0, %c0_i32 : i32, i32
  }
  func.func @transform_1(%arg0: i32) -> i32 {
    %c0_i32 = arith.constant 0 : i32
    %c0_i32_0 = arith.constant 0 : i32
    return %c0_i32 : i32
  }
  func.func @transform_2(%arg0: i32) -> (i32, i32) {
    %c0_i32 = arith.constant 0 : i32
    %c0_i32_0 = arith.constant 0 : i32
    return %arg0, %c0_i32 : i32, i32
  }
}

module attributes {stable_mosaic.version = 11 : i64} {
  func.func @_fno_post_kernel(%arg0: i32, %arg1: memref<8x64xf32, #tpu.memory_space<vmem>>, %arg2: memref<8x64xf32, #tpu.memory_space<vmem>>, %arg3: memref<7xf32, #tpu.memory_space<smem>>, %arg4: memref<8x64xf32, #tpu.memory_space<vmem>>) attributes {dimension_semantics = [#tpu.dimension_semantics<parallel>], iteration_bounds = array<i64: 1>, scalar_prefetch = 0 : i64, scratch_operands = 0 : i64, tpu.core_type = #tpu.core_type<tc>, window_params = [{transform_indices = @transform_0, window_bounds = array<i64: 8, 64>}, {transform_indices = @transform_1, window_bounds = array<i64: 8, 64>}, {transform_indices = @transform_2, window_bounds = array<i64: 7>}, {transform_indices = @transform_3, window_bounds = array<i64: 8, 64>}]} {
    %c0 = arith.constant 0 : index
    %c0_0 = arith.constant 0 : index
    %0 = vector.load %arg1[%c0, %c0_0] : memref<8x64xf32, #tpu.memory_space<vmem>>, vector<8x64xf32>
    %c0_1 = arith.constant 0 : index
    %1 = memref.load %arg3[%c0_1] : memref<7xf32, #tpu.memory_space<smem>>
    %2 = vector.broadcast %1 : f32 to vector<8x64xf32>
    %3 = arith.addf %0, %2 : vector<8x64xf32>
    %c0_2 = arith.constant 0 : index
    %c0_3 = arith.constant 0 : index
    %4 = vector.load %arg2[%c0_2, %c0_3] : memref<8x64xf32, #tpu.memory_space<vmem>>, vector<8x64xf32>
    %c1 = arith.constant 1 : index
    %5 = memref.load %arg3[%c1] : memref<7xf32, #tpu.memory_space<smem>>
    %6 = vector.broadcast %5 : f32 to vector<8x64xf32>
    %7 = arith.mulf %6, %4 : vector<8x64xf32>
    %8 = arith.addf %3, %7 : vector<8x64xf32>
    %c3 = arith.constant 3 : index
    %9 = memref.load %arg3[%c3] : memref<7xf32, #tpu.memory_space<smem>>
    %10 = vector.broadcast %9 : f32 to vector<8x64xf32>
    %11 = arith.mulf %8, %10 : vector<8x64xf32>
    %c4 = arith.constant 4 : index
    %12 = memref.load %arg3[%c4] : memref<7xf32, #tpu.memory_space<smem>>
    %13 = vector.broadcast %12 : f32 to vector<8x64xf32>
    %14 = arith.addf %11, %13 : vector<8x64xf32>
    %cst = arith.constant 5.000000e-01 : f32
    %15 = vector.broadcast %cst : f32 to vector<8x64xf32>
    %16 = arith.mulf %15, %14 : vector<8x64xf32>
    %cst_4 = arith.constant 0.707106769 : f32
    %17 = vector.broadcast %cst_4 : f32 to vector<8x64xf32>
    %18 = arith.mulf %14, %17 : vector<8x64xf32>
    %19 = math.absf %18 : vector<8x64xf32>
    %cst_5 = arith.constant 0.327591091 : f32
    %20 = vector.broadcast %cst_5 : f32 to vector<8x64xf32>
    %21 = arith.mulf %20, %19 : vector<8x64xf32>
    %cst_6 = arith.constant 1.000000e+00 : f32
    %22 = vector.broadcast %cst_6 : f32 to vector<8x64xf32>
    %23 = arith.addf %22, %21 : vector<8x64xf32>
    %cst_7 = arith.constant 1.000000e+00 : f32
    %24 = vector.broadcast %cst_7 : f32 to vector<8x64xf32>
    %25 = arith.divf %24, %23 : vector<8x64xf32>
    %cst_8 = arith.constant 1.06140542 : f32
    %26 = vector.broadcast %cst_8 : f32 to vector<8x64xf32>
    %27 = arith.mulf %26, %25 : vector<8x64xf32>
    %cst_9 = arith.constant -1.45315206 : f32
    %28 = vector.broadcast %cst_9 : f32 to vector<8x64xf32>
    %29 = arith.addf %27, %28 : vector<8x64xf32>
    %30 = arith.mulf %29, %25 : vector<8x64xf32>
    %cst_10 = arith.constant 1.42141378 : f32
    %31 = vector.broadcast %cst_10 : f32 to vector<8x64xf32>
    %32 = arith.addf %30, %31 : vector<8x64xf32>
    %33 = arith.mulf %32, %25 : vector<8x64xf32>
    %cst_11 = arith.constant -0.284496725 : f32
    %34 = vector.broadcast %cst_11 : f32 to vector<8x64xf32>
    %35 = arith.addf %33, %34 : vector<8x64xf32>
    %36 = arith.mulf %35, %25 : vector<8x64xf32>
    %cst_12 = arith.constant 0.254829586 : f32
    %37 = vector.broadcast %cst_12 : f32 to vector<8x64xf32>
    %38 = arith.addf %36, %37 : vector<8x64xf32>
    %39 = arith.mulf %38, %25 : vector<8x64xf32>
    %cst_13 = arith.constant 0.000000e+00 : f32
    %40 = vector.broadcast %cst_13 : f32 to vector<8x64xf32>
    %41 = arith.subf %40, %19 : vector<8x64xf32>
    %42 = arith.mulf %41, %19 : vector<8x64xf32>
    %43 = math.exp %42 : vector<8x64xf32>
    %44 = arith.mulf %39, %43 : vector<8x64xf32>
    %cst_14 = arith.constant 1.000000e+00 : f32
    %45 = vector.broadcast %cst_14 : f32 to vector<8x64xf32>
    %46 = arith.subf %45, %44 : vector<8x64xf32>
    %cst_15 = arith.constant 0.000000e+00 : f32
    %47 = vector.broadcast %cst_15 : f32 to vector<8x64xf32>
    %48 = arith.cmpf olt, %18, %47 : vector<8x64xf32>
    %cst_16 = arith.constant 0.000000e+00 : f32
    %49 = vector.broadcast %cst_16 : f32 to vector<8x64xf32>
    %50 = arith.subf %49, %46 : vector<8x64xf32>
    %51 = arith.select %48, %50, %46 : vector<8x64xi1>, vector<8x64xf32>
    %cst_17 = arith.constant 1.000000e+00 : f32
    %52 = vector.broadcast %cst_17 : f32 to vector<8x64xf32>
    %53 = arith.addf %52, %51 : vector<8x64xf32>
    %54 = arith.mulf %16, %53 : vector<8x64xf32>
    %c5 = arith.constant 5 : index
    %55 = memref.load %arg3[%c5] : memref<7xf32, #tpu.memory_space<smem>>
    %56 = vector.broadcast %55 : f32 to vector<8x64xf32>
    %57 = arith.mulf %54, %56 : vector<8x64xf32>
    %c6 = arith.constant 6 : index
    %58 = memref.load %arg3[%c6] : memref<7xf32, #tpu.memory_space<smem>>
    %59 = vector.broadcast %58 : f32 to vector<8x64xf32>
    %60 = arith.addf %57, %59 : vector<8x64xf32>
    %c2 = arith.constant 2 : index
    %61 = memref.load %arg3[%c2] : memref<7xf32, #tpu.memory_space<smem>>
    %62 = vector.broadcast %61 : f32 to vector<8x64xf32>
    %63 = arith.mulf %62, %4 : vector<8x64xf32>
    %64 = arith.addf %60, %63 : vector<8x64xf32>
    %c0_18 = arith.constant 0 : index
    %c0_19 = arith.constant 0 : index
    %65 = vector.load %arg4[%c0_18, %c0_19] : memref<8x64xf32, #tpu.memory_space<vmem>>, vector<8x64xf32>
    tpu.vector_store %arg4[%c0_18, %c0_19], %64 {strides = array<i32>} : memref<8x64xf32, #tpu.memory_space<vmem>>, vector<8x64xf32>,
    return
  }
  func.func @transform_0(%arg0: i32) -> (i32, i32) {
    %c0_i32 = arith.constant 0 : i32
    %c0_i32_0 = arith.constant 0 : i32
    return %arg0, %c0_i32 : i32, i32
  }
  func.func @transform_1(%arg0: i32) -> (i32, i32) {
    %c0_i32 = arith.constant 0 : i32
    %c0_i32_0 = arith.constant 0 : i32
    return %arg0, %c0_i32 : i32, i32
  }
  func.func @transform_2(%arg0: i32) -> i32 {
    %c0_i32 = arith.constant 0 : i32
    %c0_i32_0 = arith.constant 0 : i32
    return %c0_i32 : i32
  }
  func.func @transform_3(%arg0: i32) -> (i32, i32) {
    %c0_i32 = arith.constant 0 : i32
    %c0_i32_0 = arith.constant 0 : i32
    return %arg0, %c0_i32 : i32, i32
  }
}

module attributes {stable_mosaic.version = 11 : i64} {
  func.func @_fno_post_kernel(%arg0: i32, %arg1: memref<8x256xf32, #tpu.memory_space<vmem>>, %arg2: memref<8x256xf32, #tpu.memory_space<vmem>>, %arg3: memref<7xf32, #tpu.memory_space<smem>>, %arg4: memref<8x256xf32, #tpu.memory_space<vmem>>) attributes {dimension_semantics = [#tpu.dimension_semantics<parallel>], iteration_bounds = array<i64: 1>, scalar_prefetch = 0 : i64, scratch_operands = 0 : i64, tpu.core_type = #tpu.core_type<tc>, window_params = [{transform_indices = @transform_0, window_bounds = array<i64: 8, 256>}, {transform_indices = @transform_1, window_bounds = array<i64: 8, 256>}, {transform_indices = @transform_2, window_bounds = array<i64: 7>}, {transform_indices = @transform_3, window_bounds = array<i64: 8, 256>}]} {
    %c0 = arith.constant 0 : index
    %c0_0 = arith.constant 0 : index
    %0 = vector.load %arg1[%c0, %c0_0] : memref<8x256xf32, #tpu.memory_space<vmem>>, vector<8x256xf32>
    %c0_1 = arith.constant 0 : index
    %1 = memref.load %arg3[%c0_1] : memref<7xf32, #tpu.memory_space<smem>>
    %2 = vector.broadcast %1 : f32 to vector<8x256xf32>
    %3 = arith.addf %0, %2 : vector<8x256xf32>
    %c0_2 = arith.constant 0 : index
    %c0_3 = arith.constant 0 : index
    %4 = vector.load %arg2[%c0_2, %c0_3] : memref<8x256xf32, #tpu.memory_space<vmem>>, vector<8x256xf32>
    %c1 = arith.constant 1 : index
    %5 = memref.load %arg3[%c1] : memref<7xf32, #tpu.memory_space<smem>>
    %6 = vector.broadcast %5 : f32 to vector<8x256xf32>
    %7 = arith.mulf %6, %4 : vector<8x256xf32>
    %8 = arith.addf %3, %7 : vector<8x256xf32>
    %c3 = arith.constant 3 : index
    %9 = memref.load %arg3[%c3] : memref<7xf32, #tpu.memory_space<smem>>
    %10 = vector.broadcast %9 : f32 to vector<8x256xf32>
    %11 = arith.mulf %8, %10 : vector<8x256xf32>
    %c4 = arith.constant 4 : index
    %12 = memref.load %arg3[%c4] : memref<7xf32, #tpu.memory_space<smem>>
    %13 = vector.broadcast %12 : f32 to vector<8x256xf32>
    %14 = arith.addf %11, %13 : vector<8x256xf32>
    %cst = arith.constant 5.000000e-01 : f32
    %15 = vector.broadcast %cst : f32 to vector<8x256xf32>
    %16 = arith.mulf %15, %14 : vector<8x256xf32>
    %cst_4 = arith.constant 0.707106769 : f32
    %17 = vector.broadcast %cst_4 : f32 to vector<8x256xf32>
    %18 = arith.mulf %14, %17 : vector<8x256xf32>
    %19 = math.absf %18 : vector<8x256xf32>
    %cst_5 = arith.constant 0.327591091 : f32
    %20 = vector.broadcast %cst_5 : f32 to vector<8x256xf32>
    %21 = arith.mulf %20, %19 : vector<8x256xf32>
    %cst_6 = arith.constant 1.000000e+00 : f32
    %22 = vector.broadcast %cst_6 : f32 to vector<8x256xf32>
    %23 = arith.addf %22, %21 : vector<8x256xf32>
    %cst_7 = arith.constant 1.000000e+00 : f32
    %24 = vector.broadcast %cst_7 : f32 to vector<8x256xf32>
    %25 = arith.divf %24, %23 : vector<8x256xf32>
    %cst_8 = arith.constant 1.06140542 : f32
    %26 = vector.broadcast %cst_8 : f32 to vector<8x256xf32>
    %27 = arith.mulf %26, %25 : vector<8x256xf32>
    %cst_9 = arith.constant -1.45315206 : f32
    %28 = vector.broadcast %cst_9 : f32 to vector<8x256xf32>
    %29 = arith.addf %27, %28 : vector<8x256xf32>
    %30 = arith.mulf %29, %25 : vector<8x256xf32>
    %cst_10 = arith.constant 1.42141378 : f32
    %31 = vector.broadcast %cst_10 : f32 to vector<8x256xf32>
    %32 = arith.addf %30, %31 : vector<8x256xf32>
    %33 = arith.mulf %32, %25 : vector<8x256xf32>
    %cst_11 = arith.constant -0.284496725 : f32
    %34 = vector.broadcast %cst_11 : f32 to vector<8x256xf32>
    %35 = arith.addf %33, %34 : vector<8x256xf32>
    %36 = arith.mulf %35, %25 : vector<8x256xf32>
    %cst_12 = arith.constant 0.254829586 : f32
    %37 = vector.broadcast %cst_12 : f32 to vector<8x256xf32>
    %38 = arith.addf %36, %37 : vector<8x256xf32>
    %39 = arith.mulf %38, %25 : vector<8x256xf32>
    %cst_13 = arith.constant 0.000000e+00 : f32
    %40 = vector.broadcast %cst_13 : f32 to vector<8x256xf32>
    %41 = arith.subf %40, %19 : vector<8x256xf32>
    %42 = arith.mulf %41, %19 : vector<8x256xf32>
    %43 = math.exp %42 : vector<8x256xf32>
    %44 = arith.mulf %39, %43 : vector<8x256xf32>
    %cst_14 = arith.constant 1.000000e+00 : f32
    %45 = vector.broadcast %cst_14 : f32 to vector<8x256xf32>
    %46 = arith.subf %45, %44 : vector<8x256xf32>
    %cst_15 = arith.constant 0.000000e+00 : f32
    %47 = vector.broadcast %cst_15 : f32 to vector<8x256xf32>
    %48 = arith.cmpf olt, %18, %47 : vector<8x256xf32>
    %cst_16 = arith.constant 0.000000e+00 : f32
    %49 = vector.broadcast %cst_16 : f32 to vector<8x256xf32>
    %50 = arith.subf %49, %46 : vector<8x256xf32>
    %51 = arith.select %48, %50, %46 : vector<8x256xi1>, vector<8x256xf32>
    %cst_17 = arith.constant 1.000000e+00 : f32
    %52 = vector.broadcast %cst_17 : f32 to vector<8x256xf32>
    %53 = arith.addf %52, %51 : vector<8x256xf32>
    %54 = arith.mulf %16, %53 : vector<8x256xf32>
    %c5 = arith.constant 5 : index
    %55 = memref.load %arg3[%c5] : memref<7xf32, #tpu.memory_space<smem>>
    %56 = vector.broadcast %55 : f32 to vector<8x256xf32>
    %57 = arith.mulf %54, %56 : vector<8x256xf32>
    %c6 = arith.constant 6 : index
    %58 = memref.load %arg3[%c6] : memref<7xf32, #tpu.memory_space<smem>>
    %59 = vector.broadcast %58 : f32 to vector<8x256xf32>
    %60 = arith.addf %57, %59 : vector<8x256xf32>
    %c2 = arith.constant 2 : index
    %61 = memref.load %arg3[%c2] : memref<7xf32, #tpu.memory_space<smem>>
    %62 = vector.broadcast %61 : f32 to vector<8x256xf32>
    %63 = arith.mulf %62, %4 : vector<8x256xf32>
    %64 = arith.addf %60, %63 : vector<8x256xf32>
    %c0_18 = arith.constant 0 : index
    %c0_19 = arith.constant 0 : index
    %65 = vector.load %arg4[%c0_18, %c0_19] : memref<8x256xf32, #tpu.memory_space<vmem>>, vector<8x256xf32>
    tpu.vector_store %arg4[%c0_18, %c0_19], %64 {strides = array<i32>} : memref<8x256xf32, #tpu.memory_space<vmem>>, vector<8x256xf32>,
    return
  }
  func.func @transform_0(%arg0: i32) -> (i32, i32) {
    %c0_i32 = arith.constant 0 : i32
    %c0_i32_0 = arith.constant 0 : i32
    return %arg0, %c0_i32 : i32, i32
  }
  func.func @transform_1(%arg0: i32) -> (i32, i32) {
    %c0_i32 = arith.constant 0 : i32
    %c0_i32_0 = arith.constant 0 : i32
    return %arg0, %c0_i32 : i32, i32
  }
  func.func @transform_2(%arg0: i32) -> i32 {
    %c0_i32 = arith.constant 0 : i32
    %c0_i32_0 = arith.constant 0 : i32
    return %c0_i32 : i32
  }
  func.func @transform_3(%arg0: i32) -> (i32, i32) {
    %c0_i32 = arith.constant 0 : i32
    %c0_i32_0 = arith.constant 0 : i32
    return %arg0, %c0_i32 : i32, i32
  }
}

module attributes {stable_mosaic.version = 11 : i64} {
  func.func @_attention_kernel(%arg0: memref<2x4x64xf32, #tpu.memory_space<vmem>>, %arg1: memref<2x4x64xf32, #tpu.memory_space<vmem>>, %arg2: memref<2x4x256xf32, #tpu.memory_space<vmem>>, %arg3: memref<2x4x256xf32, #tpu.memory_space<vmem>>) attributes {dimension_semantics = [], scalar_prefetch = 0 : i64, scratch_operands = 0 : i64, tpu.core_type = #tpu.core_type<tc>} {
    %c0 = arith.constant 0 : index
    %c0_0 = arith.constant 0 : index
    %c0_1 = arith.constant 0 : index
    %0 = vector.load %arg0[%c0, %c0_0, %c0_1] : memref<2x4x64xf32, #tpu.memory_space<vmem>>, vector<1x4x64xf32>
    %1 = vector.shape_cast %0 : vector<1x4x64xf32> to vector<4x64xf32>
    %c0_2 = arith.constant 0 : index
    %c0_3 = arith.constant 0 : index
    %c0_4 = arith.constant 0 : index
    %2 = vector.load %arg1[%c0_2, %c0_3, %c0_4] : memref<2x4x64xf32, #tpu.memory_space<vmem>>, vector<1x4x64xf32>
    %3 = vector.shape_cast %2 : vector<1x4x64xf32> to vector<4x64xf32>
    %c0_5 = arith.constant 0 : index
    %c0_6 = arith.constant 0 : index
    %c0_7 = arith.constant 0 : index
    %4 = vector.load %arg2[%c0_5, %c0_6, %c0_7] : memref<2x4x256xf32, #tpu.memory_space<vmem>>, vector<1x4x256xf32>
    %5 = vector.shape_cast %4 : vector<1x4x256xf32> to vector<4x256xf32>
    %cst = arith.constant dense<0.000000e+00> : vector<4x4xf32>
    %6 = tpu.matmul %1, %3, %cst {dimension_numbers = #tpu.dot_dimension_numbers<[1], [1], [0], [0], [0, 0, 1, 0], [], []>} : vector<4x64xf32>, vector<4x64xf32>, vector<4x4xf32> -> vector<4x4xf32>
    %cst_8 = arith.constant 1.250000e-01 : f32
    %7 = vector.broadcast %cst_8 : f32 to vector<4x4xf32>
    %8 = arith.mulf %6, %7 : vector<4x4xf32>
    %cst_9 = arith.constant dense<0xFF800000> : vector<4xf32>
    %9 = vector.multi_reduction <maximumf>, %8, %cst_9 [1] : vector<4x4xf32> to vector<4xf32>
    %10 = vector.shape_cast %9 : vector<4xf32> to vector<4x1xf32>
    %11 = vector.broadcast %10 : vector<4x1xf32> to vector<4x4xf32>
    %12 = arith.subf %8, %11 : vector<4x4xf32>
    %13 = math.exp %12 : vector<4x4xf32>
    %cst_10 = arith.constant dense<0.000000e+00> : vector<4xf32>
    %14 = vector.multi_reduction <add>, %13, %cst_10 [1] : vector<4x4xf32> to vector<4xf32>
    %15 = vector.shape_cast %14 : vector<4xf32> to vector<4x1xf32>
    %16 = tpu.reciprocal %15 {approx = true} : vector<4x1xf32> -> vector<4x1xf32>
    %17 = vector.broadcast %16 : vector<4x1xf32> to vector<4x4xf32>
    %18 = arith.mulf %13, %17 : vector<4x4xf32>
    %cst_11 = arith.constant dense<0.000000e+00> : vector<4x256xf32>
    %19 = tpu.matmul %18, %5, %cst_11 {dimension_numbers = #tpu.dot_dimension_numbers<[1], [0], [0], [1], [0, 0, 1, 1], [], []>} : vector<4x4xf32>, vector<4x256xf32>, vector<4x256xf32> -> vector<4x256xf32>
    %c0_12 = arith.constant 0 : index
    %c0_13 = arith.constant 0 : index
    %c0_14 = arith.constant 0 : index
    %20 = vector.load %arg3[%c0_12, %c0_13, %c0_14] : memref<2x4x256xf32, #tpu.memory_space<vmem>>, vector<1x4x256xf32>
    %21 = vector.shape_cast %20 : vector<1x4x256xf32> to vector<4x256xf32>
    %22 = vector.shape_cast %19 : vector<4x256xf32> to vector<1x4x256xf32>
    tpu.vector_store %arg3[%c0_12, %c0_13, %c0_14], %22 {strides = array<i32>} : memref<2x4x256xf32, #tpu.memory_space<vmem>>, vector<1x4x256xf32>,
    %c1 = arith.constant 1 : index
    %c0_15 = arith.constant 0 : index
    %c0_16 = arith.constant 0 : index
    %23 = vector.load %arg0[%c1, %c0_15, %c0_16] : memref<2x4x64xf32, #tpu.memory_space<vmem>>, vector<1x4x64xf32>
    %24 = vector.shape_cast %23 : vector<1x4x64xf32> to vector<4x64xf32>
    %c1_17 = arith.constant 1 : index
    %c0_18 = arith.constant 0 : index
    %c0_19 = arith.constant 0 : index
    %25 = vector.load %arg1[%c1_17, %c0_18, %c0_19] : memref<2x4x64xf32, #tpu.memory_space<vmem>>, vector<1x4x64xf32>
    %26 = vector.shape_cast %25 : vector<1x4x64xf32> to vector<4x64xf32>
    %c1_20 = arith.constant 1 : index
    %c0_21 = arith.constant 0 : index
    %c0_22 = arith.constant 0 : index
    %27 = vector.load %arg2[%c1_20, %c0_21, %c0_22] : memref<2x4x256xf32, #tpu.memory_space<vmem>>, vector<1x4x256xf32>
    %28 = vector.shape_cast %27 : vector<1x4x256xf32> to vector<4x256xf32>
    %cst_23 = arith.constant dense<0.000000e+00> : vector<4x4xf32>
    %29 = tpu.matmul %24, %26, %cst_23 {dimension_numbers = #tpu.dot_dimension_numbers<[1], [1], [0], [0], [0, 0, 1, 0], [], []>} : vector<4x64xf32>, vector<4x64xf32>, vector<4x4xf32> -> vector<4x4xf32>
    %cst_24 = arith.constant 1.250000e-01 : f32
    %30 = vector.broadcast %cst_24 : f32 to vector<4x4xf32>
    %31 = arith.mulf %29, %30 : vector<4x4xf32>
    %cst_25 = arith.constant dense<0xFF800000> : vector<4xf32>
    %32 = vector.multi_reduction <maximumf>, %31, %cst_25 [1] : vector<4x4xf32> to vector<4xf32>
    %33 = vector.shape_cast %32 : vector<4xf32> to vector<4x1xf32>
    %34 = vector.broadcast %33 : vector<4x1xf32> to vector<4x4xf32>
    %35 = arith.subf %31, %34 : vector<4x4xf32>
    %36 = math.exp %35 : vector<4x4xf32>
    %cst_26 = arith.constant dense<0.000000e+00> : vector<4xf32>
    %37 = vector.multi_reduction <add>, %36, %cst_26 [1] : vector<4x4xf32> to vector<4xf32>
    %38 = vector.shape_cast %37 : vector<4xf32> to vector<4x1xf32>
    %39 = tpu.reciprocal %38 {approx = true} : vector<4x1xf32> -> vector<4x1xf32>
    %40 = vector.broadcast %39 : vector<4x1xf32> to vector<4x4xf32>
    %41 = arith.mulf %36, %40 : vector<4x4xf32>
    %cst_27 = arith.constant dense<0.000000e+00> : vector<4x256xf32>
    %42 = tpu.matmul %41, %28, %cst_27 {dimension_numbers = #tpu.dot_dimension_numbers<[1], [0], [0], [1], [0, 0, 1, 1], [], []>} : vector<4x4xf32>, vector<4x256xf32>, vector<4x256xf32> -> vector<4x256xf32>
    %c1_28 = arith.constant 1 : index
    %c0_29 = arith.constant 0 : index
    %c0_30 = arith.constant 0 : index
    %43 = vector.load %arg3[%c1_28, %c0_29, %c0_30] : memref<2x4x256xf32, #tpu.memory_space<vmem>>, vector<1x4x256xf32>
    %44 = vector.shape_cast %43 : vector<1x4x256xf32> to vector<4x256xf32>
    %45 = vector.shape_cast %42 : vector<4x256xf32> to vector<1x4x256xf32>
    tpu.vector_store %arg3[%c1_28, %c0_29, %c0_30], %45 {strides = array<i32>} : memref<2x4x256xf32, #tpu.memory_space<vmem>>, vector<1x4x256xf32>,
    return
  }
}

module attributes {stable_mosaic.version = 11 : i64} {
  func.func @_attn_mixer_in_kernel(%arg0: i32, %arg1: memref<8x256xf32, #tpu.memory_space<vmem>>, %arg2: memref<8x256xf32, #tpu.memory_space<vmem>>, %arg3: memref<4xf32, #tpu.memory_space<smem>>, %arg4: memref<8x256xf32, #tpu.memory_space<vmem>>, %arg5: memref<8x256xf32, #tpu.memory_space<vmem>>) attributes {dimension_semantics = [#tpu.dimension_semantics<parallel>], iteration_bounds = array<i64: 1>, scalar_prefetch = 0 : i64, scratch_operands = 0 : i64, tpu.core_type = #tpu.core_type<tc>, window_params = [{transform_indices = @transform_0, window_bounds = array<i64: 8, 256>}, {transform_indices = @transform_1, window_bounds = array<i64: 8, 256>}, {transform_indices = @transform_2, window_bounds = array<i64: 4>}, {transform_indices = @transform_3, window_bounds = array<i64: 8, 256>}, {transform_indices = @transform_4, window_bounds = array<i64: 8, 256>}]} {
    %c0 = arith.constant 0 : index
    %c0_0 = arith.constant 0 : index
    %0 = vector.load %arg1[%c0, %c0_0] : memref<8x256xf32, #tpu.memory_space<vmem>>, vector<8x256xf32>
    %c0_1 = arith.constant 0 : index
    %c0_2 = arith.constant 0 : index
    %1 = vector.load %arg2[%c0_1, %c0_2] : memref<8x256xf32, #tpu.memory_space<vmem>>, vector<8x256xf32>
    %2 = arith.addf %0, %1 : vector<8x256xf32>
    %cst = arith.constant dense<0.000000e+00> : vector<8xf32>
    %3 = vector.multi_reduction <add>, %2, %cst [1] : vector<8x256xf32> to vector<8xf32>
    %4 = vector.shape_cast %3 : vector<8xf32> to vector<8x1xf32>
    %cst_3 = arith.constant 2.560000e+02 : f32
    %5 = vector.broadcast %cst_3 : f32 to vector<8x1xf32>
    %6 = arith.divf %4, %5 : vector<8x1xf32>
    %7 = vector.broadcast %6 : vector<8x1xf32> to vector<8x256xf32>
    %8 = arith.subf %2, %7 : vector<8x256xf32>
    %9 = arith.mulf %8, %8 : vector<8x256xf32>
    %cst_4 = arith.constant dense<0.000000e+00> : vector<8xf32>
    %10 = vector.multi_reduction <add>, %9, %cst_4 [1] : vector<8x256xf32> to vector<8xf32>
    %11 = vector.shape_cast %10 : vector<8xf32> to vector<8x1xf32>
    %cst_5 = arith.constant 2.560000e+02 : f32
    %12 = vector.broadcast %cst_5 : f32 to vector<8x1xf32>
    %13 = arith.divf %11, %12 : vector<8x1xf32>
    %cst_6 = arith.constant 9.99999974E-6 : f32
    %14 = vector.broadcast %cst_6 : f32 to vector<8x1xf32>
    %15 = arith.addf %13, %14 : vector<8x1xf32>
    %16 = math.rsqrt %15 : vector<8x1xf32>
    %17 = vector.broadcast %16 : vector<8x1xf32> to vector<8x256xf32>
    %18 = arith.mulf %8, %17 : vector<8x256xf32>
    %c0_7 = arith.constant 0 : index
    %19 = memref.load %arg3[%c0_7] : memref<4xf32, #tpu.memory_space<smem>>
    %20 = vector.broadcast %19 : f32 to vector<8x256xf32>
    %21 = arith.mulf %18, %20 : vector<8x256xf32>
    %c1 = arith.constant 1 : index
    %22 = memref.load %arg3[%c1] : memref<4xf32, #tpu.memory_space<smem>>
    %23 = vector.broadcast %22 : f32 to vector<8x256xf32>
    %24 = arith.addf %21, %23 : vector<8x256xf32>
    %c0_8 = arith.constant 0 : index
    %c0_9 = arith.constant 0 : index
    %25 = vector.load %arg4[%c0_8, %c0_9] : memref<8x256xf32, #tpu.memory_space<vmem>>, vector<8x256xf32>
    tpu.vector_store %arg4[%c0_8, %c0_9], %24 {strides = array<i32>} : memref<8x256xf32, #tpu.memory_space<vmem>>, vector<8x256xf32>,
    %cst_10 = arith.constant dense<0.000000e+00> : vector<8xf32>
    %26 = vector.multi_reduction <add>, %24, %cst_10 [1] : vector<8x256xf32> to vector<8xf32>
    %27 = vector.shape_cast %26 : vector<8xf32> to vector<8x1xf32>
    %cst_11 = arith.constant 2.560000e+02 : f32
    %28 = vector.broadcast %cst_11 : f32 to vector<8x1xf32>
    %29 = arith.divf %27, %28 : vector<8x1xf32>
    %30 = vector.broadcast %29 : vector<8x1xf32> to vector<8x256xf32>
    %31 = arith.subf %24, %30 : vector<8x256xf32>
    %32 = arith.mulf %31, %31 : vector<8x256xf32>
    %cst_12 = arith.constant dense<0.000000e+00> : vector<8xf32>
    %33 = vector.multi_reduction <add>, %32, %cst_12 [1] : vector<8x256xf32> to vector<8xf32>
    %34 = vector.shape_cast %33 : vector<8xf32> to vector<8x1xf32>
    %cst_13 = arith.constant 2.560000e+02 : f32
    %35 = vector.broadcast %cst_13 : f32 to vector<8x1xf32>
    %36 = arith.divf %34, %35 : vector<8x1xf32>
    %cst_14 = arith.constant 9.99999974E-6 : f32
    %37 = vector.broadcast %cst_14 : f32 to vector<8x1xf32>
    %38 = arith.addf %36, %37 : vector<8x1xf32>
    %39 = math.rsqrt %38 : vector<8x1xf32>
    %40 = vector.broadcast %39 : vector<8x1xf32> to vector<8x256xf32>
    %41 = arith.mulf %31, %40 : vector<8x256xf32>
    %c2 = arith.constant 2 : index
    %42 = memref.load %arg3[%c2] : memref<4xf32, #tpu.memory_space<smem>>
    %43 = vector.broadcast %42 : f32 to vector<8x256xf32>
    %44 = arith.mulf %41, %43 : vector<8x256xf32>
    %c3 = arith.constant 3 : index
    %45 = memref.load %arg3[%c3] : memref<4xf32, #tpu.memory_space<smem>>
    %46 = vector.broadcast %45 : f32 to vector<8x256xf32>
    %47 = arith.addf %44, %46 : vector<8x256xf32>
    %c0_15 = arith.constant 0 : index
    %c0_16 = arith.constant 0 : index
    %48 = vector.load %arg5[%c0_15, %c0_16] : memref<8x256xf32, #tpu.memory_space<vmem>>, vector<8x256xf32>
    tpu.vector_store %arg5[%c0_15, %c0_16], %47 {strides = array<i32>} : memref<8x256xf32, #tpu.memory_space<vmem>>, vector<8x256xf32>,
    return
  }
  func.func @transform_0(%arg0: i32) -> (i32, i32) {
    %c0_i32 = arith.constant 0 : i32
    %c0_i32_0 = arith.constant 0 : i32
    return %arg0, %c0_i32 : i32, i32
  }
  func.func @transform_1(%arg0: i32) -> (i32, i32) {
    %c0_i32 = arith.constant 0 : i32
    %c0_i32_0 = arith.constant 0 : i32
    return %arg0, %c0_i32 : i32, i32
  }
  func.func @transform_2(%arg0: i32) -> i32 {
    %c0_i32 = arith.constant 0 : i32
    %c0_i32_0 = arith.constant 0 : i32
    return %c0_i32 : i32
  }
  func.func @transform_3(%arg0: i32) -> (i32, i32) {
    %c0_i32 = arith.constant 0 : i32
    %c0_i32_0 = arith.constant 0 : i32
    return %arg0, %c0_i32 : i32, i32
  }
  func.func @transform_4(%arg0: i32) -> (i32, i32) {
    %c0_i32 = arith.constant 0 : i32
    %c0_i32_0 = arith.constant 0 : i32
    return %arg0, %c0_i32 : i32, i32
  }
}

module attributes {stable_mosaic.version = 11 : i64} {
  func.func @_fno_post_kernel(%arg0: i32, %arg1: memref<8x256xf32, #tpu.memory_space<vmem>>, %arg2: memref<8x256xf32, #tpu.memory_space<vmem>>, %arg3: memref<7xf32, #tpu.memory_space<smem>>, %arg4: memref<8x256xf32, #tpu.memory_space<vmem>>) attributes {dimension_semantics = [#tpu.dimension_semantics<parallel>], iteration_bounds = array<i64: 1>, scalar_prefetch = 0 : i64, scratch_operands = 0 : i64, tpu.core_type = #tpu.core_type<tc>, window_params = [{transform_indices = @transform_0, window_bounds = array<i64: 8, 256>}, {transform_indices = @transform_1, window_bounds = array<i64: 8, 256>}, {transform_indices = @transform_2, window_bounds = array<i64: 7>}, {transform_indices = @transform_3, window_bounds = array<i64: 8, 256>}]} {
    %c0 = arith.constant 0 : index
    %c0_0 = arith.constant 0 : index
    %0 = vector.load %arg1[%c0, %c0_0] : memref<8x256xf32, #tpu.memory_space<vmem>>, vector<8x256xf32>
    %c0_1 = arith.constant 0 : index
    %1 = memref.load %arg3[%c0_1] : memref<7xf32, #tpu.memory_space<smem>>
    %2 = vector.broadcast %1 : f32 to vector<8x256xf32>
    %3 = arith.addf %0, %2 : vector<8x256xf32>
    %c0_2 = arith.constant 0 : index
    %c0_3 = arith.constant 0 : index
    %4 = vector.load %arg2[%c0_2, %c0_3] : memref<8x256xf32, #tpu.memory_space<vmem>>, vector<8x256xf32>
    %cst = arith.constant dense<0.000000e+00> : vector<8xf32>
    %5 = vector.multi_reduction <add>, %3, %cst [1] : vector<8x256xf32> to vector<8xf32>
    %6 = vector.shape_cast %5 : vector<8xf32> to vector<8x1xf32>
    %cst_4 = arith.constant 2.560000e+02 : f32
    %7 = vector.broadcast %cst_4 : f32 to vector<8x1xf32>
    %8 = arith.divf %6, %7 : vector<8x1xf32>
    %9 = vector.broadcast %8 : vector<8x1xf32> to vector<8x256xf32>
    %10 = arith.subf %3, %9 : vector<8x256xf32>
    %11 = arith.mulf %10, %10 : vector<8x256xf32>
    %cst_5 = arith.constant dense<0.000000e+00> : vector<8xf32>
    %12 = vector.multi_reduction <add>, %11, %cst_5 [1] : vector<8x256xf32> to vector<8xf32>
    %13 = vector.shape_cast %12 : vector<8xf32> to vector<8x1xf32>
    %cst_6 = arith.constant 2.560000e+02 : f32
    %14 = vector.broadcast %cst_6 : f32 to vector<8x1xf32>
    %15 = arith.divf %13, %14 : vector<8x1xf32>
    %cst_7 = arith.constant 9.99999974E-6 : f32
    %16 = vector.broadcast %cst_7 : f32 to vector<8x1xf32>
    %17 = arith.addf %15, %16 : vector<8x1xf32>
    %18 = math.rsqrt %17 : vector<8x1xf32>
    %19 = vector.broadcast %18 : vector<8x1xf32> to vector<8x256xf32>
    %20 = arith.mulf %10, %19 : vector<8x256xf32>
    %c1 = arith.constant 1 : index
    %21 = memref.load %arg3[%c1] : memref<7xf32, #tpu.memory_space<smem>>
    %22 = vector.broadcast %21 : f32 to vector<8x256xf32>
    %23 = arith.mulf %22, %4 : vector<8x256xf32>
    %24 = arith.addf %20, %23 : vector<8x256xf32>
    %c3 = arith.constant 3 : index
    %25 = memref.load %arg3[%c3] : memref<7xf32, #tpu.memory_space<smem>>
    %26 = vector.broadcast %25 : f32 to vector<8x256xf32>
    %27 = arith.mulf %24, %26 : vector<8x256xf32>
    %c4 = arith.constant 4 : index
    %28 = memref.load %arg3[%c4] : memref<7xf32, #tpu.memory_space<smem>>
    %29 = vector.broadcast %28 : f32 to vector<8x256xf32>
    %30 = arith.addf %27, %29 : vector<8x256xf32>
    %cst_8 = arith.constant 5.000000e-01 : f32
    %31 = vector.broadcast %cst_8 : f32 to vector<8x256xf32>
    %32 = arith.mulf %31, %30 : vector<8x256xf32>
    %cst_9 = arith.constant 0.707106769 : f32
    %33 = vector.broadcast %cst_9 : f32 to vector<8x256xf32>
    %34 = arith.mulf %30, %33 : vector<8x256xf32>
    %35 = math.absf %34 : vector<8x256xf32>
    %cst_10 = arith.constant 0.327591091 : f32
    %36 = vector.broadcast %cst_10 : f32 to vector<8x256xf32>
    %37 = arith.mulf %36, %35 : vector<8x256xf32>
    %cst_11 = arith.constant 1.000000e+00 : f32
    %38 = vector.broadcast %cst_11 : f32 to vector<8x256xf32>
    %39 = arith.addf %38, %37 : vector<8x256xf32>
    %cst_12 = arith.constant 1.000000e+00 : f32
    %40 = vector.broadcast %cst_12 : f32 to vector<8x256xf32>
    %41 = arith.divf %40, %39 : vector<8x256xf32>
    %cst_13 = arith.constant 1.06140542 : f32
    %42 = vector.broadcast %cst_13 : f32 to vector<8x256xf32>
    %43 = arith.mulf %42, %41 : vector<8x256xf32>
    %cst_14 = arith.constant -1.45315206 : f32
    %44 = vector.broadcast %cst_14 : f32 to vector<8x256xf32>
    %45 = arith.addf %43, %44 : vector<8x256xf32>
    %46 = arith.mulf %45, %41 : vector<8x256xf32>
    %cst_15 = arith.constant 1.42141378 : f32
    %47 = vector.broadcast %cst_15 : f32 to vector<8x256xf32>
    %48 = arith.addf %46, %47 : vector<8x256xf32>
    %49 = arith.mulf %48, %41 : vector<8x256xf32>
    %cst_16 = arith.constant -0.284496725 : f32
    %50 = vector.broadcast %cst_16 : f32 to vector<8x256xf32>
    %51 = arith.addf %49, %50 : vector<8x256xf32>
    %52 = arith.mulf %51, %41 : vector<8x256xf32>
    %cst_17 = arith.constant 0.254829586 : f32
    %53 = vector.broadcast %cst_17 : f32 to vector<8x256xf32>
    %54 = arith.addf %52, %53 : vector<8x256xf32>
    %55 = arith.mulf %54, %41 : vector<8x256xf32>
    %cst_18 = arith.constant 0.000000e+00 : f32
    %56 = vector.broadcast %cst_18 : f32 to vector<8x256xf32>
    %57 = arith.subf %56, %35 : vector<8x256xf32>
    %58 = arith.mulf %57, %35 : vector<8x256xf32>
    %59 = math.exp %58 : vector<8x256xf32>
    %60 = arith.mulf %55, %59 : vector<8x256xf32>
    %cst_19 = arith.constant 1.000000e+00 : f32
    %61 = vector.broadcast %cst_19 : f32 to vector<8x256xf32>
    %62 = arith.subf %61, %60 : vector<8x256xf32>
    %cst_20 = arith.constant 0.000000e+00 : f32
    %63 = vector.broadcast %cst_20 : f32 to vector<8x256xf32>
    %64 = arith.cmpf olt, %34, %63 : vector<8x256xf32>
    %cst_21 = arith.constant 0.000000e+00 : f32
    %65 = vector.broadcast %cst_21 : f32 to vector<8x256xf32>
    %66 = arith.subf %65, %62 : vector<8x256xf32>
    %67 = arith.select %64, %66, %62 : vector<8x256xi1>, vector<8x256xf32>
    %cst_22 = arith.constant 1.000000e+00 : f32
    %68 = vector.broadcast %cst_22 : f32 to vector<8x256xf32>
    %69 = arith.addf %68, %67 : vector<8x256xf32>
    %70 = arith.mulf %32, %69 : vector<8x256xf32>
    %c5 = arith.constant 5 : index
    %71 = memref.load %arg3[%c5] : memref<7xf32, #tpu.memory_space<smem>>
    %72 = vector.broadcast %71 : f32 to vector<8x256xf32>
    %73 = arith.mulf %70, %72 : vector<8x256xf32>
    %c6 = arith.constant 6 : index
    %74 = memref.load %arg3[%c6] : memref<7xf32, #tpu.memory_space<smem>>
    %75 = vector.broadcast %74 : f32 to vector<8x256xf32>
    %76 = arith.addf %73, %75 : vector<8x256xf32>
    %c2 = arith.constant 2 : index
    %77 = memref.load %arg3[%c2] : memref<7xf32, #tpu.memory_space<smem>>
    %78 = vector.broadcast %77 : f32 to vector<8x256xf32>
    %79 = arith.mulf %78, %4 : vector<8x256xf32>
    %80 = arith.addf %76, %79 : vector<8x256xf32>
    %cst_23 = arith.constant dense<0.000000e+00> : vector<8xf32>
    %81 = vector.multi_reduction <add>, %80, %cst_23 [1] : vector<8x256xf32> to vector<8xf32>
    %82 = vector.shape_cast %81 : vector<8xf32> to vector<8x1xf32>
    %cst_24 = arith.constant 2.560000e+02 : f32
    %83 = vector.broadcast %cst_24 : f32 to vector<8x1xf32>
    %84 = arith.divf %82, %83 : vector<8x1xf32>
    %85 = vector.broadcast %84 : vector<8x1xf32> to vector<8x256xf32>
    %86 = arith.subf %80, %85 : vector<8x256xf32>
    %87 = arith.mulf %86, %86 : vector<8x256xf32>
    %cst_25 = arith.constant dense<0.000000e+00> : vector<8xf32>
    %88 = vector.multi_reduction <add>, %87, %cst_25 [1] : vector<8x256xf32> to vector<8xf32>
    %89 = vector.shape_cast %88 : vector<8xf32> to vector<8x1xf32>
    %cst_26 = arith.constant 2.560000e+02 : f32
    %90 = vector.broadcast %cst_26 : f32 to vector<8x1xf32>
    %91 = arith.divf %89, %90 : vector<8x1xf32>
    %cst_27 = arith.constant 9.99999974E-6 : f32
    %92 = vector.broadcast %cst_27 : f32 to vector<8x1xf32>
    %93 = arith.addf %91, %92 : vector<8x1xf32>
    %94 = math.rsqrt %93 : vector<8x1xf32>
    %95 = vector.broadcast %94 : vector<8x1xf32> to vector<8x256xf32>
    %96 = arith.mulf %86, %95 : vector<8x256xf32>
    %c0_28 = arith.constant 0 : index
    %c0_29 = arith.constant 0 : index
    %97 = vector.load %arg4[%c0_28, %c0_29] : memref<8x256xf32, #tpu.memory_space<vmem>>, vector<8x256xf32>
    tpu.vector_store %arg4[%c0_28, %c0_29], %96 {strides = array<i32>} : memref<8x256xf32, #tpu.memory_space<vmem>>, vector<8x256xf32>,
    return
  }
  func.func @transform_0(%arg0: i32) -> (i32, i32) {
    %c0_i32 = arith.constant 0 : i32
    %c0_i32_0 = arith.constant 0 : i32
    return %arg0, %c0_i32 : i32, i32
  }
  func.func @transform_1(%arg0: i32) -> (i32, i32) {
    %c0_i32 = arith.constant 0 : i32
    %c0_i32_0 = arith.constant 0 : i32
    return %arg0, %c0_i32 : i32, i32
  }
  func.func @transform_2(%arg0: i32) -> i32 {
    %c0_i32 = arith.constant 0 : i32
    %c0_i32_0 = arith.constant 0 : i32
    return %c0_i32 : i32
  }
  func.func @transform_3(%arg0: i32) -> (i32, i32) {
    %c0_i32 = arith.constant 0 : i32
    %c0_i32_0 = arith.constant 0 : i32
    return %arg0, %c0_i32 : i32, i32
  }
}

module attributes {stable_mosaic.version = 11 : i64} {
  func.func @_norm_plus_residual_kernel(%arg0: i32, %arg1: memref<8x256xf32, #tpu.memory_space<vmem>>, %arg2: memref<8x256xf32, #tpu.memory_space<vmem>>, %arg3: memref<2xf32, #tpu.memory_space<smem>>, %arg4: memref<8x256xf32, #tpu.memory_space<vmem>>) attributes {dimension_semantics = [#tpu.dimension_semantics<parallel>], iteration_bounds = array<i64: 1>, scalar_prefetch = 0 : i64, scratch_operands = 0 : i64, tpu.core_type = #tpu.core_type<tc>, window_params = [{transform_indices = @transform_0, window_bounds = array<i64: 8, 256>}, {transform_indices = @transform_1, window_bounds = array<i64: 8, 256>}, {transform_indices = @transform_2, window_bounds = array<i64: 2>}, {transform_indices = @transform_3, window_bounds = array<i64: 8, 256>}]} {
    %c0 = arith.constant 0 : index
    %c0_0 = arith.constant 0 : index
    %0 = vector.load %arg1[%c0, %c0_0] : memref<8x256xf32, #tpu.memory_space<vmem>>, vector<8x256xf32>
    %c0_1 = arith.constant 0 : index
    %c0_2 = arith.constant 0 : index
    %1 = vector.load %arg2[%c0_1, %c0_2] : memref<8x256xf32, #tpu.memory_space<vmem>>, vector<8x256xf32>
    %cst = arith.constant dense<0.000000e+00> : vector<8xf32>
    %2 = vector.multi_reduction <add>, %0, %cst [1] : vector<8x256xf32> to vector<8xf32>
    %3 = vector.shape_cast %2 : vector<8xf32> to vector<8x1xf32>
    %cst_3 = arith.constant 2.560000e+02 : f32
    %4 = vector.broadcast %cst_3 : f32 to vector<8x1xf32>
    %5 = arith.divf %3, %4 : vector<8x1xf32>
    %6 = vector.broadcast %5 : vector<8x1xf32> to vector<8x256xf32>
    %7 = arith.subf %0, %6 : vector<8x256xf32>
    %8 = arith.mulf %7, %7 : vector<8x256xf32>
    %cst_4 = arith.constant dense<0.000000e+00> : vector<8xf32>
    %9 = vector.multi_reduction <add>, %8, %cst_4 [1] : vector<8x256xf32> to vector<8xf32>
    %10 = vector.shape_cast %9 : vector<8xf32> to vector<8x1xf32>
    %cst_5 = arith.constant 2.560000e+02 : f32
    %11 = vector.broadcast %cst_5 : f32 to vector<8x1xf32>
    %12 = arith.divf %10, %11 : vector<8x1xf32>
    %cst_6 = arith.constant 9.99999974E-6 : f32
    %13 = vector.broadcast %cst_6 : f32 to vector<8x1xf32>
    %14 = arith.addf %12, %13 : vector<8x1xf32>
    %15 = math.rsqrt %14 : vector<8x1xf32>
    %16 = vector.broadcast %15 : vector<8x1xf32> to vector<8x256xf32>
    %17 = arith.mulf %7, %16 : vector<8x256xf32>
    %c0_7 = arith.constant 0 : index
    %18 = memref.load %arg3[%c0_7] : memref<2xf32, #tpu.memory_space<smem>>
    %19 = vector.broadcast %18 : f32 to vector<8x256xf32>
    %20 = arith.mulf %17, %19 : vector<8x256xf32>
    %c1 = arith.constant 1 : index
    %21 = memref.load %arg3[%c1] : memref<2xf32, #tpu.memory_space<smem>>
    %22 = vector.broadcast %21 : f32 to vector<8x256xf32>
    %23 = arith.addf %20, %22 : vector<8x256xf32>
    %24 = arith.addf %23, %1 : vector<8x256xf32>
    %c0_8 = arith.constant 0 : index
    %c0_9 = arith.constant 0 : index
    %25 = vector.load %arg4[%c0_8, %c0_9] : memref<8x256xf32, #tpu.memory_space<vmem>>, vector<8x256xf32>
    tpu.vector_store %arg4[%c0_8, %c0_9], %24 {strides = array<i32>} : memref<8x256xf32, #tpu.memory_space<vmem>>, vector<8x256xf32>,
    return
  }
  func.func @transform_0(%arg0: i32) -> (i32, i32) {
    %c0_i32 = arith.constant 0 : i32
    %c0_i32_0 = arith.constant 0 : i32
    return %arg0, %c0_i32 : i32, i32
  }
  func.func @transform_1(%arg0: i32) -> (i32, i32) {
    %c0_i32 = arith.constant 0 : i32
    %c0_i32_0 = arith.constant 0 : i32
    return %arg0, %c0_i32 : i32, i32
  }
  func.func @transform_2(%arg0: i32) -> i32 {
    %c0_i32 = arith.constant 0 : i32
    %c0_i32_0 = arith.constant 0 : i32
    return %c0_i32 : i32
  }
  func.func @transform_3(%arg0: i32) -> (i32, i32) {
    %c0_i32 = arith.constant 0 : i32
    %c0_i32_0 = arith.constant 0 : i32
    return %arg0, %c0_i32 : i32, i32
  }
}

module attributes {stable_mosaic.version = 11 : i64} {
  func.func @_fno_post_kernel(%arg0: i32, %arg1: memref<8x256xf32, #tpu.memory_space<vmem>>, %arg2: memref<8x256xf32, #tpu.memory_space<vmem>>, %arg3: memref<7xf32, #tpu.memory_space<smem>>, %arg4: memref<8x256xf32, #tpu.memory_space<vmem>>) attributes {dimension_semantics = [#tpu.dimension_semantics<parallel>], iteration_bounds = array<i64: 1>, scalar_prefetch = 0 : i64, scratch_operands = 0 : i64, tpu.core_type = #tpu.core_type<tc>, window_params = [{transform_indices = @transform_0, window_bounds = array<i64: 8, 256>}, {transform_indices = @transform_1, window_bounds = array<i64: 8, 256>}, {transform_indices = @transform_2, window_bounds = array<i64: 7>}, {transform_indices = @transform_3, window_bounds = array<i64: 8, 256>}]} {
    %c0 = arith.constant 0 : index
    %c0_0 = arith.constant 0 : index
    %0 = vector.load %arg1[%c0, %c0_0] : memref<8x256xf32, #tpu.memory_space<vmem>>, vector<8x256xf32>
    %c0_1 = arith.constant 0 : index
    %1 = memref.load %arg3[%c0_1] : memref<7xf32, #tpu.memory_space<smem>>
    %2 = vector.broadcast %1 : f32 to vector<8x256xf32>
    %3 = arith.addf %0, %2 : vector<8x256xf32>
    %c0_2 = arith.constant 0 : index
    %c0_3 = arith.constant 0 : index
    %4 = vector.load %arg2[%c0_2, %c0_3] : memref<8x256xf32, #tpu.memory_space<vmem>>, vector<8x256xf32>
    %cst = arith.constant dense<0.000000e+00> : vector<8xf32>
    %5 = vector.multi_reduction <add>, %3, %cst [1] : vector<8x256xf32> to vector<8xf32>
    %6 = vector.shape_cast %5 : vector<8xf32> to vector<8x1xf32>
    %cst_4 = arith.constant 2.560000e+02 : f32
    %7 = vector.broadcast %cst_4 : f32 to vector<8x1xf32>
    %8 = arith.divf %6, %7 : vector<8x1xf32>
    %9 = vector.broadcast %8 : vector<8x1xf32> to vector<8x256xf32>
    %10 = arith.subf %3, %9 : vector<8x256xf32>
    %11 = arith.mulf %10, %10 : vector<8x256xf32>
    %cst_5 = arith.constant dense<0.000000e+00> : vector<8xf32>
    %12 = vector.multi_reduction <add>, %11, %cst_5 [1] : vector<8x256xf32> to vector<8xf32>
    %13 = vector.shape_cast %12 : vector<8xf32> to vector<8x1xf32>
    %cst_6 = arith.constant 2.560000e+02 : f32
    %14 = vector.broadcast %cst_6 : f32 to vector<8x1xf32>
    %15 = arith.divf %13, %14 : vector<8x1xf32>
    %cst_7 = arith.constant 9.99999974E-6 : f32
    %16 = vector.broadcast %cst_7 : f32 to vector<8x1xf32>
    %17 = arith.addf %15, %16 : vector<8x1xf32>
    %18 = math.rsqrt %17 : vector<8x1xf32>
    %19 = vector.broadcast %18 : vector<8x1xf32> to vector<8x256xf32>
    %20 = arith.mulf %10, %19 : vector<8x256xf32>
    %c1 = arith.constant 1 : index
    %21 = memref.load %arg3[%c1] : memref<7xf32, #tpu.memory_space<smem>>
    %22 = vector.broadcast %21 : f32 to vector<8x256xf32>
    %23 = arith.mulf %22, %4 : vector<8x256xf32>
    %24 = arith.addf %20, %23 : vector<8x256xf32>
    %cst_8 = arith.constant 5.000000e-01 : f32
    %25 = vector.broadcast %cst_8 : f32 to vector<8x256xf32>
    %26 = arith.mulf %25, %24 : vector<8x256xf32>
    %cst_9 = arith.constant 0.707106769 : f32
    %27 = vector.broadcast %cst_9 : f32 to vector<8x256xf32>
    %28 = arith.mulf %24, %27 : vector<8x256xf32>
    %29 = math.absf %28 : vector<8x256xf32>
    %cst_10 = arith.constant 0.327591091 : f32
    %30 = vector.broadcast %cst_10 : f32 to vector<8x256xf32>
    %31 = arith.mulf %30, %29 : vector<8x256xf32>
    %cst_11 = arith.constant 1.000000e+00 : f32
    %32 = vector.broadcast %cst_11 : f32 to vector<8x256xf32>
    %33 = arith.addf %32, %31 : vector<8x256xf32>
    %cst_12 = arith.constant 1.000000e+00 : f32
    %34 = vector.broadcast %cst_12 : f32 to vector<8x256xf32>
    %35 = arith.divf %34, %33 : vector<8x256xf32>
    %cst_13 = arith.constant 1.06140542 : f32
    %36 = vector.broadcast %cst_13 : f32 to vector<8x256xf32>
    %37 = arith.mulf %36, %35 : vector<8x256xf32>
    %cst_14 = arith.constant -1.45315206 : f32
    %38 = vector.broadcast %cst_14 : f32 to vector<8x256xf32>
    %39 = arith.addf %37, %38 : vector<8x256xf32>
    %40 = arith.mulf %39, %35 : vector<8x256xf32>
    %cst_15 = arith.constant 1.42141378 : f32
    %41 = vector.broadcast %cst_15 : f32 to vector<8x256xf32>
    %42 = arith.addf %40, %41 : vector<8x256xf32>
    %43 = arith.mulf %42, %35 : vector<8x256xf32>
    %cst_16 = arith.constant -0.284496725 : f32
    %44 = vector.broadcast %cst_16 : f32 to vector<8x256xf32>
    %45 = arith.addf %43, %44 : vector<8x256xf32>
    %46 = arith.mulf %45, %35 : vector<8x256xf32>
    %cst_17 = arith.constant 0.254829586 : f32
    %47 = vector.broadcast %cst_17 : f32 to vector<8x256xf32>
    %48 = arith.addf %46, %47 : vector<8x256xf32>
    %49 = arith.mulf %48, %35 : vector<8x256xf32>
    %cst_18 = arith.constant 0.000000e+00 : f32
    %50 = vector.broadcast %cst_18 : f32 to vector<8x256xf32>
    %51 = arith.subf %50, %29 : vector<8x256xf32>
    %52 = arith.mulf %51, %29 : vector<8x256xf32>
    %53 = math.exp %52 : vector<8x256xf32>
    %54 = arith.mulf %49, %53 : vector<8x256xf32>
    %cst_19 = arith.constant 1.000000e+00 : f32
    %55 = vector.broadcast %cst_19 : f32 to vector<8x256xf32>
    %56 = arith.subf %55, %54 : vector<8x256xf32>
    %cst_20 = arith.constant 0.000000e+00 : f32
    %57 = vector.broadcast %cst_20 : f32 to vector<8x256xf32>
    %58 = arith.cmpf olt, %28, %57 : vector<8x256xf32>
    %cst_21 = arith.constant 0.000000e+00 : f32
    %59 = vector.broadcast %cst_21 : f32 to vector<8x256xf32>
    %60 = arith.subf %59, %56 : vector<8x256xf32>
    %61 = arith.select %58, %60, %56 : vector<8x256xi1>, vector<8x256xf32>
    %cst_22 = arith.constant 1.000000e+00 : f32
    %62 = vector.broadcast %cst_22 : f32 to vector<8x256xf32>
    %63 = arith.addf %62, %61 : vector<8x256xf32>
    %64 = arith.mulf %26, %63 : vector<8x256xf32>
    %c3 = arith.constant 3 : index
    %65 = memref.load %arg3[%c3] : memref<7xf32, #tpu.memory_space<smem>>
    %66 = vector.broadcast %65 : f32 to vector<8x256xf32>
    %67 = arith.mulf %64, %66 : vector<8x256xf32>
    %c4 = arith.constant 4 : index
    %68 = memref.load %arg3[%c4] : memref<7xf32, #tpu.memory_space<smem>>
    %69 = vector.broadcast %68 : f32 to vector<8x256xf32>
    %70 = arith.addf %67, %69 : vector<8x256xf32>
    %cst_23 = arith.constant 5.000000e-01 : f32
    %71 = vector.broadcast %cst_23 : f32 to vector<8x256xf32>
    %72 = arith.mulf %71, %70 : vector<8x256xf32>
    %cst_24 = arith.constant 0.707106769 : f32
    %73 = vector.broadcast %cst_24 : f32 to vector<8x256xf32>
    %74 = arith.mulf %70, %73 : vector<8x256xf32>
    %75 = math.absf %74 : vector<8x256xf32>
    %cst_25 = arith.constant 0.327591091 : f32
    %76 = vector.broadcast %cst_25 : f32 to vector<8x256xf32>
    %77 = arith.mulf %76, %75 : vector<8x256xf32>
    %cst_26 = arith.constant 1.000000e+00 : f32
    %78 = vector.broadcast %cst_26 : f32 to vector<8x256xf32>
    %79 = arith.addf %78, %77 : vector<8x256xf32>
    %cst_27 = arith.constant 1.000000e+00 : f32
    %80 = vector.broadcast %cst_27 : f32 to vector<8x256xf32>
    %81 = arith.divf %80, %79 : vector<8x256xf32>
    %cst_28 = arith.constant 1.06140542 : f32
    %82 = vector.broadcast %cst_28 : f32 to vector<8x256xf32>
    %83 = arith.mulf %82, %81 : vector<8x256xf32>
    %cst_29 = arith.constant -1.45315206 : f32
    %84 = vector.broadcast %cst_29 : f32 to vector<8x256xf32>
    %85 = arith.addf %83, %84 : vector<8x256xf32>
    %86 = arith.mulf %85, %81 : vector<8x256xf32>
    %cst_30 = arith.constant 1.42141378 : f32
    %87 = vector.broadcast %cst_30 : f32 to vector<8x256xf32>
    %88 = arith.addf %86, %87 : vector<8x256xf32>
    %89 = arith.mulf %88, %81 : vector<8x256xf32>
    %cst_31 = arith.constant -0.284496725 : f32
    %90 = vector.broadcast %cst_31 : f32 to vector<8x256xf32>
    %91 = arith.addf %89, %90 : vector<8x256xf32>
    %92 = arith.mulf %91, %81 : vector<8x256xf32>
    %cst_32 = arith.constant 0.254829586 : f32
    %93 = vector.broadcast %cst_32 : f32 to vector<8x256xf32>
    %94 = arith.addf %92, %93 : vector<8x256xf32>
    %95 = arith.mulf %94, %81 : vector<8x256xf32>
    %cst_33 = arith.constant 0.000000e+00 : f32
    %96 = vector.broadcast %cst_33 : f32 to vector<8x256xf32>
    %97 = arith.subf %96, %75 : vector<8x256xf32>
    %98 = arith.mulf %97, %75 : vector<8x256xf32>
    %99 = math.exp %98 : vector<8x256xf32>
    %100 = arith.mulf %95, %99 : vector<8x256xf32>
    %cst_34 = arith.constant 1.000000e+00 : f32
    %101 = vector.broadcast %cst_34 : f32 to vector<8x256xf32>
    %102 = arith.subf %101, %100 : vector<8x256xf32>
    %cst_35 = arith.constant 0.000000e+00 : f32
    %103 = vector.broadcast %cst_35 : f32 to vector<8x256xf32>
    %104 = arith.cmpf olt, %74, %103 : vector<8x256xf32>
    %cst_36 = arith.constant 0.000000e+00 : f32
    %105 = vector.broadcast %cst_36 : f32 to vector<8x256xf32>
    %106 = arith.subf %105, %102 : vector<8x256xf32>
    %107 = arith.select %104, %106, %102 : vector<8x256xi1>, vector<8x256xf32>
    %cst_37 = arith.constant 1.000000e+00 : f32
    %108 = vector.broadcast %cst_37 : f32 to vector<8x256xf32>
    %109 = arith.addf %108, %107 : vector<8x256xf32>
    %110 = arith.mulf %72, %109 : vector<8x256xf32>
    %c5 = arith.constant 5 : index
    %111 = memref.load %arg3[%c5] : memref<7xf32, #tpu.memory_space<smem>>
    %112 = vector.broadcast %111 : f32 to vector<8x256xf32>
    %113 = arith.mulf %110, %112 : vector<8x256xf32>
    %c6 = arith.constant 6 : index
    %114 = memref.load %arg3[%c6] : memref<7xf32, #tpu.memory_space<smem>>
    %115 = vector.broadcast %114 : f32 to vector<8x256xf32>
    %116 = arith.addf %113, %115 : vector<8x256xf32>
    %c2 = arith.constant 2 : index
    %117 = memref.load %arg3[%c2] : memref<7xf32, #tpu.memory_space<smem>>
    %118 = vector.broadcast %117 : f32 to vector<8x256xf32>
    %119 = arith.mulf %118, %4 : vector<8x256xf32>
    %120 = arith.addf %116, %119 : vector<8x256xf32>
    %cst_38 = arith.constant dense<0.000000e+00> : vector<8xf32>
    %121 = vector.multi_reduction <add>, %120, %cst_38 [1] : vector<8x256xf32> to vector<8xf32>
    %122 = vector.shape_cast %121 : vector<8xf32> to vector<8x1xf32>
    %cst_39 = arith.constant 2.560000e+02 : f32
    %123 = vector.broadcast %cst_39 : f32 to vector<8x1xf32>
    %124 = arith.divf %122, %123 : vector<8x1xf32>
    %125 = vector.broadcast %124 : vector<8x1xf32> to vector<8x256xf32>
    %126 = arith.subf %120, %125 : vector<8x256xf32>
    %127 = arith.mulf %126, %126 : vector<8x256xf32>
    %cst_40 = arith.constant dense<0.000000e+00> : vector<8xf32>
    %128 = vector.multi_reduction <add>, %127, %cst_40 [1] : vector<8x256xf32> to vector<8xf32>
    %129 = vector.shape_cast %128 : vector<8xf32> to vector<8x1xf32>
    %cst_41 = arith.constant 2.560000e+02 : f32
    %130 = vector.broadcast %cst_41 : f32 to vector<8x1xf32>
    %131 = arith.divf %129, %130 : vector<8x1xf32>
    %cst_42 = arith.constant 9.99999974E-6 : f32
    %132 = vector.broadcast %cst_42 : f32 to vector<8x1xf32>
    %133 = arith.addf %131, %132 : vector<8x1xf32>
    %134 = math.rsqrt %133 : vector<8x1xf32>
    %135 = vector.broadcast %134 : vector<8x1xf32> to vector<8x256xf32>
    %136 = arith.mulf %126, %135 : vector<8x256xf32>
    %cst_43 = arith.constant 5.000000e-01 : f32
    %137 = vector.broadcast %cst_43 : f32 to vector<8x256xf32>
    %138 = arith.mulf %137, %136 : vector<8x256xf32>
    %cst_44 = arith.constant 0.707106769 : f32
    %139 = vector.broadcast %cst_44 : f32 to vector<8x256xf32>
    %140 = arith.mulf %136, %139 : vector<8x256xf32>
    %141 = math.absf %140 : vector<8x256xf32>
    %cst_45 = arith.constant 0.327591091 : f32
    %142 = vector.broadcast %cst_45 : f32 to vector<8x256xf32>
    %143 = arith.mulf %142, %141 : vector<8x256xf32>
    %cst_46 = arith.constant 1.000000e+00 : f32
    %144 = vector.broadcast %cst_46 : f32 to vector<8x256xf32>
    %145 = arith.addf %144, %143 : vector<8x256xf32>
    %cst_47 = arith.constant 1.000000e+00 : f32
    %146 = vector.broadcast %cst_47 : f32 to vector<8x256xf32>
    %147 = arith.divf %146, %145 : vector<8x256xf32>
    %cst_48 = arith.constant 1.06140542 : f32
    %148 = vector.broadcast %cst_48 : f32 to vector<8x256xf32>
    %149 = arith.mulf %148, %147 : vector<8x256xf32>
    %cst_49 = arith.constant -1.45315206 : f32
    %150 = vector.broadcast %cst_49 : f32 to vector<8x256xf32>
    %151 = arith.addf %149, %150 : vector<8x256xf32>
    %152 = arith.mulf %151, %147 : vector<8x256xf32>
    %cst_50 = arith.constant 1.42141378 : f32
    %153 = vector.broadcast %cst_50 : f32 to vector<8x256xf32>
    %154 = arith.addf %152, %153 : vector<8x256xf32>
    %155 = arith.mulf %154, %147 : vector<8x256xf32>
    %cst_51 = arith.constant -0.284496725 : f32
    %156 = vector.broadcast %cst_51 : f32 to vector<8x256xf32>
    %157 = arith.addf %155, %156 : vector<8x256xf32>
    %158 = arith.mulf %157, %147 : vector<8x256xf32>
    %cst_52 = arith.constant 0.254829586 : f32
    %159 = vector.broadcast %cst_52 : f32 to vector<8x256xf32>
    %160 = arith.addf %158, %159 : vector<8x256xf32>
    %161 = arith.mulf %160, %147 : vector<8x256xf32>
    %cst_53 = arith.constant 0.000000e+00 : f32
    %162 = vector.broadcast %cst_53 : f32 to vector<8x256xf32>
    %163 = arith.subf %162, %141 : vector<8x256xf32>
    %164 = arith.mulf %163, %141 : vector<8x256xf32>
    %165 = math.exp %164 : vector<8x256xf32>
    %166 = arith.mulf %161, %165 : vector<8x256xf32>
    %cst_54 = arith.constant 1.000000e+00 : f32
    %167 = vector.broadcast %cst_54 : f32 to vector<8x256xf32>
    %168 = arith.subf %167, %166 : vector<8x256xf32>
    %cst_55 = arith.constant 0.000000e+00 : f32
    %169 = vector.broadcast %cst_55 : f32 to vector<8x256xf32>
    %170 = arith.cmpf olt, %140, %169 : vector<8x256xf32>
    %cst_56 = arith.constant 0.000000e+00 : f32
    %171 = vector.broadcast %cst_56 : f32 to vector<8x256xf32>
    %172 = arith.subf %171, %168 : vector<8x256xf32>
    %173 = arith.select %170, %172, %168 : vector<8x256xi1>, vector<8x256xf32>
    %cst_57 = arith.constant 1.000000e+00 : f32
    %174 = vector.broadcast %cst_57 : f32 to vector<8x256xf32>
    %175 = arith.addf %174, %173 : vector<8x256xf32>
    %176 = arith.mulf %138, %175 : vector<8x256xf32>
    %c0_58 = arith.constant 0 : index
    %c0_59 = arith.constant 0 : index
    %177 = vector.load %arg4[%c0_58, %c0_59] : memref<8x256xf32, #tpu.memory_space<vmem>>, vector<8x256xf32>
    tpu.vector_store %arg4[%c0_58, %c0_59], %176 {strides = array<i32>} : memref<8x256xf32, #tpu.memory_space<vmem>>, vector<8x256xf32>,
    return
  }
  func.func @transform_0(%arg0: i32) -> (i32, i32) {
    %c0_i32 = arith.constant 0 : i32
    %c0_i32_0 = arith.constant 0 : i32
    return %arg0, %c0_i32 : i32, i32
  }
  func.func @transform_1(%arg0: i32) -> (i32, i32) {
    %c0_i32 = arith.constant 0 : i32
    %c0_i32_0 = arith.constant 0 : i32
    return %arg0, %c0_i32 : i32, i32
  }
  func.func @transform_2(%arg0: i32) -> i32 {
    %c0_i32 = arith.constant 0 : i32
    %c0_i32_0 = arith.constant 0 : i32
    return %c0_i32 : i32
  }
  func.func @transform_3(%arg0: i32) -> (i32, i32) {
    %c0_i32 = arith.constant 0 : i32
    %c0_i32_0 = arith.constant 0 : i32
    return %arg0, %c0_i32 : i32, i32
  }
}

</mosaic_0001>

<llo_original>
// kernel: custom-call.2
$region0: #{custom-call.2}
  %s0 = inlined_call_operand.hbm [shape: c64[1,1,1,1], index: 0, kind: input, shape index: {}]
  %s1 = inlined_call_operand.hbm [shape: f32[1,1,1,1], index: 1, kind: output, shape index: {}]
  $region1: #{custom-call.2} parent=0
    #allocation0 [shape = 'u8[512]{0}', space=vmem, size = 0x400, scoped, tag = 'operand span']
    #allocation1 [shape = 's32[1]{0}', space=sflag, size = 0x4, scoped, tag = 'scoped memory for custom-call.2']
    #allocation2 [shape = 's32[1]{0}', space=sflag, size = 0x4, scoped, tag = 'scoped memory for custom-call.2']
    #allocation3 [shape = 'u8[512]{0}', space=vmem, size = 0x400, scoped, tag = 'operand span']
    %2 = vsyncpa [#allocation2], 0
    %3 = vsyncpa [#allocation1], 0
    %s4 = sshll.u32 [#allocation3], 4
    %s5 = int_to_ptr.vmem [resolvable:$true] %s4
    %7 = dma.hbm_to_vmem [thread:$0]  %s0, 16, %s5, [#allocation1]
    %8 = dma.done [#allocation1], 16
    %v9 = vld [vmem:[#allocation3] sm:$0x1]
    %vm10 = vcmask 1040384
    %11 = vst.msk [vmem:[#allocation0] sm:$0xff] %vm10, %v9
    %s12 = sshll.u32 [#allocation0], 4
    %s13 = int_to_ptr.vmem [resolvable:$true] %s12
    %15 = dma.vmem_to_hbm [thread:$0]  %s13, 16, %s1, [#allocation2]
    %16 = dma.done [#allocation2], 16
    %17 = vsyncpa [#allocation1], 1
    %18 = vsyncpa [#allocation2], 1

// kernel: custom-call.3
$region0: #{custom-call.3}
  %s0 = inlined_call_operand.hbm [shape: c64[1,1,1,1], index: 0, kind: input, shape index: {}]
  %s1 = inlined_call_operand.hbm [shape: f32[1,1,1,1], index: 1, kind: output, shape index: {}]
  %s2 = scalar_lea.hbm %s0, 16
  $region1: #{custom-call.3} parent=0
    #allocation0 [shape = 'u8[512]{0}', space=vmem, size = 0x400, scoped, tag = 'operand span']
    #allocation1 [shape = 's32[1]{0}', space=sflag, size = 0x4, scoped, tag = 'scoped memory for custom-call.3']
    #allocation2 [shape = 's32[1]{0}', space=sflag, size = 0x4, scoped, tag = 'scoped memory for custom-call.3']
    #allocation3 [shape = 'u8[512]{0}', space=vmem, size = 0x400, scoped, tag = 'operand span']
    %3 = vsyncpa [#allocation2], 0
    %4 = vsyncpa [#allocation1], 0
    %s5 = sshll.u32 [#allocation3], 4
    %s6 = int_to_ptr.vmem [resolvable:$true] %s5
    %8 = dma.hbm_to_vmem [thread:$0]  %s2, 16, %s6, [#allocation1]
    %9 = dma.done [#allocation1], 16
    %v10 = vld [vmem:[#allocation3] sm:$0x1]
    %vm11 = vcmask 1040384
    %12 = vst.msk [vmem:[#allocation0] sm:$0xff] %vm11, %v10
    %s13 = sshll.u32 [#allocation0], 4
    %s14 = int_to_ptr.vmem [resolvable:$true] %s13
    %16 = dma.vmem_to_hbm [thread:$0]  %s14, 16, %s1, [#allocation2]
    %17 = dma.done [#allocation2], 16
    %18 = vsyncpa [#allocation1], 1
    %19 = vsyncpa [#allocation2], 1

// kernel: coda_forward.9
$region0: #{coda_forward.9}
  #allocation0 [shape = 'u32[]', space=smem, size = 0x4, offset = 0x4, fixed_abs, tag = 'smem constant byte address 0x4 - core index']
  #allocation1 [shape = 'u32[144,128]{1,0:T(1,128)}', space=vmem, size = 0x12000, scoped, tag = 'internal scratch']
  %s0 = inlined_call_operand.vmem [shape: f32[8,256], index: 0, kind: input, shape index: {}]
  %s1 = inlined_call_operand.vmem [shape: f32[2], index: 1, kind: input, shape index: {}]
  %s2 = inlined_call_operand.vmem [shape: f32[8,256], index: 2, kind: output, shape index: {}]
  %s3 = sld [smem:[#allocation0]]
  $region22: #{coda_forward.9} parent=0
    _
  %s5 = ssub.s32 1, %s3
  %s6 = scalar_select 0, %s5, %s3
  $region1: #{coda_forward.9} parent=0
    #allocation2 [shape = 'u8[512]{0}', space=smem, size = 0x200, scoped, tag = 'input window, operand 1, single buffered']
    #allocation3 [shape = 's32[1]{0}', space=sflag, size = 0x4, scoped, tag = 'scoped memory for coda_forward.9']
    %7 = vsyncpa [#allocation3], 0
    // Predicated region
    $region2: #{coda_forward.9} parent=1 // pred_check
      _
    $region3: #{coda_forward.9} parent=1 // pred_check_branch
      %9 = sbr.rel (0) target = $region5
    $region4: #{coda_forward.9} parent=1 // pred_region
      _
    $region5: #{coda_forward.9} parent=1 // pred_fallthru
      _
    // Predicated region
    $region6: #{coda_forward.9} parent=1 // pred_check
      _
    $region7: #{coda_forward.9} parent=1 // pred_check_branch
      %11 = sbr.rel (0) target = $region9
    $region8: #{coda_forward.9} parent=1 // pred_region
      %s13 = ssub.s32 16, 16
      %14 = vsyncadd [#allocation3], %s13
      %s16 = sshll.u32 %s1, 4
      %s17 = int_to_ptr.vmem [resolvable:$true] %s16
      %19 = dma.vmem_to_smem %s17, 16, [#allocation2], [#allocation3]
    $region9: #{coda_forward.9} parent=1 // pred_fallthru
      _
    // Predicated region
    $region10: #{coda_forward.9} parent=1 // pred_check
      _
    $region11: #{coda_forward.9} parent=1 // pred_check_branch
      %21 = sbr.rel (0) target = $region13
    $region12: #{coda_forward.9} parent=1 // pred_region
      %22 = dma.done [#allocation3], 16
    $region13: #{coda_forward.9} parent=1 // pred_fallthru
      _
    %23 = sfence
    %v24 = vld [vmem:[%s0] sm:$0xff]
    %v25 = vld [vmem:[%s0 + $0x8] sm:$0xff]
    %v26 = vadd.f32 %v24, %v25
    %27 = vadd.xlane.f32.xlu0 %v26
    %v28 = vpop.xlane.xlu0 %27
    %v29 = vrcp.pop 256.0
    %v30 = vmul.f32 %v28, %v29
    %v31 = vsub.f32 %v24, %v30
    %v32 = vsub.f32 %v25, %v30
    %v33 = vmul.f32 %v31, %v31
    %v34 = vmul.f32 %v32, %v32
    %v35 = vadd.f32 %v33, %v34
    %36 = vadd.xlane.f32.xlu0 %v35
    %v37 = vpop.xlane.xlu0 %36
    %v38 = vmul.f32 %v37, %v29
    %v39 = vadd.f32 %v38, 1e-05
    %v40 = vrsqrt.pop %v39
    %v41 = vmul.f32 %v31, %v40
    %v42 = vmul.f32 %v32, %v40
    %s43 = sld [smem:[#allocation2]]
    %v44 = vstv %s43
    %v45 = vmul.f32 %v41, %v44
    %v46 = vmul.f32 %v42, %v44
    %s47 = sld [smem:[#allocation2 + $0x1]]
    %v48 = vstv %s47
    %v49 = vadd.f32 %v45, %v48
    %v50 = vadd.f32 %v46, %v48
    %51 = vst [vmem:[%s2] sm:$0xff] %v49
    %52 = vst [vmem:[%s2 + $0x8] sm:$0xff] %v50
    // Predicated region
    $region14: #{coda_forward.9} parent=1 // pred_check
      _
    $region15: #{coda_forward.9} parent=1 // pred_check_branch
      %54 = sbr.rel (0) target = $region17
    $region16: #{coda_forward.9} parent=1 // pred_region
      _
    $region17: #{coda_forward.9} parent=1 // pred_fallthru
      _
    // Predicated region
    $region18: #{coda_forward.9} parent=1 // pred_check
      _
    $region19: #{coda_forward.9} parent=1 // pred_check_branch
      %56 = sbr.rel (0) target = $region21
    $region20: #{coda_forward.9} parent=1 // pred_region
      _
    $region21: #{coda_forward.9} parent=1 // pred_fallthru
      _
    %57 = vsyncpa [#allocation3], 1

// kernel: reverse.12
$region0: #{reverse.12}
  #allocation0 [shape = 's32[1]{0}', space=sflag, size = 0x4, scoped, tag = 'scoped memory for reverse.12']
  %s0 = inlined_call_operand.vmem [shape: f32[8,8,3], index: 0, kind: input, shape index: {}]
  %s1 = inlined_call_operand.vmem [shape: f32[8,8,3], index: 1, kind: output, shape index: {}]
  %s2 = scalar_lea.vmem %s0, 16
  %v3 = vld [vmem:[%s2] sm:$0xff]
  %4 = vst [vmem:[%s1] sm:$0xff] %v3
  %s5 = scalar_lea.vmem %s0, 8
  %v6 = vld [vmem:[%s5] sm:$0xff]
  %s7 = scalar_lea.vmem %s1, 8
  %8 = vst [vmem:[%s7] sm:$0xff] %v6
  %v9 = vld [vmem:[%s0] sm:$0xff]
  %s10 = scalar_lea.vmem %s1, 16
  %11 = vst [vmem:[%s10] sm:$0xff] %v9

// kernel: reverse.19
$region0: #{reverse.19}
  %s0 = inlined_call_operand.vmem [shape: f32[8,16,7], index: 0, kind: input, shape index: {}]
  %s1 = inlined_call_operand.vmem [shape: f32[8,16,7], index: 1, kind: output, shape index: {}]
  $region1: #{reverse.19} parent=0
    #allocation0 [shape = 'u8[65536]{0}', space=vmem, size = 0x10000, scoped, tag = 'operand span for operand 0']
    #allocation1 [shape = 'u8[32768]{0}', space=vmem, size = 0x8000, scoped, tag = 'operand span for operand 1']
    %s2 = scalar_lea.vmem [#allocation0], 8
    // Predicated region
    $region2: #{reverse.19} parent=1 // pred_check
      _
    $region3: #{reverse.19} parent=1 // pred_check_branch
      %4 = sbr.rel (0) target = $region5
    $region4: #{reverse.19} parent=1 // pred_region
      // Predicated region
      $region6: #{reverse.19} parent=4 // pred_check
        _
      $region7: #{reverse.19} parent=4 // pred_check_branch
        %6 = sbr.rel (0) target = $region9
      $region8: #{reverse.19} parent=4 // pred_region
        // Predicated region
        $region21: #{reverse.19} parent=8 // pred_check
          _
        $region22: #{reverse.19} parent=8 // pred_check_branch
          %35 = sbr.rel (0) target = $region24
        $region23: #{reverse.19} parent=8 // pred_region
          loop: start=0, step=1, limit=1
          $region25: #{reverse.19} parent=23 // loop_pre_header
            _
          $region26: #{reverse.19} parent=23 // loop_header
            %s37 = sphi 0, %s41
            %p38 = scmp.ge.s32.totalorder %s37, 1
            %s42 = sphi %s0, %s0
            %s43 = sphi %s2, %s2
          $region27: #{reverse.19} parent=23 // loop_header_branch
            %40 = sbr.rel (%p38) target = $region31
          $region28: #{reverse.19} parent=23 // loop_body
            %v44 = vld [vmem:[%s42] sm:$0xff]
            %45 = vst [vmem:[%s43] sm:$0xff] %v44
            %v46 = vld [vmem:[%s42 + $0x8] sm:$0xff]
            %47 = vst [vmem:[%s43 + $0x10] sm:$0xff] %v46
            %v48 = vld [vmem:[%s42 + $0x10] sm:$0xff]
            %49 = vst [vmem:[%s43 + $0x20] sm:$0xff] %v48
            %v50 = vld [vmem:[%s42 + $0x18] sm:$0xff]
            %51 = vst [vmem:[%s43 + $0x30] sm:$0xff] %v50
            %v52 = vld [vmem:[%s42 + $0x20] sm:$0xff]
            %53 = vst [vmem:[%s43 + $0x40] sm:$0xff] %v52
            %v54 = vld [vmem:[%s42 + $0x28] sm:$0xff]
            %55 = vst [vmem:[%s43 + $0x50] sm:$0xff] %v54
            %v56 = vld [vmem:[%s42 + $0x30] sm:$0xff]
            %57 = vst [vmem:[%s43 + $0x60] sm:$0xff] %v56
            %v58 = vld [vmem:[%s42 + $0x38] sm:$0xff]
            %59 = vst [vmem:[%s43 + $0x70] sm:$0xff] %v58
          $region29: #{reverse.19} parent=23 // loop_footer
            %s41 = sadd.s32 1, %s37
          $region30: #{reverse.19} parent=23 // loop_footer_branch
            %36 = sbr.rel target = $region26
          $region31: #{reverse.19} parent=23 // loop_exit
            _
        $region24: #{reverse.19} parent=8 // pred_fallthru
          _
        // Predicated region
        $region32: #{reverse.19} parent=8 // pred_check
          _
        $region33: #{reverse.19} parent=8 // pred_check_branch
          %61 = sbr.rel target = $region35
        $region34: #{reverse.19} parent=8 // pred_region
          _
        $region35: #{reverse.19} parent=8 // pred_fallthru
          _
      $region9: #{reverse.19} parent=4 // pred_fallthru
        _
      // Predicated region
      $region10: #{reverse.19} parent=4 // pred_check
        _
      $region11: #{reverse.19} parent=4 // pred_check_branch
        %8 = sbr.rel target = $region13
      $region12: #{reverse.19} parent=4 // pred_region
        loop: start=0, step=1, limit=1
        $region14: #{reverse.19} parent=12 // loop_pre_header
          _
        $region15: #{reverse.19} parent=12 // loop_header
          %s11 = sphi 0, %s15
          %p12 = scmp.ge.s32.totalorder %s11, 1
          %s16 = sphi %s0, %s0
          %s17 = sphi %s2, %s2
        $region16: #{reverse.19} parent=12 // loop_header_branch
          %14 = sbr.rel (%p12) target = $region20
        $region17: #{reverse.19} parent=12 // loop_body
          %v18 = vld [vmem:[%s16] sm:$0xff]
          %19 = vst [vmem:[%s17] sm:$0xff] %v18
          %v20 = vld [vmem:[%s16 + $0x8] sm:$0xff]
          %21 = vst [vmem:[%s17 + $0x10] sm:$0xff] %v20
          %v22 = vld [vmem:[%s16 + $0x10] sm:$0xff]
          %23 = vst [vmem:[%s17 + $0x20] sm:$0xff] %v22
          %v24 = vld [vmem:[%s16 + $0x18] sm:$0xff]
          %25 = vst [vmem:[%s17 + $0x30] sm:$0xff] %v24
          %v26 = vld [vmem:[%s16 + $0x20] sm:$0xff]
          %27 = vst [vmem:[%s17 + $0x40] sm:$0xff] %v26
          %v28 = vld [vmem:[%s16 + $0x28] sm:$0xff]
          %29 = vst [vmem:[%s17 + $0x50] sm:$0xff] %v28
          %v30 = vld [vmem:[%s16 + $0x30] sm:$0xff]
          %31 = vst [vmem:[%s17 + $0x60] sm:$0xff] %v30
          %v32 = vld [vmem:[%s16 + $0x38] sm:$0xff]
          %33 = vst [vmem:[%s17 + $0x70] sm:$0xff] %v32
        $region18: #{reverse.19} parent=12 // loop_footer
          %s15 = sadd.s32 1, %s11
        $region19: #{reverse.19} parent=12 // loop_footer_branch
          %10 = sbr.rel target = $region15
        $region20: #{reverse.19} parent=12 // loop_exit
          _
      $region13: #{reverse.19} parent=4 // pred_fallthru
        _
    $region5: #{reverse.19} parent=1 // pred_fallthru
      _
    %62 = vnop
    %s63 = scalar_lea.vmem [#allocation0], 7
    %v64 = vld [vmem:[%s63] ss:$-1 sm:$0xff]
    %v65 = vrot.slane %v64, 1
    %66 = vst [vmem:[#allocation1] sm:$0xff] %v65
    %s67 = scalar_lea.vmem [#allocation0], 8
    %s68 = scalar_lea.vmem %s67, 7 [#allocation0]
    %v69 = vld [vmem:[%s68] ss:$-1 sm:$0xff]
    %v70 = vrot.slane %v69, 1
    %v71 = vlaneseq
    %v72 = vshrl.u32 %v71, 7
    %vm73 = vcmp.lt.s32.totalorder %v72, 7
    %74 = vst.msk [vmem:[#allocation1] sm:$0xff] %vm73, %v70
    %s75 = scalar_lea.vmem [#allocation1], 8
    %s76 = scalar_lea.vmem [#allocation0], 16
    %s77 = scalar_lea.vmem %s76, 7 [#allocation0]
    %v78 = vld [vmem:[%s77] ss:$-1 sm:$0xff]
    %v79 = vrot.slane %v78, 1
    %80 = vst [vmem:[%s75] sm:$0xff] %v79
    %s81 = scalar_lea.vmem %s76, 8 [#allocation0]
    %s82 = scalar_lea.vmem %s81, 7 [#allocation0]
    %v83 = vld [vmem:[%s82] ss:$-1 sm:$0xff]
    %v84 = vrot.slane %v83, 1
    %v85 = vlaneseq
    %v86 = vshrl.u32 %v85, 7
    %vm87 = vcmp.lt.s32.totalorder %v86, 7
    %88 = vst.msk [vmem:[%s75] sm:$0xff] %vm87, %v84
    %s89 = scalar_lea.vmem [#allocation1], 16
    %s90 = scalar_lea.vmem [#allocation0], 32
    %s91 = scalar_lea.vmem %s90, 7 [#allocation0]
    %v92 = vld [vmem:[%s91] ss:$-1 sm:$0xff]
    %v93 = vrot.slane %v92, 1
    %94 = vst [vmem:[%s89] sm:$0xff] %v93
    %s95 = scalar_lea.vmem %s90, 8 [#allocation0]
    %s96 = scalar_lea.vmem %s95, 7 [#allocation0]
    %v97 = vld [vmem:[%s96] ss:$-1 sm:$0xff]
    %v98 = vrot.slane %v97, 1
    %v99 = vlaneseq
    %v100 = vshrl.u32 %v99, 7
    %vm101 = vcmp.lt.s32.totalorder %v100, 7
    %102 = vst.msk [vmem:[%s89] sm:$0xff] %vm101, %v98
    %s103 = scalar_lea.vmem [#allocation1], 24
    %s104 = scalar_lea.vmem [#allocation0], 48
    %s105 = scalar_lea.vmem %s104, 7 [#allocation0]
    %v106 = vld [vmem:[%s105] ss:$-1 sm:$0xff]
    %v107 = vrot.slane %v106, 1
    %108 = vst [vmem:[%s103] sm:$0xff] %v107
    %s109 = scalar_lea.vmem %s104, 8 [#allocation0]
    %s110 = scalar_lea.vmem %s109, 7 [#allocation0]
    %v111 = vld [vmem:[%s110] ss:$-1 sm:$0xff]
    %v112 = vrot.slane %v111, 1
    %v113 = vlaneseq
    %v114 = vshrl.u32 %v113, 7
    %vm115 = vcmp.lt.s32.totalorder %v114, 7
    %116 = vst.msk [vmem:[%s103] sm:$0xff] %vm115, %v112
    %s117 = scalar_lea.vmem [#allocation1], 32
    %s118 = scalar_lea.vmem [#allocation0], 64
    %s119 = scalar_lea.vmem %s118, 7 [#allocation0]
    %v120 = vld [vmem:[%s119] ss:$-1 sm:$0xff]
    %v121 = vrot.slane %v120, 1
    %122 = vst [vmem:[%s117] sm:$0xff] %v121
    %s123 = scalar_lea.vmem %s118, 8 [#allocation0]
    %s124 = scalar_lea.vmem %s123, 7 [#allocation0]
    %v125 = vld [vmem:[%s124] ss:$-1 sm:$0xff]
    %v126 = vrot.slane %v125, 1
    %v127 = vlaneseq
    %v128 = vshrl.u32 %v127, 7
    %vm129 = vcmp.lt.s32.totalorder %v128, 7
    %130 = vst.msk [vmem:[%s117] sm:$0xff] %vm129, %v126
    %s131 = scalar_lea.vmem [#allocation1], 40
    %s132 = scalar_lea.vmem [#allocation0], 80
    %s133 = scalar_lea.vmem %s132, 7 [#allocation0]
    %v134 = vld [vmem:[%s133] ss:$-1 sm:$0xff]
    %v135 = vrot.slane %v134, 1
    %136 = vst [vmem:[%s131] sm:$0xff] %v135
    %s137 = scalar_lea.vmem %s132, 8 [#allocation0]
    %s138 = scalar_lea.vmem %s137, 7 [#allocation0]
    %v139 = vld [vmem:[%s138] ss:$-1 sm:$0xff]
    %v140 = vrot.slane %v139, 1
    %v141 = vlaneseq
    %v142 = vshrl.u32 %v141, 7
    %vm143 = vcmp.lt.s32.totalorder %v142, 7
    %144 = vst.msk [vmem:[%s131] sm:$0xff] %vm143, %v140
    %s145 = scalar_lea.vmem [#allocation1], 48
    %s146 = scalar_lea.vmem [#allocation0], 96
    %s147 = scalar_lea.vmem %s146, 7 [#allocation0]
    %v148 = vld [vmem:[%s147] ss:$-1 sm:$0xff]
    %v149 = vrot.slane %v148, 1
    %150 = vst [vmem:[%s145] sm:$0xff] %v149
    %s151 = scalar_lea.vmem %s146, 8 [#allocation0]
    %s152 = scalar_lea.vmem %s151, 7 [#allocation0]
    %v153 = vld [vmem:[%s152] ss:$-1 sm:$0xff]
    %v154 = vrot.slane %v153, 1
    %v155 = vlaneseq
    %v156 = vshrl.u32 %v155, 7
    %vm157 = vcmp.lt.s32.totalorder %v156, 7
    %158 = vst.msk [vmem:[%s145] sm:$0xff] %vm157, %v154
    %s159 = scalar_lea.vmem [#allocation1], 56
    %s160 = scalar_lea.vmem [#allocation0], 112
    %s161 = scalar_lea.vmem %s160, 7 [#allocation0]
    %v162 = vld [vmem:[%s161] ss:$-1 sm:$0xff]
    %v163 = vrot.slane %v162, 1
    %164 = vst [vmem:[%s159] sm:$0xff] %v163
    %s165 = scalar_lea.vmem %s160, 8 [#allocation0]
    %s166 = scalar_lea.vmem %s165, 7 [#allocation0]
    %v167 = vld [vmem:[%s166] ss:$-1 sm:$0xff]
    %v168 = vrot.slane %v167, 1
    %v169 = vlaneseq
    %v170 = vshrl.u32 %v169, 7
    %vm171 = vcmp.lt.s32.totalorder %v170, 7
    %172 = vst.msk [vmem:[%s159] sm:$0xff] %vm171, %v168
    // Predicated region
    $region36: #{reverse.19} parent=1 // pred_check
      _
    $region37: #{reverse.19} parent=1 // pred_check_branch
      %174 = sbr.rel (0) target = $region39
    $region38: #{reverse.19} parent=1 // pred_region
      // Predicated region
      $region40: #{reverse.19} parent=38 // pred_check
        _
      $region41: #{reverse.19} parent=38 // pred_check_branch
        %176 = sbr.rel (0) target = $region43
      $region42: #{reverse.19} parent=38 // pred_region
        // Predicated region
        $region55: #{reverse.19} parent=42 // pred_check
          _
        $region56: #{reverse.19} parent=42 // pred_check_branch
          %205 = sbr.rel (0) target = $region58
        $region57: #{reverse.19} parent=42 // pred_region
          loop: start=0, step=1, limit=1
          $region59: #{reverse.19} parent=57 // loop_pre_header
            _
          $region60: #{reverse.19} parent=57 // loop_header
            %s207 = sphi 0, %s211
            %p208 = scmp.ge.s32.totalorder %s207, 1
            %s212 = sphi [#allocation1], [#allocation1]
            %s213 = sphi %s1, %s1
          $region61: #{reverse.19} parent=57 // loop_header_branch
            %210 = sbr.rel (%p208) target = $region65
          $region62: #{reverse.19} parent=57 // loop_body
            %v214 = vld [vmem:[%s212] sm:$0xff]
            %215 = vst [vmem:[%s213] sm:$0xff] %v214
            %v216 = vld [vmem:[%s212 + $0x8] sm:$0xff]
            %217 = vst [vmem:[%s213 + $0x8] sm:$0xff] %v216
            %v218 = vld [vmem:[%s212 + $0x10] sm:$0xff]
            %219 = vst [vmem:[%s213 + $0x10] sm:$0xff] %v218
            %v220 = vld [vmem:[%s212 + $0x18] sm:$0xff]
            %221 = vst [vmem:[%s213 + $0x18] sm:$0xff] %v220
            %v222 = vld [vmem:[%s212 + $0x20] sm:$0xff]
            %223 = vst [vmem:[%s213 + $0x20] sm:$0xff] %v222
            %v224 = vld [vmem:[%s212 + $0x28] sm:$0xff]
            %225 = vst [vmem:[%s213 + $0x28] sm:$0xff] %v224
            %v226 = vld [vmem:[%s212 + $0x30] sm:$0xff]
            %227 = vst [vmem:[%s213 + $0x30] sm:$0xff] %v226
            %v228 = vld [vmem:[%s212 + $0x38] sm:$0xff]
            %229 = vst [vmem:[%s213 + $0x38] sm:$0xff] %v228
          $region63: #{reverse.19} parent=57 // loop_footer
            %s211 = sadd.s32 1, %s207
          $region64: #{reverse.19} parent=57 // loop_footer_branch
            %206 = sbr.rel target = $region60
          $region65: #{reverse.19} parent=57 // loop_exit
            _
        $region58: #{reverse.19} parent=42 // pred_fallthru
          _
        // Predicated region
        $region66: #{reverse.19} parent=42 // pred_check
          _
        $region67: #{reverse.19} parent=42 // pred_check_branch
          %231 = sbr.rel target = $region69
        $region68: #{reverse.19} parent=42 // pred_region
          _
        $region69: #{reverse.19} parent=42 // pred_fallthru
          _
      $region43: #{reverse.19} parent=38 // pred_fallthru
        _
      // Predicated region
      $region44: #{reverse.19} parent=38 // pred_check
        _
      $region45: #{reverse.19} parent=38 // pred_check_branch
        %178 = sbr.rel target = $region47
      $region46: #{reverse.19} parent=38 // pred_region
        loop: start=0, step=1, limit=1
        $region48: #{reverse.19} parent=46 // loop_pre_header
          _
        $region49: #{reverse.19} parent=46 // loop_header
          %s181 = sphi 0, %s185
          %p182 = scmp.ge.s32.totalorder %s181, 1
          %s186 = sphi [#allocation1], [#allocation1]
          %s187 = sphi %s1, %s1
        $region50: #{reverse.19} parent=46 // loop_header_branch
          %184 = sbr.rel (%p182) target = $region54
        $region51: #{reverse.19} parent=46 // loop_body
          %v188 = vld [vmem:[%s186] sm:$0xff]
          %189 = vst [vmem:[%s187] sm:$0xff] %v188
          %v190 = vld [vmem:[%s186 + $0x8] sm:$0xff]
          %191 = vst [vmem:[%s187 + $0x8] sm:$0xff] %v190
          %v192 = vld [vmem:[%s186 + $0x10] sm:$0xff]
          %193 = vst [vmem:[%s187 + $0x10] sm:$0xff] %v192
          %v194 = vld [vmem:[%s186 + $0x18] sm:$0xff]
          %195 = vst [vmem:[%s187 + $0x18] sm:$0xff] %v194
          %v196 = vld [vmem:[%s186 + $0x20] sm:$0xff]
          %197 = vst [vmem:[%s187 + $0x20] sm:$0xff] %v196
          %v198 = vld [vmem:[%s186 + $0x28] sm:$0xff]
          %199 = vst [vmem:[%s187 + $0x28] sm:$0xff] %v198
          %v200 = vld [vmem:[%s186 + $0x30] sm:$0xff]
          %201 = vst [vmem:[%s187 + $0x30] sm:$0xff] %v200
          %v202 = vld [vmem:[%s186 + $0x38] sm:$0xff]
          %203 = vst [vmem:[%s187 + $0x38] sm:$0xff] %v202
        $region52: #{reverse.19} parent=46 // loop_footer
          %s185 = sadd.s32 1, %s181
        $region53: #{reverse.19} parent=46 // loop_footer_branch
          %180 = sbr.rel target = $region49
        $region54: #{reverse.19} parent=46 // loop_exit
          _
      $region47: #{reverse.19} parent=38 // pred_fallthru
        _
    $region39: #{reverse.19} parent=1 // pred_fallthru
      _
    %232 = vnop

// kernel: coda_forward.10
$region0: #{coda_forward.10}
  #allocation0 [shape = 'u32[]', space=smem, size = 0x4, offset = 0x4, fixed_abs, tag = 'smem constant byte address 0x4 - core index']
  #allocation1 [shape = 'u32[144,128]{1,0:T(1,128)}', space=vmem, size = 0x12000, scoped, tag = 'internal scratch']
  %s0 = inlined_call_operand.vmem [shape: f32[8,64], index: 0, kind: input, shape index: {}]
  %s1 = inlined_call_operand.vmem [shape: f32[8,64], index: 1, kind: input, shape index: {}]
  %s2 = inlined_call_operand.vmem [shape: f32[7], index: 2, kind: input, shape index: {}]
  %s3 = inlined_call_operand.vmem [shape: f32[8,64], index: 3, kind: output, shape index: {}]
  %s4 = sld [smem:[#allocation0]]
  $region26: #{coda_forward.10} parent=0
    _
  %s6 = ssub.s32 1, %s4
  %s7 = scalar_select 0, %s6, %s4
  $region1: #{coda_forward.10} parent=0
    #allocation2 [shape = 'u8[512]{0}', space=smem, size = 0x200, scoped, tag = 'input window, operand 2, single buffered']
    #allocation3 [shape = 's32[1]{0}', space=sflag, size = 0x4, scoped, tag = 'scoped memory for coda_forward.10']
    %8 = vsyncpa [#allocation3], 0
    // Predicated region
    $region2: #{coda_forward.10} parent=1 // pred_check
      _
    $region3: #{coda_forward.10} parent=1 // pred_check_branch
      %10 = sbr.rel (0) target = $region5
    $region4: #{coda_forward.10} parent=1 // pred_region
      _
    $region5: #{coda_forward.10} parent=1 // pred_fallthru
      _
    // Predicated region
    $region6: #{coda_forward.10} parent=1 // pred_check
      _
    $region7: #{coda_forward.10} parent=1 // pred_check_branch
      %12 = sbr.rel (0) target = $region9
    $region8: #{coda_forward.10} parent=1 // pred_region
      _
    $region9: #{coda_forward.10} parent=1 // pred_fallthru
      _
    // Predicated region
    $region10: #{coda_forward.10} parent=1 // pred_check
      _
    $region11: #{coda_forward.10} parent=1 // pred_check_branch
      %14 = sbr.rel (0) target = $region13
    $region12: #{coda_forward.10} parent=1 // pred_region
      %s16 = ssub.s32 16, 16
      %17 = vsyncadd [#allocation3], %s16
      %s19 = sshll.u32 %s2, 4
      %s20 = int_to_ptr.vmem [resolvable:$true] %s19
      %22 = dma.vmem_to_smem %s20, 16, [#allocation2], [#allocation3]
    $region13: #{coda_forward.10} parent=1 // pred_fallthru
      _
    // Predicated region
    $region14: #{coda_forward.10} parent=1 // pred_check
      _
    $region15: #{coda_forward.10} parent=1 // pred_check_branch
      %24 = sbr.rel (0) target = $region17
    $region16: #{coda_forward.10} parent=1 // pred_region
      %25 = dma.done [#allocation3], 16
    $region17: #{coda_forward.10} parent=1 // pred_fallthru
      _
    %26 = sfence
    %v27 = vld [vmem:[%s0] sm:$0xff]
    %s28 = sld [smem:[#allocation2]]
    %v29 = vstv %s28
    %v30 = vadd.f32 %v27, %v29
    %v31 = vld [vmem:[%s1] sm:$0xff]
    %s32 = sld [smem:[#allocation2 + $0x1]]
    %v33 = vstv %s32
    %v34 = vmul.f32 %v33, %v31
    %v35 = vadd.f32 %v30, %v34
    %s36 = sld [smem:[#allocation2 + $0x3]]
    %v37 = vstv %s36
    %v38 = vmul.f32 %v35, %v37
    %s39 = sld [smem:[#allocation2 + $0x4]]
    %v40 = vstv %s39
    %v41 = vadd.f32 %v38, %v40
    %v42 = vmul.f32 %v41, 0.5
    %v43 = vmul.f32 %v41, 0.70710677
    %v44 = vand.u32 2147483647, %v43
    %v45 = vmul.f32 %v44, 0.3275911
    %v46 = vadd.f32 %v45, 1.0
    %v47 = vrcp.pop %v46
    %v48 = vmul.f32 1.0, %v47
    %v49 = vmul.f32 %v48, 1.0614054
    %v50 = vadd.f32 %v49, -1.4531521
    %v51 = vmul.f32 %v50, %v48
    %v52 = vadd.f32 %v51, 1.4214138
    %v53 = vmul.f32 %v52, %v48
    %v54 = vadd.f32 %v53, -0.28449672
    %v55 = vmul.f32 %v54, %v48
    %v56 = vadd.f32 %v55, 0.2548296
    %v57 = vmul.f32 %v56, %v48
    %v58 = vsub.f32 0.0, %v44
    %v59 = vmul.f32 %v58, %v44
    %v60 = vmul.f32 %v59, 1.442695
    %v61 = vpow.pop %v60
    %v62 = vmul.f32 %v57, %v61
    %v63 = vsub.f32 1.0, %v62
    %vm64 = vcmp.lt.f32.partialorder %v43, 0.0
    %v65 = vsub.f32 0.0, %v63
    %v66 = vsel %vm64, %v65, %v63
    %v67 = vadd.f32 %v66, 1.0
    %v68 = vmul.f32 %v42, %v67
    %s69 = sld [smem:[#allocation2 + $0x5]]
    %v70 = vstv %s69
    %v71 = vmul.f32 %v68, %v70
    %s72 = sld [smem:[#allocation2 + $0x6]]
    %v73 = vstv %s72
    %v74 = vadd.f32 %v71, %v73
    %s75 = sld [smem:[#allocation2 + $0x2]]
    %v76 = vstv %s75
    %v77 = vmul.f32 %v76, %v31
    %v78 = vadd.f32 %v74, %v77
    %vm79 = vcmask 523264
    %80 = vst.msk [vmem:[%s3] sm:$0xff] %vm79, %v78
    // Predicated region
    $region18: #{coda_forward.10} parent=1 // pred_check
      _
    $region19: #{coda_forward.10} parent=1 // pred_check_branch
      %82 = sbr.rel (0) target = $region21
    $region20: #{coda_forward.10} parent=1 // pred_region
      _
    $region21: #{coda_forward.10} parent=1 // pred_fallthru
      _
    // Predicated region
    $region22: #{coda_forward.10} parent=1 // pred_check
      _
    $region23: #{coda_forward.10} parent=1 // pred_check_branch
      %84 = sbr.rel (0) target = $region25
    $region24: #{coda_forward.10} parent=1 // pred_region
      _
    $region25: #{coda_forward.10} parent=1 // pred_fallthru
      _
    %85 = vsyncpa [#allocation3], 1

// kernel: custom-call.15
$region0: #{custom-call.15}
  %s0 = inlined_call_operand.hbm [shape: c64[1,1,2,2], index: 0, kind: input, shape index: {}]
  %s1 = inlined_call_operand.vmem [shape: f32[1,1,2,2], index: 1, kind: output, shape index: {}]
  %s2 = scalar_lea.hbm %s0, 32
  $region1: #{custom-call.15} parent=0
    #allocation0 [shape = 's32[1]{0}', space=sflag, size = 0x4, scoped, tag = 'scoped memory for custom-call.15']
    %3 = vsyncpa [#allocation0], 0
    %s4 = sshll.u32 %s1, 4
    %s5 = int_to_ptr.vmem [resolvable:$true] %s4
    %7 = dma.hbm_to_vmem [thread:$0]  %s2, 32, %s5, [#allocation0]
    %8 = dma.done [#allocation0], 32
    %9 = vsyncpa [#allocation0], 1

// kernel: custom-call.14
$region0: #{custom-call.14}
  %s0 = inlined_call_operand.hbm [shape: c64[1,1,2,2], index: 0, kind: input, shape index: {}]
  %s1 = inlined_call_operand.vmem [shape: f32[1,1,2,2], index: 1, kind: output, shape index: {}]
  $region1: #{custom-call.14} parent=0
    #allocation0 [shape = 's32[1]{0}', space=sflag, size = 0x4, scoped, tag = 'scoped memory for custom-call.14']
    %2 = vsyncpa [#allocation0], 0
    %s3 = sshll.u32 %s1, 4
    %s4 = int_to_ptr.vmem [resolvable:$true] %s3
    %6 = dma.hbm_to_vmem [thread:$0]  %s0, 32, %s4, [#allocation0]
    %7 = dma.done [#allocation0], 32
    %8 = vsyncpa [#allocation0], 1

// kernel: coda_forward.12
$region0: #{coda_forward.12}
  #allocation0 [shape = 'u32[]', space=smem, size = 0x4, offset = 0x4, fixed_abs, tag = 'smem constant byte address 0x4 - core index']
  #allocation1 [shape = 'u32[144,128]{1,0:T(1,128)}', space=vmem, size = 0x12000, scoped, tag = 'internal scratch']
  %s0 = inlined_call_operand.vmem [shape: f32[8,256], index: 0, kind: input, shape index: {}]
  %s1 = inlined_call_operand.vmem [shape: f32[8,256], index: 1, kind: input, shape index: {}]
  %s2 = inlined_call_operand.vmem [shape: f32[7], index: 2, kind: input, shape index: {}]
  %s3 = inlined_call_operand.vmem [shape: f32[8,256], index: 3, kind: output, shape index: {}]
  %s4 = sld [smem:[#allocation0]]
  $region26: #{coda_forward.12} parent=0
    _
  %s6 = ssub.s32 1, %s4
  %s7 = scalar_select 0, %s6, %s4
  $region1: #{coda_forward.12} parent=0
    #allocation2 [shape = 'u8[512]{0}', space=smem, size = 0x200, scoped, tag = 'input window, operand 2, single buffered']
    #allocation3 [shape = 's32[1]{0}', space=sflag, size = 0x4, scoped, tag = 'scoped memory for coda_forward.12']
    %8 = vsyncpa [#allocation3], 0
    // Predicated region
    $region2: #{coda_forward.12} parent=1 // pred_check
      _
    $region3: #{coda_forward.12} parent=1 // pred_check_branch
      %10 = sbr.rel (0) target = $region5
    $region4: #{coda_forward.12} parent=1 // pred_region
      _
    $region5: #{coda_forward.12} parent=1 // pred_fallthru
      _
    // Predicated region
    $region6: #{coda_forward.12} parent=1 // pred_check
      _
    $region7: #{coda_forward.12} parent=1 // pred_check_branch
      %12 = sbr.rel (0) target = $region9
    $region8: #{coda_forward.12} parent=1 // pred_region
      _
    $region9: #{coda_forward.12} parent=1 // pred_fallthru
      _
    // Predicated region
    $region10: #{coda_forward.12} parent=1 // pred_check
      _
    $region11: #{coda_forward.12} parent=1 // pred_check_branch
      %14 = sbr.rel (0) target = $region13
    $region12: #{coda_forward.12} parent=1 // pred_region
      %s16 = ssub.s32 16, 16
      %17 = vsyncadd [#allocation3], %s16
      %s19 = sshll.u32 %s2, 4
      %s20 = int_to_ptr.vmem [resolvable:$true] %s19
      %22 = dma.vmem_to_smem %s20, 16, [#allocation2], [#allocation3]
    $region13: #{coda_forward.12} parent=1 // pred_fallthru
      _
    // Predicated region
    $region14: #{coda_forward.12} parent=1 // pred_check
      _
    $region15: #{coda_forward.12} parent=1 // pred_check_branch
      %24 = sbr.rel (0) target = $region17
    $region16: #{coda_forward.12} parent=1 // pred_region
      %25 = dma.done [#allocation3], 16
    $region17: #{coda_forward.12} parent=1 // pred_fallthru
      _
    %26 = sfence
    %v27 = vld [vmem:[%s0] sm:$0xff]
    %v28 = vld [vmem:[%s0 + $0x8] sm:$0xff]
    %s29 = sld [smem:[#allocation2]]
    %v30 = vstv %s29
    %v31 = vadd.f32 %v27, %v30
    %v32 = vadd.f32 %v28, %v30
    %v33 = vld [vmem:[%s1] sm:$0xff]
    %v34 = vld [vmem:[%s1 + $0x8] sm:$0xff]
    %s35 = sld [smem:[#allocation2 + $0x1]]
    %v36 = vstv %s35
    %v37 = vmul.f32 %v36, %v33
    %v38 = vmul.f32 %v36, %v34
    %v39 = vadd.f32 %v31, %v37
    %v40 = vadd.f32 %v32, %v38
    %s41 = sld [smem:[#allocation2 + $0x3]]
    %v42 = vstv %s41
    %v43 = vmul.f32 %v39, %v42
    %v44 = vmul.f32 %v40, %v42
    %s45 = sld [smem:[#allocation2 + $0x4]]
    %v46 = vstv %s45
    %v47 = vadd.f32 %v43, %v46
    %v48 = vadd.f32 %v44, %v46
    %v49 = vmul.f32 %v47, 0.5
    %v50 = vmul.f32 %v48, 0.5
    %v51 = vmul.f32 %v47, 0.70710677
    %v52 = vmul.f32 %v48, 0.70710677
    %v53 = vand.u32 2147483647, %v51
    %v54 = vand.u32 2147483647, %v52
    %v55 = vmul.f32 %v53, 0.3275911
    %v56 = vmul.f32 %v54, 0.3275911
    %v57 = vadd.f32 %v55, 1.0
    %v58 = vadd.f32 %v56, 1.0
    %v59 = vrcp.pop %v57
    %v60 = vmul.f32 1.0, %v59
    %v61 = vrcp.pop %v58
    %v62 = vmul.f32 1.0, %v61
    %v63 = vmul.f32 %v60, 1.0614054
    %v64 = vmul.f32 %v62, 1.0614054
    %v65 = vadd.f32 %v63, -1.4531521
    %v66 = vadd.f32 %v64, -1.4531521
    %v67 = vmul.f32 %v65, %v60
    %v68 = vmul.f32 %v66, %v62
    %v69 = vadd.f32 %v67, 1.4214138
    %v70 = vadd.f32 %v68, 1.4214138
    %v71 = vmul.f32 %v69, %v60
    %v72 = vmul.f32 %v70, %v62
    %v73 = vadd.f32 %v71, -0.28449672
    %v74 = vadd.f32 %v72, -0.28449672
    %v75 = vmul.f32 %v73, %v60
    %v76 = vmul.f32 %v74, %v62
    %v77 = vadd.f32 %v75, 0.2548296
    %v78 = vadd.f32 %v76, 0.2548296
    %v79 = vmul.f32 %v77, %v60
    %v80 = vmul.f32 %v78, %v62
    %v81 = vsub.f32 0.0, %v53
    %v82 = vsub.f32 0.0, %v54
    %v83 = vmul.f32 %v81, %v53
    %v84 = vmul.f32 %v82, %v54
    %v85 = vmul.f32 %v83, 1.442695
    %v86 = vpow.pop %v85
    %v87 = vmul.f32 %v84, 1.442695
    %v88 = vpow.pop %v87
    %v89 = vmul.f32 %v79, %v86
    %v90 = vmul.f32 %v80, %v88
    %v91 = vsub.f32 1.0, %v89
    %v92 = vsub.f32 1.0, %v90
    %vm93 = vcmp.lt.f32.partialorder %v51, 0.0
    %vm94 = vcmp.lt.f32.partialorder %v52, 0.0
    %v95 = vsub.f32 0.0, %v91
    %v96 = vsub.f32 0.0, %v92
    %v97 = vsel %vm93, %v95, %v91
    %v98 = vsel %vm94, %v96, %v92
    %v99 = vadd.f32 %v97, 1.0
    %v100 = vadd.f32 %v98, 1.0
    %v101 = vmul.f32 %v49, %v99
    %v102 = vmul.f32 %v50, %v100
    %s103 = sld [smem:[#allocation2 + $0x5]]
    %v104 = vstv %s103
    %v105 = vmul.f32 %v101, %v104
    %v106 = vmul.f32 %v102, %v104
    %s107 = sld [smem:[#allocation2 + $0x6]]
    %v108 = vstv %s107
    %v109 = vadd.f32 %v105, %v108
    %v110 = vadd.f32 %v106, %v108
    %s111 = sld [smem:[#allocation2 + $0x2]]
    %v112 = vstv %s111
    %v113 = vmul.f32 %v112, %v33
    %v114 = vmul.f32 %v112, %v34
    %v115 = vadd.f32 %v109, %v113
    %v116 = vadd.f32 %v110, %v114
    %117 = vst [vmem:[%s3] sm:$0xff] %v115
    %118 = vst [vmem:[%s3 + $0x8] sm:$0xff] %v116
    // Predicated region
    $region18: #{coda_forward.12} parent=1 // pred_check
      _
    $region19: #{coda_forward.12} parent=1 // pred_check_branch
      %120 = sbr.rel (0) target = $region21
    $region20: #{coda_forward.12} parent=1 // pred_region
      _
    $region21: #{coda_forward.12} parent=1 // pred_fallthru
      _
    // Predicated region
    $region22: #{coda_forward.12} parent=1 // pred_check
      _
    $region23: #{coda_forward.12} parent=1 // pred_check_branch
      %122 = sbr.rel (0) target = $region25
    $region24: #{coda_forward.12} parent=1 // pred_region
      _
    $region25: #{coda_forward.12} parent=1 // pred_fallthru
      _
    %123 = vsyncpa [#allocation3], 1

// kernel: coda_forward.13
$region0: #{coda_forward.13}
  #allocation0 [shape = 'u32[]', space=smem, size = 0x4, offset = 0x4, fixed_abs, tag = 'smem constant byte address 0x4 - core index']
  #allocation1 [shape = 'u32[144,128]{1,0:T(1,128)}', space=vmem, size = 0x12000, scoped, tag = 'internal scratch']
  %s0 = inlined_call_operand.vmem [shape: f32[2,4,64], index: 0, kind: input, shape index: {}]
  %s1 = inlined_call_operand.vmem [shape: f32[2,4,64], index: 1, kind: input, shape index: {}]
  %s2 = inlined_call_operand.vmem [shape: f32[2,4,256], index: 2, kind: input, shape index: {}]
  %s3 = inlined_call_operand.vmem [shape: f32[2,4,256], index: 3, kind: output, shape index: {}]
  %s4 = sld [smem:[#allocation0]]
  $region22: #{coda_forward.13} parent=0
    _
  %s6 = ssub.s32 1, %s4
  %s7 = scalar_select 0, %s6, %s4
  // Predicated region
  $region2: #{coda_forward.13} parent=0 // pred_check
    _
  $region3: #{coda_forward.13} parent=0 // pred_check_branch
    %9 = sbr.rel (0) target = $region5
  $region4: #{coda_forward.13} parent=0 // pred_region
    _
  $region5: #{coda_forward.13} parent=0 // pred_fallthru
    _
  // Predicated region
  $region6: #{coda_forward.13} parent=0 // pred_check
    _
  $region7: #{coda_forward.13} parent=0 // pred_check_branch
    %11 = sbr.rel (0) target = $region9
  $region8: #{coda_forward.13} parent=0 // pred_region
    _
  $region9: #{coda_forward.13} parent=0 // pred_fallthru
    _
  // Predicated region
  $region10: #{coda_forward.13} parent=0 // pred_check
    _
  $region11: #{coda_forward.13} parent=0 // pred_check_branch
    %13 = sbr.rel (0) target = $region13
  $region12: #{coda_forward.13} parent=0 // pred_region
    _
  $region13: #{coda_forward.13} parent=0 // pred_fallthru
    _
  %v14 = vld [vmem:[%s0] sm:$0xf]
  %v15 = vld [vmem:[%s1] sm:$0xf]
  %v16 = vld [vmem:[%s2] sm:$0xff]
  %vm17 = vcmask 523264
  %v19 = vsel %vm17, %v14, 0
  %v22 = vsel %vm17, %v15, 0
  %24 = vmatprep.subr.mxu0 0.0
  %25 = vmatpush1.xpose.msra.mxu0 %v22
  %26 = vmatprep.subr.mxu0 0.0
  %27 = vmatpush1.xpose.msra.mxu0 0.0
  %28 = vmatprep.subr.mxu0 0.0
  %29 = vmatpush1.xpose.msra.mxu0 0.0
  %30 = vmatprep.subr.mxu0 0.0
  %31 = vmatpush1.xpose.msra.mxu0 0.0
  %32 = vmatprep.subr.mxu0 0.0
  %33 = vmatpush1.xpose.msra.mxu0 0.0
  %34 = vmatprep.subr.mxu0 0.0
  %35 = vmatpush1.xpose.msra.mxu0 0.0
  %36 = vmatprep.subr.mxu0 0.0
  %37 = vmatpush1.xpose.msra.mxu0 0.0
  %38 = vmatprep.subr.mxu0 0.0
  %39 = vmatpush1.xpose.msra.mxu0 0.0
  %40 = vmatprep.subr.mxu0 0.0
  %41 = vmatpush1.xpose.msra.mxu0 0.0
  %42 = vmatprep.subr.mxu0 0.0
  %43 = vmatpush1.xpose.msra.mxu0 0.0
  %44 = vmatprep.subr.mxu0 0.0
  %45 = vmatpush1.xpose.msra.mxu0 0.0
  %46 = vmatprep.subr.mxu0 0.0
  %47 = vmatpush1.xpose.msra.mxu0 0.0
  %48 = vmatprep.subr.mxu0 0.0
  %49 = vmatpush1.xpose.msra.mxu0 0.0
  %50 = vmatprep.subr.mxu0 0.0
  %51 = vmatpush1.xpose.msra.mxu0 0.0
  %52 = vmatprep.subr.mxu0 0.0
  %53 = vmatpush1.xpose.msra.mxu0 0.0
  %54 = vmatprep.subr.mxu0 0.0
  %55 = vmatpush1.xpose.msra.mxu0 0.0
  %56 = vmatprep.subr.mxu0 0.0
  %57 = vmatpush1.xpose.msra.mxu0 0.0
  %58 = vmatprep.subr.mxu0 0.0
  %59 = vmatpush1.xpose.msra.mxu0 0.0
  %60 = vmatprep.subr.mxu0 0.0
  %61 = vmatpush1.xpose.msra.mxu0 0.0
  %62 = vmatprep.subr.mxu0 0.0
  %63 = vmatpush1.xpose.msra.mxu0 0.0
  %64 = vmatprep.subr.mxu0 0.0
  %65 = vmatpush1.xpose.msra.mxu0 0.0
  %66 = vmatprep.subr.mxu0 0.0
  %67 = vmatpush1.xpose.msra.mxu0 0.0
  %68 = vmatprep.subr.mxu0 0.0
  %69 = vmatpush1.xpose.msra.mxu0 0.0
  %70 = vmatprep.subr.mxu0 0.0
  %71 = vmatpush1.xpose.msra.mxu0 0.0
  %72 = vmatprep.subr.mxu0 0.0
  %73 = vmatpush1.xpose.msra.mxu0 0.0
  %74 = vmatprep.subr.mxu0 0.0
  %75 = vmatpush1.xpose.msra.mxu0 0.0
  %76 = vmatprep.subr.mxu0 0.0
  %77 = vmatpush1.xpose.msra.mxu0 0.0
  %78 = vmatprep.subr.mxu0 0.0
  %79 = vmatpush1.xpose.msra.mxu0 0.0
  %80 = vmatprep.subr.mxu0 0.0
  %81 = vmatpush1.xpose.msra.mxu0 0.0
  %82 = vmatprep.subr.mxu0 0.0
  %83 = vmatpush1.xpose.msra.mxu0 0.0
  %84 = vmatprep.subr.mxu0 0.0
  %85 = vmatpush1.xpose.msra.mxu0 0.0
  %86 = vmatprep.subr.mxu0 0.0
  %87 = vmatpush1.xpose.msra.mxu0 0.0
  %88 = vmatprep.mubr.f32.mxu0 0.0
  %89 = vmatmul.mubr.f32.gmra.mrb[0].mxu0 %v19
  %v90 = vpop.f32.mrb[0].mxu0
  %v91 = vadd.f32 0.0, %v90
  %v92 = vpop.f32.mrb[0].mxu0
  %93 = vdwg.mxu0
  %v94 = vmul.f32 %v91, 0.125
  %vm95 = vcmask 27648
  %v96 = vsel %vm95, %v94, -inf
  %97 = vmax.xlane.f32.xlu0 %v96
  %v98 = vpop.xlane.xlu0 %97
  %v99 = vsub.f32 %v94, %v98
  %v100 = vmul.f32 %v99, 1.442695
  %v101 = vpow.pop %v100
  %v102 = vsel %vm95, %v101, 0.0
  %103 = vadd.xlane.f32.xlu0 %v102
  %v104 = vpop.xlane.xlu0 %103
  %v105 = vrcp.pop %v104
  %v106 = vmul.f32 %v101, %v105
  %v108 = vcombine.high %v16, %v16
  %vm109 = vcmask 31744
  %v111 = vsel %vm109, %v106, 0
  %vm113 = vcmask 1043456
  %v114 = vsel %vm113, %v16, 0
  %v116 = vsel %vm113, %v108, 0
  %118 = vmatprep.subr.mxu0 %v116
  %119 = vmatpush1.msra.mxu0 %v114
  %120 = vmatprep.subr.mxu0 0.0
  %121 = vmatpush1.msra.mxu0 0.0
  %122 = vmatprep.subr.mxu0 0.0
  %123 = vmatpush1.msra.mxu0 0.0
  %124 = vmatprep.subr.mxu0 0.0
  %125 = vmatpush1.msra.mxu0 0.0
  %126 = vmatprep.subr.mxu0 0.0
  %127 = vmatpush1.msra.mxu0 0.0
  %128 = vmatprep.subr.mxu0 0.0
  %129 = vmatpush1.msra.mxu0 0.0
  %130 = vmatprep.subr.mxu0 0.0
  %131 = vmatpush1.msra.mxu0 0.0
  %132 = vmatprep.subr.mxu0 0.0
  %133 = vmatpush1.msra.mxu0 0.0
  %134 = vmatprep.subr.mxu0 0.0
  %135 = vmatpush1.msra.mxu0 0.0
  %136 = vmatprep.subr.mxu0 0.0
  %137 = vmatpush1.msra.mxu0 0.0
  %138 = vmatprep.subr.mxu0 0.0
  %139 = vmatpush1.msra.mxu0 0.0
  %140 = vmatprep.subr.mxu0 0.0
  %141 = vmatpush1.msra.mxu0 0.0
  %142 = vmatprep.subr.mxu0 0.0
  %143 = vmatpush1.msra.mxu0 0.0
  %144 = vmatprep.subr.mxu0 0.0
  %145 = vmatpush1.msra.mxu0 0.0
  %146 = vmatprep.subr.mxu0 0.0
  %147 = vmatpush1.msra.mxu0 0.0
  %148 = vmatprep.subr.mxu0 0.0
  %149 = vmatpush1.msra.mxu0 0.0
  %150 = vmatprep.subr.mxu0 0.0
  %151 = vmatpush1.msra.mxu0 0.0
  %152 = vmatprep.subr.mxu0 0.0
  %153 = vmatpush1.msra.mxu0 0.0
  %154 = vmatprep.subr.mxu0 0.0
  %155 = vmatpush1.msra.mxu0 0.0
  %156 = vmatprep.subr.mxu0 0.0
  %157 = vmatpush1.msra.mxu0 0.0
  %158 = vmatprep.subr.mxu0 0.0
  %159 = vmatpush1.msra.mxu0 0.0
  %160 = vmatprep.subr.mxu0 0.0
  %161 = vmatpush1.msra.mxu0 0.0
  %162 = vmatprep.subr.mxu0 0.0
  %163 = vmatpush1.msra.mxu0 0.0
  %164 = vmatprep.subr.mxu0 0.0
  %165 = vmatpush1.msra.mxu0 0.0
  %166 = vmatprep.subr.mxu0 0.0
  %167 = vmatpush1.msra.mxu0 0.0
  %168 = vmatprep.subr.mxu0 0.0
  %169 = vmatpush1.msra.mxu0 0.0
  %170 = vmatprep.subr.mxu0 0.0
  %171 = vmatpush1.msra.mxu0 0.0
  %172 = vmatprep.subr.mxu0 0.0
  %173 = vmatpush1.msra.mxu0 0.0
  %174 = vmatprep.subr.mxu0 0.0
  %175 = vmatpush1.msra.mxu0 0.0
  %176 = vmatprep.subr.mxu0 0.0
  %177 = vmatpush1.msra.mxu0 0.0
  %178 = vmatprep.subr.mxu0 0.0
  %179 = vmatpush1.msra.mxu0 0.0
  %180 = vmatprep.subr.mxu0 0.0
  %181 = vmatpush1.msra.mxu0 0.0
  %182 = vmatprep.mubr.f32.mxu0 0.0
  %183 = vmatmul.mubr.f32.gmra.mrb[0].mxu0 %v111
  %v184 = vpop.f32.mrb[0].mxu0
  %v185 = vadd.f32 0.0, %v184
  %v186 = vpop.f32.mrb[0].mxu0
  %v187 = vadd.f32 0.0, %v186
  %188 = vdwg.mxu0
  %v191 = vcombine.low %v185, %v187
  %193 = vst [vmem:[%s3] sm:$0xff] %v191
  %s194 = scalar_lea.vmem %s0, 4
  %v195 = vld [vmem:[%s194] sm:$0xf]
  %s196 = scalar_lea.vmem %s1, 4
  %v197 = vld [vmem:[%s196] sm:$0xf]
  %s198 = scalar_lea.vmem %s2, 8
  %v199 = vld [vmem:[%s198] sm:$0xff]
  %v201 = vsel %vm17, %v195, 0
  %v204 = vsel %vm17, %v197, 0
  %206 = vmatprep.subr.mxu0 0.0
  %207 = vmatpush1.xpose.msra.mxu0 %v204
  %208 = vmatprep.subr.mxu0 0.0
  %209 = vmatpush1.xpose.msra.mxu0 0.0
  %210 = vmatprep.subr.mxu0 0.0
  %211 = vmatpush1.xpose.msra.mxu0 0.0
  %212 = vmatprep.subr.mxu0 0.0
  %213 = vmatpush1.xpose.msra.mxu0 0.0
  %214 = vmatprep.subr.mxu0 0.0
  %215 = vmatpush1.xpose.msra.mxu0 0.0
  %216 = vmatprep.subr.mxu0 0.0
  %217 = vmatpush1.xpose.msra.mxu0 0.0
  %218 = vmatprep.subr.mxu0 0.0
  %219 = vmatpush1.xpose.msra.mxu0 0.0
  %220 = vmatprep.subr.mxu0 0.0
  %221 = vmatpush1.xpose.msra.mxu0 0.0
  %222 = vmatprep.subr.mxu0 0.0
  %223 = vmatpush1.xpose.msra.mxu0 0.0
  %224 = vmatprep.subr.mxu0 0.0
  %225 = vmatpush1.xpose.msra.mxu0 0.0
  %226 = vmatprep.subr.mxu0 0.0
  %227 = vmatpush1.xpose.msra.mxu0 0.0
  %228 = vmatprep.subr.mxu0 0.0
  %229 = vmatpush1.xpose.msra.mxu0 0.0
  %230 = vmatprep.subr.mxu0 0.0
  %231 = vmatpush1.xpose.msra.mxu0 0.0
  %232 = vmatprep.subr.mxu0 0.0
  %233 = vmatpush1.xpose.msra.mxu0 0.0
  %234 = vmatprep.subr.mxu0 0.0
  %235 = vmatpush1.xpose.msra.mxu0 0.0
  %236 = vmatprep.subr.mxu0 0.0
  %237 = vmatpush1.xpose.msra.mxu0 0.0
  %238 = vmatprep.subr.mxu0 0.0
  %239 = vmatpush1.xpose.msra.mxu0 0.0
  %240 = vmatprep.subr.mxu0 0.0
  %241 = vmatpush1.xpose.msra.mxu0 0.0
  %242 = vmatprep.subr.mxu0 0.0
  %243 = vmatpush1.xpose.msra.mxu0 0.0
  %244 = vmatprep.subr.mxu0 0.0
  %245 = vmatpush1.xpose.msra.mxu0 0.0
  %246 = vmatprep.subr.mxu0 0.0
  %247 = vmatpush1.xpose.msra.mxu0 0.0
  %248 = vmatprep.subr.mxu0 0.0
  %249 = vmatpush1.xpose.msra.mxu0 0.0
  %250 = vmatprep.subr.mxu0 0.0
  %251 = vmatpush1.xpose.msra.mxu0 0.0
  %252 = vmatprep.subr.mxu0 0.0
  %253 = vmatpush1.xpose.msra.mxu0 0.0
  %254 = vmatprep.subr.mxu0 0.0
  %255 = vmatpush1.xpose.msra.mxu0 0.0
  %256 = vmatprep.subr.mxu0 0.0
  %257 = vmatpush1.xpose.msra.mxu0 0.0
  %258 = vmatprep.subr.mxu0 0.0
  %259 = vmatpush1.xpose.msra.mxu0 0.0
  %260 = vmatprep.subr.mxu0 0.0
  %261 = vmatpush1.xpose.msra.mxu0 0.0
  %262 = vmatprep.subr.mxu0 0.0
  %263 = vmatpush1.xpose.msra.mxu0 0.0
  %264 = vmatprep.subr.mxu0 0.0
  %265 = vmatpush1.xpose.msra.mxu0 0.0
  %266 = vmatprep.subr.mxu0 0.0
  %267 = vmatpush1.xpose.msra.mxu0 0.0
  %268 = vmatprep.subr.mxu0 0.0
  %269 = vmatpush1.xpose.msra.mxu0 0.0
  %270 = vmatprep.mubr.f32.mxu0 0.0
  %271 = vmatmul.mubr.f32.gmra.mrb[0].mxu0 %v201
  %v272 = vpop.f32.mrb[0].mxu0
  %v273 = vadd.f32 0.0, %v272
  %v274 = vpop.f32.mrb[0].mxu0
  %275 = vdwg.mxu0
  %v276 = vmul.f32 %v273, 0.125
  %v277 = vsel %vm95, %v276, -inf
  %278 = vmax.xlane.f32.xlu0 %v277
  %v279 = vpop.xlane.xlu0 %278
  %v280 = vsub.f32 %v276, %v279
  %v281 = vmul.f32 %v280, 1.442695
  %v282 = vpow.pop %v281
  %v283 = vsel %vm95, %v282, 0.0
  %284 = vadd.xlane.f32.xlu0 %v283
  %v285 = vpop.xlane.xlu0 %284
  %v286 = vrcp.pop %v285
  %v287 = vmul.f32 %v282, %v286
  %v289 = vcombine.high %v199, %v199
  %v291 = vsel %vm109, %v287, 0
  %v293 = vsel %vm113, %v199, 0
  %v295 = vsel %vm113, %v289, 0
  %297 = vmatprep.subr.mxu0 %v295
  %298 = vmatpush1.msra.mxu0 %v293
  %299 = vmatprep.subr.mxu0 0.0
  %300 = vmatpush1.msra.mxu0 0.0
  %301 = vmatprep.subr.mxu0 0.0
  %302 = vmatpush1.msra.mxu0 0.0
  %303 = vmatprep.subr.mxu0 0.0
  %304 = vmatpush1.msra.mxu0 0.0
  %305 = vmatprep.subr.mxu0 0.0
  %306 = vmatpush1.msra.mxu0 0.0
  %307 = vmatprep.subr.mxu0 0.0
  %308 = vmatpush1.msra.mxu0 0.0
  %309 = vmatprep.subr.mxu0 0.0
  %310 = vmatpush1.msra.mxu0 0.0
  %311 = vmatprep.subr.mxu0 0.0
  %312 = vmatpush1.msra.mxu0 0.0
  %313 = vmatprep.subr.mxu0 0.0
  %314 = vmatpush1.msra.mxu0 0.0
  %315 = vmatprep.subr.mxu0 0.0
  %316 = vmatpush1.msra.mxu0 0.0
  %317 = vmatprep.subr.mxu0 0.0
  %318 = vmatpush1.msra.mxu0 0.0
  %319 = vmatprep.subr.mxu0 0.0
  %320 = vmatpush1.msra.mxu0 0.0
  %321 = vmatprep.subr.mxu0 0.0
  %322 = vmatpush1.msra.mxu0 0.0
  %323 = vmatprep.subr.mxu0 0.0
  %324 = vmatpush1.msra.mxu0 0.0
  %325 = vmatprep.subr.mxu0 0.0
  %326 = vmatpush1.msra.mxu0 0.0
  %327 = vmatprep.subr.mxu0 0.0
  %328 = vmatpush1.msra.mxu0 0.0
  %329 = vmatprep.subr.mxu0 0.0
  %330 = vmatpush1.msra.mxu0 0.0
  %331 = vmatprep.subr.mxu0 0.0
  %332 = vmatpush1.msra.mxu0 0.0
  %333 = vmatprep.subr.mxu0 0.0
  %334 = vmatpush1.msra.mxu0 0.0
  %335 = vmatprep.subr.mxu0 0.0
  %336 = vmatpush1.msra.mxu0 0.0
  %337 = vmatprep.subr.mxu0 0.0
  %338 = vmatpush1.msra.mxu0 0.0
  %339 = vmatprep.subr.mxu0 0.0
  %340 = vmatpush1.msra.mxu0 0.0
  %341 = vmatprep.subr.mxu0 0.0
  %342 = vmatpush1.msra.mxu0 0.0
  %343 = vmatprep.subr.mxu0 0.0
  %344 = vmatpush1.msra.mxu0 0.0
  %345 = vmatprep.subr.mxu0 0.0
  %346 = vmatpush1.msra.mxu0 0.0
  %347 = vmatprep.subr.mxu0 0.0
  %348 = vmatpush1.msra.mxu0 0.0
  %349 = vmatprep.subr.mxu0 0.0
  %350 = vmatpush1.msra.mxu0 0.0
  %351 = vmatprep.subr.mxu0 0.0
  %352 = vmatpush1.msra.mxu0 0.0
  %353 = vmatprep.subr.mxu0 0.0
  %354 = vmatpush1.msra.mxu0 0.0
  %355 = vmatprep.subr.mxu0 0.0
  %356 = vmatpush1.msra.mxu0 0.0
  %357 = vmatprep.subr.mxu0 0.0
  %358 = vmatpush1.msra.mxu0 0.0
  %359 = vmatprep.subr.mxu0 0.0
  %360 = vmatpush1.msra.mxu0 0.0
  %361 = vmatprep.mubr.f32.mxu0 0.0
  %362 = vmatmul.mubr.f32.gmra.mrb[0].mxu0 %v291
  %v363 = vpop.f32.mrb[0].mxu0
  %v364 = vadd.f32 0.0, %v363
  %v365 = vpop.f32.mrb[0].mxu0
  %v366 = vadd.f32 0.0, %v365
  %367 = vdwg.mxu0
  %v370 = vcombine.low %v364, %v366
  %s372 = scalar_lea.vmem %s3, 8
  %373 = vst [vmem:[%s372] sm:$0xff] %v370
  // Predicated region
  $region14: #{coda_forward.13} parent=0 // pred_check
    _
  $region15: #{coda_forward.13} parent=0 // pred_check_branch
    %375 = sbr.rel (0) target = $region17
  $region16: #{coda_forward.13} parent=0 // pred_region
    _
  $region17: #{coda_forward.13} parent=0 // pred_fallthru
    _
  // Predicated region
  $region18: #{coda_forward.13} parent=0 // pred_check
    _
  $region19: #{coda_forward.13} parent=0 // pred_check_branch
    %377 = sbr.rel (0) target = $region21
  $region20: #{coda_forward.13} parent=0 // pred_region
    _
  $region21: #{coda_forward.13} parent=0 // pred_fallthru
    _

// kernel: coda_forward.14
$region0: #{coda_forward.14}
  #allocation0 [shape = 'u32[]', space=smem, size = 0x4, offset = 0x4, fixed_abs, tag = 'smem constant byte address 0x4 - core index']
  #allocation1 [shape = 'u32[144,128]{1,0:T(1,128)}', space=vmem, size = 0x12000, scoped, tag = 'internal scratch']
  %s0 = inlined_call_operand.vmem [shape: f32[8,256], index: 0, kind: input, shape index: {}]
  %s1 = inlined_call_operand.vmem [shape: f32[8,256], index: 1, kind: input, shape index: {}]
  %s2 = inlined_call_operand.vmem [shape: f32[4], index: 2, kind: input, shape index: {}]
  %s3 = inlined_call_operand.vmem [shape: f32[8,256], index: 3, kind: output, shape index: {0}]
  %s4 = inlined_call_operand.vmem [shape: f32[8,256], index: 4, kind: output, shape index: {1}]
  %5 = xla_tuple %s3, %s4
  %s6 = sld [smem:[#allocation0]]
  $region34: #{coda_forward.14} parent=0
    _
  %s8 = ssub.s32 1, %s6
  %s9 = scalar_select 0, %s8, %s6
  $region1: #{coda_forward.14} parent=0
    #allocation2 [shape = 'u8[512]{0}', space=smem, size = 0x200, scoped, tag = 'input window, operand 2, single buffered']
    #allocation3 [shape = 's32[1]{0}', space=sflag, size = 0x4, scoped, tag = 'scoped memory for coda_forward.14']
    %10 = vsyncpa [#allocation3], 0
    // Predicated region
    $region2: #{coda_forward.14} parent=1 // pred_check
      _
    $region3: #{coda_forward.14} parent=1 // pred_check_branch
      %12 = sbr.rel (0) target = $region5
    $region4: #{coda_forward.14} parent=1 // pred_region
      _
    $region5: #{coda_forward.14} parent=1 // pred_fallthru
      _
    // Predicated region
    $region6: #{coda_forward.14} parent=1 // pred_check
      _
    $region7: #{coda_forward.14} parent=1 // pred_check_branch
      %14 = sbr.rel (0) target = $region9
    $region8: #{coda_forward.14} parent=1 // pred_region
      _
    $region9: #{coda_forward.14} parent=1 // pred_fallthru
      _
    // Predicated region
    $region10: #{coda_forward.14} parent=1 // pred_check
      _
    $region11: #{coda_forward.14} parent=1 // pred_check_branch
      %16 = sbr.rel (0) target = $region13
    $region12: #{coda_forward.14} parent=1 // pred_region
      %s18 = ssub.s32 16, 16
      %19 = vsyncadd [#allocation3], %s18
      %s21 = sshll.u32 %s2, 4
      %s22 = int_to_ptr.vmem [resolvable:$true] %s21
      %24 = dma.vmem_to_smem %s22, 16, [#allocation2], [#allocation3]
    $region13: #{coda_forward.14} parent=1 // pred_fallthru
      _
    // Predicated region
    $region14: #{coda_forward.14} parent=1 // pred_check
      _
    $region15: #{coda_forward.14} parent=1 // pred_check_branch
      %26 = sbr.rel (0) target = $region17
    $region16: #{coda_forward.14} parent=1 // pred_region
      %27 = dma.done [#allocation3], 16
    $region17: #{coda_forward.14} parent=1 // pred_fallthru
      _
    %28 = sfence
    %v29 = vld [vmem:[%s0] sm:$0xff]
    %v30 = vld [vmem:[%s0 + $0x8] sm:$0xff]
    %v31 = vld [vmem:[%s1] sm:$0xff]
    %v32 = vld [vmem:[%s1 + $0x8] sm:$0xff]
    %v33 = vadd.f32 %v29, %v31
    %v34 = vadd.f32 %v30, %v32
    %v35 = vadd.f32 %v33, %v34
    %36 = vadd.xlane.f32.xlu0 %v35
    %v37 = vpop.xlane.xlu0 %36
    %v38 = vrcp.pop 256.0
    %v39 = vmul.f32 %v37, %v38
    %v40 = vsub.f32 %v33, %v39
    %v41 = vsub.f32 %v34, %v39
    %v42 = vmul.f32 %v40, %v40
    %v43 = vmul.f32 %v41, %v41
    %v44 = vadd.f32 %v42, %v43
    %45 = vadd.xlane.f32.xlu0 %v44
    %v46 = vpop.xlane.xlu0 %45
    %v47 = vmul.f32 %v46, %v38
    %v48 = vadd.f32 %v47, 1e-05
    %v49 = vrsqrt.pop %v48
    %v50 = vmul.f32 %v40, %v49
    %v51 = vmul.f32 %v41, %v49
    %s52 = sld [smem:[#allocation2]]
    %v53 = vstv %s52
    %v54 = vmul.f32 %v50, %v53
    %v55 = vmul.f32 %v51, %v53
    %s56 = sld [smem:[#allocation2 + $0x1]]
    %v57 = vstv %s56
    %v58 = vadd.f32 %v54, %v57
    %v59 = vadd.f32 %v55, %v57
    %60 = vst [vmem:[%s3] sm:$0xff] %v58
    %61 = vst [vmem:[%s3 + $0x8] sm:$0xff] %v59
    %v62 = vadd.f32 %v58, %v59
    %63 = vadd.xlane.f32.xlu0 %v62
    %v64 = vpop.xlane.xlu0 %63
    %v65 = vmul.f32 %v64, %v38
    %v66 = vsub.f32 %v58, %v65
    %v67 = vsub.f32 %v59, %v65
    %v68 = vmul.f32 %v66, %v66
    %v69 = vmul.f32 %v67, %v67
    %v70 = vadd.f32 %v68, %v69
    %71 = vadd.xlane.f32.xlu0 %v70
    %v72 = vpop.xlane.xlu0 %71
    %v73 = vmul.f32 %v72, %v38
    %v74 = vadd.f32 %v73, 1e-05
    %v75 = vrsqrt.pop %v74
    %v76 = vmul.f32 %v66, %v75
    %v77 = vmul.f32 %v67, %v75
    %s78 = sld [smem:[#allocation2 + $0x2]]
    %v79 = vstv %s78
    %v80 = vmul.f32 %v76, %v79
    %v81 = vmul.f32 %v77, %v79
    %s82 = sld [smem:[#allocation2 + $0x3]]
    %v83 = vstv %s82
    %v84 = vadd.f32 %v80, %v83
    %v85 = vadd.f32 %v81, %v83
    %86 = vst [vmem:[%s4] sm:$0xff] %v84
    %87 = vst [vmem:[%s4 + $0x8] sm:$0xff] %v85
    // Predicated region
    $region18: #{coda_forward.14} parent=1 // pred_check
      _
    $region19: #{coda_forward.14} parent=1 // pred_check_branch
      %89 = sbr.rel (0) target = $region21
    $region20: #{coda_forward.14} parent=1 // pred_region
      _
    $region21: #{coda_forward.14} parent=1 // pred_fallthru
      _
    // Predicated region
    $region22: #{coda_forward.14} parent=1 // pred_check
      _
    $region23: #{coda_forward.14} parent=1 // pred_check_branch
      %91 = sbr.rel (0) target = $region25
    $region24: #{coda_forward.14} parent=1 // pred_region
      _
    $region25: #{coda_forward.14} parent=1 // pred_fallthru
      _
    // Predicated region
    $region26: #{coda_forward.14} parent=1 // pred_check
      _
    $region27: #{coda_forward.14} parent=1 // pred_check_branch
      %93 = sbr.rel (0) target = $region29
    $region28: #{coda_forward.14} parent=1 // pred_region
      _
    $region29: #{coda_forward.14} parent=1 // pred_fallthru
      _
    // Predicated region
    $region30: #{coda_forward.14} parent=1 // pred_check
      _
    $region31: #{coda_forward.14} parent=1 // pred_check_branch
      %95 = sbr.rel (0) target = $region33
    $region32: #{coda_forward.14} parent=1 // pred_region
      _
    $region33: #{coda_forward.14} parent=1 // pred_fallthru
      _
    %96 = vsyncpa [#allocation3], 1

// kernel: coda_forward.16
$region0: #{coda_forward.16}
  #allocation0 [shape = 'u32[]', space=smem, size = 0x4, offset = 0x4, fixed_abs, tag = 'smem constant byte address 0x4 - core index']
  #allocation1 [shape = 'u32[144,128]{1,0:T(1,128)}', space=vmem, size = 0x12000, scoped, tag = 'internal scratch']
  %s0 = inlined_call_operand.vmem [shape: f32[8,256], index: 0, kind: input, shape index: {}]
  %s1 = inlined_call_operand.vmem [shape: f32[8,256], index: 1, kind: input, shape index: {}]
  %s2 = inlined_call_operand.vmem [shape: f32[7], index: 2, kind: input, shape index: {}]
  %s3 = inlined_call_operand.vmem [shape: f32[8,256], index: 3, kind: output, shape index: {}]
  %s4 = sld [smem:[#allocation0]]
  $region26: #{coda_forward.16} parent=0
    _
  %s6 = ssub.s32 1, %s4
  %s7 = scalar_select 0, %s6, %s4
  $region1: #{coda_forward.16} parent=0
    #allocation2 [shape = 'u8[512]{0}', space=smem, size = 0x200, scoped, tag = 'input window, operand 2, single buffered']
    #allocation3 [shape = 's32[1]{0}', space=sflag, size = 0x4, scoped, tag = 'scoped memory for coda_forward.16']
    %8 = vsyncpa [#allocation3], 0
    // Predicated region
    $region2: #{coda_forward.16} parent=1 // pred_check
      _
    $region3: #{coda_forward.16} parent=1 // pred_check_branch
      %10 = sbr.rel (0) target = $region5
    $region4: #{coda_forward.16} parent=1 // pred_region
      _
    $region5: #{coda_forward.16} parent=1 // pred_fallthru
      _
    // Predicated region
    $region6: #{coda_forward.16} parent=1 // pred_check
      _
    $region7: #{coda_forward.16} parent=1 // pred_check_branch
      %12 = sbr.rel (0) target = $region9
    $region8: #{coda_forward.16} parent=1 // pred_region
      _
    $region9: #{coda_forward.16} parent=1 // pred_fallthru
      _
    // Predicated region
    $region10: #{coda_forward.16} parent=1 // pred_check
      _
    $region11: #{coda_forward.16} parent=1 // pred_check_branch
      %14 = sbr.rel (0) target = $region13
    $region12: #{coda_forward.16} parent=1 // pred_region
      %s16 = ssub.s32 16, 16
      %17 = vsyncadd [#allocation3], %s16
      %s19 = sshll.u32 %s2, 4
      %s20 = int_to_ptr.vmem [resolvable:$true] %s19
      %22 = dma.vmem_to_smem %s20, 16, [#allocation2], [#allocation3]
    $region13: #{coda_forward.16} parent=1 // pred_fallthru
      _
    // Predicated region
    $region14: #{coda_forward.16} parent=1 // pred_check
      _
    $region15: #{coda_forward.16} parent=1 // pred_check_branch
      %24 = sbr.rel (0) target = $region17
    $region16: #{coda_forward.16} parent=1 // pred_region
      %25 = dma.done [#allocation3], 16
    $region17: #{coda_forward.16} parent=1 // pred_fallthru
      _
    %26 = sfence
    %v27 = vld [vmem:[%s0] sm:$0xff]
    %v28 = vld [vmem:[%s0 + $0x8] sm:$0xff]
    %s29 = sld [smem:[#allocation2]]
    %v30 = vstv %s29
    %v31 = vadd.f32 %v27, %v30
    %v32 = vadd.f32 %v28, %v30
    %v33 = vld [vmem:[%s1] sm:$0xff]
    %v34 = vld [vmem:[%s1 + $0x8] sm:$0xff]
    %v35 = vadd.f32 %v31, %v32
    %36 = vadd.xlane.f32.xlu0 %v35
    %v37 = vpop.xlane.xlu0 %36
    %v38 = vrcp.pop 256.0
    %v39 = vmul.f32 %v37, %v38
    %v40 = vsub.f32 %v31, %v39
    %v41 = vsub.f32 %v32, %v39
    %v42 = vmul.f32 %v40, %v40
    %v43 = vmul.f32 %v41, %v41
    %v44 = vadd.f32 %v42, %v43
    %45 = vadd.xlane.f32.xlu0 %v44
    %v46 = vpop.xlane.xlu0 %45
    %v47 = vmul.f32 %v46, %v38
    %v48 = vadd.f32 %v47, 1e-05
    %v49 = vrsqrt.pop %v48
    %v50 = vmul.f32 %v40, %v49
    %v51 = vmul.f32 %v41, %v49
    %s52 = sld [smem:[#allocation2 + $0x1]]
    %v53 = vstv %s52
    %v54 = vmul.f32 %v53, %v33
    %v55 = vmul.f32 %v53, %v34
    %v56 = vadd.f32 %v50, %v54
    %v57 = vadd.f32 %v51, %v55
    %s58 = sld [smem:[#allocation2 + $0x3]]
    %v59 = vstv %s58
    %v60 = vmul.f32 %v56, %v59
    %v61 = vmul.f32 %v57, %v59
    %s62 = sld [smem:[#allocation2 + $0x4]]
    %v63 = vstv %s62
    %v64 = vadd.f32 %v60, %v63
    %v65 = vadd.f32 %v61, %v63
    %v66 = vmul.f32 %v64, 0.5
    %v67 = vmul.f32 %v65, 0.5
    %v68 = vmul.f32 %v64, 0.70710677
    %v69 = vmul.f32 %v65, 0.70710677
    %v70 = vand.u32 2147483647, %v68
    %v71 = vand.u32 2147483647, %v69
    %v72 = vmul.f32 %v70, 0.3275911
    %v73 = vmul.f32 %v71, 0.3275911
    %v74 = vadd.f32 %v72, 1.0
    %v75 = vadd.f32 %v73, 1.0
    %v76 = vrcp.pop %v74
    %v77 = vmul.f32 1.0, %v76
    %v78 = vrcp.pop %v75
    %v79 = vmul.f32 1.0, %v78
    %v80 = vmul.f32 %v77, 1.0614054
    %v81 = vmul.f32 %v79, 1.0614054
    %v82 = vadd.f32 %v80, -1.4531521
    %v83 = vadd.f32 %v81, -1.4531521
    %v84 = vmul.f32 %v82, %v77
    %v85 = vmul.f32 %v83, %v79
    %v86 = vadd.f32 %v84, 1.4214138
    %v87 = vadd.f32 %v85, 1.4214138
    %v88 = vmul.f32 %v86, %v77
    %v89 = vmul.f32 %v87, %v79
    %v90 = vadd.f32 %v88, -0.28449672
    %v91 = vadd.f32 %v89, -0.28449672
    %v92 = vmul.f32 %v90, %v77
    %v93 = vmul.f32 %v91, %v79
    %v94 = vadd.f32 %v92, 0.2548296
    %v95 = vadd.f32 %v93, 0.2548296
    %v96 = vmul.f32 %v94, %v77
    %v97 = vmul.f32 %v95, %v79
    %v98 = vsub.f32 0.0, %v70
    %v99 = vsub.f32 0.0, %v71
    %v100 = vmul.f32 %v98, %v70
    %v101 = vmul.f32 %v99, %v71
    %v102 = vmul.f32 %v100, 1.442695
    %v103 = vpow.pop %v102
    %v104 = vmul.f32 %v101, 1.442695
    %v105 = vpow.pop %v104
    %v106 = vmul.f32 %v96, %v103
    %v107 = vmul.f32 %v97, %v105
    %v108 = vsub.f32 1.0, %v106
    %v109 = vsub.f32 1.0, %v107
    %vm110 = vcmp.lt.f32.partialorder %v68, 0.0
    %vm111 = vcmp.lt.f32.partialorder %v69, 0.0
    %v112 = vsub.f32 0.0, %v108
    %v113 = vsub.f32 0.0, %v109
    %v114 = vsel %vm110, %v112, %v108
    %v115 = vsel %vm111, %v113, %v109
    %v116 = vadd.f32 %v114, 1.0
    %v117 = vadd.f32 %v115, 1.0
    %v118 = vmul.f32 %v66, %v116
    %v119 = vmul.f32 %v67, %v117
    %s120 = sld [smem:[#allocation2 + $0x5]]
    %v121 = vstv %s120
    %v122 = vmul.f32 %v118, %v121
    %v123 = vmul.f32 %v119, %v121
    %s124 = sld [smem:[#allocation2 + $0x6]]
    %v125 = vstv %s124
    %v126 = vadd.f32 %v122, %v125
    %v127 = vadd.f32 %v123, %v125
    %s128 = sld [smem:[#allocation2 + $0x2]]
    %v129 = vstv %s128
    %v130 = vmul.f32 %v129, %v33
    %v131 = vmul.f32 %v129, %v34
    %v132 = vadd.f32 %v126, %v130
    %v133 = vadd.f32 %v127, %v131
    %v134 = vadd.f32 %v132, %v133
    %135 = vadd.xlane.f32.xlu0 %v134
    %v136 = vpop.xlane.xlu0 %135
    %v137 = vmul.f32 %v136, %v38
    %v138 = vsub.f32 %v132, %v137
    %v139 = vsub.f32 %v133, %v137
    %v140 = vmul.f32 %v138, %v138
    %v141 = vmul.f32 %v139, %v139
    %v142 = vadd.f32 %v140, %v141
    %143 = vadd.xlane.f32.xlu0 %v142
    %v144 = vpop.xlane.xlu0 %143
    %v145 = vmul.f32 %v144, %v38
    %v146 = vadd.f32 %v145, 1e-05
    %v147 = vrsqrt.pop %v146
    %v148 = vmul.f32 %v138, %v147
    %v149 = vmul.f32 %v139, %v147
    %150 = vst [vmem:[%s3] sm:$0xff] %v148
    %151 = vst [vmem:[%s3 + $0x8] sm:$0xff] %v149
    // Predicated region
    $region18: #{coda_forward.16} parent=1 // pred_check
      _
    $region19: #{coda_forward.16} parent=1 // pred_check_branch
      %153 = sbr.rel (0) target = $region21
    $region20: #{coda_forward.16} parent=1 // pred_region
      _
    $region21: #{coda_forward.16} parent=1 // pred_fallthru
      _
    // Predicated region
    $region22: #{coda_forward.16} parent=1 // pred_check
      _
    $region23: #{coda_forward.16} parent=1 // pred_check_branch
      %155 = sbr.rel (0) target = $region25
    $region24: #{coda_forward.16} parent=1 // pred_region
      _
    $region25: #{coda_forward.16} parent=1 // pred_fallthru
      _
    %156 = vsyncpa [#allocation3], 1

// kernel: coda_forward.17
$region0: #{coda_forward.17}
  #allocation0 [shape = 'u32[]', space=smem, size = 0x4, offset = 0x4, fixed_abs, tag = 'smem constant byte address 0x4 - core index']
  #allocation1 [shape = 'u32[144,128]{1,0:T(1,128)}', space=vmem, size = 0x12000, scoped, tag = 'internal scratch']
  %s0 = inlined_call_operand.vmem [shape: f32[8,256], index: 0, kind: input, shape index: {}]
  %s1 = inlined_call_operand.vmem [shape: f32[8,256], index: 1, kind: input, shape index: {}]
  %s2 = inlined_call_operand.vmem [shape: f32[2], index: 2, kind: input, shape index: {}]
  %s3 = inlined_call_operand.vmem [shape: f32[8,256], index: 3, kind: output, shape index: {}]
  %s4 = sld [smem:[#allocation0]]
  $region26: #{coda_forward.17} parent=0
    _
  %s6 = ssub.s32 1, %s4
  %s7 = scalar_select 0, %s6, %s4
  $region1: #{coda_forward.17} parent=0
    #allocation2 [shape = 'u8[512]{0}', space=smem, size = 0x200, scoped, tag = 'input window, operand 2, single buffered']
    #allocation3 [shape = 's32[1]{0}', space=sflag, size = 0x4, scoped, tag = 'scoped memory for coda_forward.17']
    %8 = vsyncpa [#allocation3], 0
    // Predicated region
    $region2: #{coda_forward.17} parent=1 // pred_check
      _
    $region3: #{coda_forward.17} parent=1 // pred_check_branch
      %10 = sbr.rel (0) target = $region5
    $region4: #{coda_forward.17} parent=1 // pred_region
      _
    $region5: #{coda_forward.17} parent=1 // pred_fallthru
      _
    // Predicated region
    $region6: #{coda_forward.17} parent=1 // pred_check
      _
    $region7: #{coda_forward.17} parent=1 // pred_check_branch
      %12 = sbr.rel (0) target = $region9
    $region8: #{coda_forward.17} parent=1 // pred_region
      _
    $region9: #{coda_forward.17} parent=1 // pred_fallthru
      _
    // Predicated region
    $region10: #{coda_forward.17} parent=1 // pred_check
      _
    $region11: #{coda_forward.17} parent=1 // pred_check_branch
      %14 = sbr.rel (0) target = $region13
    $region12: #{coda_forward.17} parent=1 // pred_region
      %s16 = ssub.s32 16, 16
      %17 = vsyncadd [#allocation3], %s16
      %s19 = sshll.u32 %s2, 4
      %s20 = int_to_ptr.vmem [resolvable:$true] %s19
      %22 = dma.vmem_to_smem %s20, 16, [#allocation2], [#allocation3]
    $region13: #{coda_forward.17} parent=1 // pred_fallthru
      _
    // Predicated region
    $region14: #{coda_forward.17} parent=1 // pred_check
      _
    $region15: #{coda_forward.17} parent=1 // pred_check_branch
      %24 = sbr.rel (0) target = $region17
    $region16: #{coda_forward.17} parent=1 // pred_region
      %25 = dma.done [#allocation3], 16
    $region17: #{coda_forward.17} parent=1 // pred_fallthru
      _
    %26 = sfence
    %v27 = vld [vmem:[%s0] sm:$0xff]
    %v28 = vld [vmem:[%s0 + $0x8] sm:$0xff]
    %v29 = vld [vmem:[%s1] sm:$0xff]
    %v30 = vld [vmem:[%s1 + $0x8] sm:$0xff]
    %v31 = vadd.f32 %v27, %v28
    %32 = vadd.xlane.f32.xlu0 %v31
    %v33 = vpop.xlane.xlu0 %32
    %v34 = vrcp.pop 256.0
    %v35 = vmul.f32 %v33, %v34
    %v36 = vsub.f32 %v27, %v35
    %v37 = vsub.f32 %v28, %v35
    %v38 = vmul.f32 %v36, %v36
    %v39 = vmul.f32 %v37, %v37
    %v40 = vadd.f32 %v38, %v39
    %41 = vadd.xlane.f32.xlu0 %v40
    %v42 = vpop.xlane.xlu0 %41
    %v43 = vmul.f32 %v42, %v34
    %v44 = vadd.f32 %v43, 1e-05
    %v45 = vrsqrt.pop %v44
    %v46 = vmul.f32 %v36, %v45
    %v47 = vmul.f32 %v37, %v45
    %s48 = sld [smem:[#allocation2]]
    %v49 = vstv %s48
    %v50 = vmul.f32 %v46, %v49
    %v51 = vmul.f32 %v47, %v49
    %s52 = sld [smem:[#allocation2 + $0x1]]
    %v53 = vstv %s52
    %v54 = vadd.f32 %v50, %v53
    %v55 = vadd.f32 %v51, %v53
    %v56 = vadd.f32 %v54, %v29
    %v57 = vadd.f32 %v55, %v30
    %58 = vst [vmem:[%s3] sm:$0xff] %v56
    %59 = vst [vmem:[%s3 + $0x8] sm:$0xff] %v57
    // Predicated region
    $region18: #{coda_forward.17} parent=1 // pred_check
      _
    $region19: #{coda_forward.17} parent=1 // pred_check_branch
      %61 = sbr.rel (0) target = $region21
    $region20: #{coda_forward.17} parent=1 // pred_region
      _
    $region21: #{coda_forward.17} parent=1 // pred_fallthru
      _
    // Predicated region
    $region22: #{coda_forward.17} parent=1 // pred_check
      _
    $region23: #{coda_forward.17} parent=1 // pred_check_branch
      %63 = sbr.rel (0) target = $region25
    $region24: #{coda_forward.17} parent=1 // pred_region
      _
    $region25: #{coda_forward.17} parent=1 // pred_fallthru
      _
    %64 = vsyncpa [#allocation3], 1

// kernel: coda_forward.15
$region0: #{coda_forward.15}
  #allocation0 [shape = 'u32[]', space=smem, size = 0x4, offset = 0x4, fixed_abs, tag = 'smem constant byte address 0x4 - core index']
  #allocation1 [shape = 'u32[144,128]{1,0:T(1,128)}', space=vmem, size = 0x12000, scoped, tag = 'internal scratch']
  %s0 = inlined_call_operand.vmem [shape: f32[8,256], index: 0, kind: input, shape index: {}]
  %s1 = inlined_call_operand.vmem [shape: f32[8,256], index: 1, kind: input, shape index: {}]
  %s2 = inlined_call_operand.vmem [shape: f32[7], index: 2, kind: input, shape index: {}]
  %s3 = inlined_call_operand.vmem [shape: f32[8,256], index: 3, kind: output, shape index: {}]
  %s4 = sld [smem:[#allocation0]]
  $region26: #{coda_forward.15} parent=0
    _
  %s6 = ssub.s32 1, %s4
  %s7 = scalar_select 0, %s6, %s4
  $region1: #{coda_forward.15} parent=0
    #allocation2 [shape = 'u8[512]{0}', space=smem, size = 0x200, scoped, tag = 'input window, operand 2, single buffered']
    #allocation3 [shape = 's32[1]{0}', space=sflag, size = 0x4, scoped, tag = 'scoped memory for coda_forward.15']
    %8 = vsyncpa [#allocation3], 0
    // Predicated region
    $region2: #{coda_forward.15} parent=1 // pred_check
      _
    $region3: #{coda_forward.15} parent=1 // pred_check_branch
      %10 = sbr.rel (0) target = $region5
    $region4: #{coda_forward.15} parent=1 // pred_region
      _
    $region5: #{coda_forward.15} parent=1 // pred_fallthru
      _
    // Predicated region
    $region6: #{coda_forward.15} parent=1 // pred_check
      _
    $region7: #{coda_forward.15} parent=1 // pred_check_branch
      %12 = sbr.rel (0) target = $region9
    $region8: #{coda_forward.15} parent=1 // pred_region
      _
    $region9: #{coda_forward.15} parent=1 // pred_fallthru
      _
    // Predicated region
    $region10: #{coda_forward.15} parent=1 // pred_check
      _
    $region11: #{coda_forward.15} parent=1 // pred_check_branch
      %14 = sbr.rel (0) target = $region13
    $region12: #{coda_forward.15} parent=1 // pred_region
      %s16 = ssub.s32 16, 16
      %17 = vsyncadd [#allocation3], %s16
      %s19 = sshll.u32 %s2, 4
      %s20 = int_to_ptr.vmem [resolvable:$true] %s19
      %22 = dma.vmem_to_smem %s20, 16, [#allocation2], [#allocation3]
    $region13: #{coda_forward.15} parent=1 // pred_fallthru
      _
    // Predicated region
    $region14: #{coda_forward.15} parent=1 // pred_check
      _
    $region15: #{coda_forward.15} parent=1 // pred_check_branch
      %24 = sbr.rel (0) target = $region17
    $region16: #{coda_forward.15} parent=1 // pred_region
      %25 = dma.done [#allocation3], 16
    $region17: #{coda_forward.15} parent=1 // pred_fallthru
      _
    %26 = sfence
    %v27 = vld [vmem:[%s0] sm:$0xff]
    %v28 = vld [vmem:[%s0 + $0x8] sm:$0xff]
    %s29 = sld [smem:[#allocation2]]
    %v30 = vstv %s29
    %v31 = vadd.f32 %v27, %v30
    %v32 = vadd.f32 %v28, %v30
    %v33 = vld [vmem:[%s1] sm:$0xff]
    %v34 = vld [vmem:[%s1 + $0x8] sm:$0xff]
    %v35 = vadd.f32 %v31, %v32
    %36 = vadd.xlane.f32.xlu0 %v35
    %v37 = vpop.xlane.xlu0 %36
    %v38 = vrcp.pop 256.0
    %v39 = vmul.f32 %v37, %v38
    %v40 = vsub.f32 %v31, %v39
    %v41 = vsub.f32 %v32, %v39
    %v42 = vmul.f32 %v40, %v40
    %v43 = vmul.f32 %v41, %v41
    %v44 = vadd.f32 %v42, %v43
    %45 = vadd.xlane.f32.xlu0 %v44
    %v46 = vpop.xlane.xlu0 %45
    %v47 = vmul.f32 %v46, %v38
    %v48 = vadd.f32 %v47, 1e-05
    %v49 = vrsqrt.pop %v48
    %v50 = vmul.f32 %v40, %v49
    %v51 = vmul.f32 %v41, %v49
    %s52 = sld [smem:[#allocation2 + $0x1]]
    %v53 = vstv %s52
    %v54 = vmul.f32 %v53, %v33
    %v55 = vmul.f32 %v53, %v34
    %v56 = vadd.f32 %v50, %v54
    %v57 = vadd.f32 %v51, %v55
    %v58 = vmul.f32 %v56, 0.5
    %v59 = vmul.f32 %v57, 0.5
    %v60 = vmul.f32 %v56, 0.70710677
    %v61 = vmul.f32 %v57, 0.70710677
    %v62 = vand.u32 2147483647, %v60
    %v63 = vand.u32 2147483647, %v61
    %v64 = vmul.f32 %v62, 0.3275911
    %v65 = vmul.f32 %v63, 0.3275911
    %v66 = vadd.f32 %v64, 1.0
    %v67 = vadd.f32 %v65, 1.0
    %v68 = vrcp.pop %v66
    %v69 = vmul.f32 1.0, %v68
    %v70 = vrcp.pop %v67
    %v71 = vmul.f32 1.0, %v70
    %v72 = vmul.f32 %v69, 1.0614054
    %v73 = vmul.f32 %v71, 1.0614054
    %v74 = vadd.f32 %v72, -1.4531521
    %v75 = vadd.f32 %v73, -1.4531521
    %v76 = vmul.f32 %v74, %v69
    %v77 = vmul.f32 %v75, %v71
    %v78 = vadd.f32 %v76, 1.4214138
    %v79 = vadd.f32 %v77, 1.4214138
    %v80 = vmul.f32 %v78, %v69
    %v81 = vmul.f32 %v79, %v71
    %v82 = vadd.f32 %v80, -0.28449672
    %v83 = vadd.f32 %v81, -0.28449672
    %v84 = vmul.f32 %v82, %v69
    %v85 = vmul.f32 %v83, %v71
    %v86 = vadd.f32 %v84, 0.2548296
    %v87 = vadd.f32 %v85, 0.2548296
    %v88 = vmul.f32 %v86, %v69
    %v89 = vmul.f32 %v87, %v71
    %v90 = vsub.f32 0.0, %v62
    %v91 = vsub.f32 0.0, %v63
    %v92 = vmul.f32 %v90, %v62
    %v93 = vmul.f32 %v91, %v63
    %v94 = vmul.f32 %v92, 1.442695
    %v95 = vpow.pop %v94
    %v96 = vmul.f32 %v93, 1.442695
    %v97 = vpow.pop %v96
    %v98 = vmul.f32 %v88, %v95
    %v99 = vmul.f32 %v89, %v97
    %v100 = vsub.f32 1.0, %v98
    %v101 = vsub.f32 1.0, %v99
    %vm102 = vcmp.lt.f32.partialorder %v60, 0.0
    %vm103 = vcmp.lt.f32.partialorder %v61, 0.0
    %v104 = vsub.f32 0.0, %v100
    %v105 = vsub.f32 0.0, %v101
    %v106 = vsel %vm102, %v104, %v100
    %v107 = vsel %vm103, %v105, %v101
    %v108 = vadd.f32 %v106, 1.0
    %v109 = vadd.f32 %v107, 1.0
    %v110 = vmul.f32 %v58, %v108
    %v111 = vmul.f32 %v59, %v109
    %s112 = sld [smem:[#allocation2 + $0x3]]
    %v113 = vstv %s112
    %v114 = vmul.f32 %v110, %v113
    %v115 = vmul.f32 %v111, %v113
    %s116 = sld [smem:[#allocation2 + $0x4]]
    %v117 = vstv %s116
    %v118 = vadd.f32 %v114, %v117
    %v119 = vadd.f32 %v115, %v117
    %v120 = vmul.f32 %v118, 0.5
    %v121 = vmul.f32 %v119, 0.5
    %v122 = vmul.f32 %v118, 0.70710677
    %v123 = vmul.f32 %v119, 0.70710677
    %v124 = vand.u32 2147483647, %v122
    %v125 = vand.u32 2147483647, %v123
    %v126 = vmul.f32 %v124, 0.3275911
    %v127 = vmul.f32 %v125, 0.3275911
    %v128 = vadd.f32 %v126, 1.0
    %v129 = vadd.f32 %v127, 1.0
    %v130 = vrcp.pop %v128
    %v131 = vmul.f32 1.0, %v130
    %v132 = vrcp.pop %v129
    %v133 = vmul.f32 1.0, %v132
    %v134 = vmul.f32 %v131, 1.0614054
    %v135 = vmul.f32 %v133, 1.0614054
    %v136 = vadd.f32 %v134, -1.4531521
    %v137 = vadd.f32 %v135, -1.4531521
    %v138 = vmul.f32 %v136, %v131
    %v139 = vmul.f32 %v137, %v133
    %v140 = vadd.f32 %v138, 1.4214138
    %v141 = vadd.f32 %v139, 1.4214138
    %v142 = vmul.f32 %v140, %v131
    %v143 = vmul.f32 %v141, %v133
    %v144 = vadd.f32 %v142, -0.28449672
    %v145 = vadd.f32 %v143, -0.28449672
    %v146 = vmul.f32 %v144, %v131
    %v147 = vmul.f32 %v145, %v133
    %v148 = vadd.f32 %v146, 0.2548296
    %v149 = vadd.f32 %v147, 0.2548296
    %v150 = vmul.f32 %v148, %v131
    %v151 = vmul.f32 %v149, %v133
    %v152 = vsub.f32 0.0, %v124
    %v153 = vsub.f32 0.0, %v125
    %v154 = vmul.f32 %v152, %v124
    %v155 = vmul.f32 %v153, %v125
    %v156 = vmul.f32 %v154, 1.442695
    %v157 = vpow.pop %v156
    %v158 = vmul.f32 %v155, 1.442695
    %v159 = vpow.pop %v158
    %v160 = vmul.f32 %v150, %v157
    %v161 = vmul.f32 %v151, %v159
    %v162 = vsub.f32 1.0, %v160
    %v163 = vsub.f32 1.0, %v161
    %vm164 = vcmp.lt.f32.partialorder %v122, 0.0
    %vm165 = vcmp.lt.f32.partialorder %v123, 0.0
    %v166 = vsub.f32 0.0, %v162
    %v167 = vsub.f32 0.0, %v163
    %v168 = vsel %vm164, %v166, %v162
    %v169 = vsel %vm165, %v167, %v163
    %v170 = vadd.f32 %v168, 1.0
    %v171 = vadd.f32 %v169, 1.0
    %v172 = vmul.f32 %v120, %v170
    %v173 = vmul.f32 %v121, %v171
    %s174 = sld [smem:[#allocation2 + $0x5]]
    %v175 = vstv %s174
    %v176 = vmul.f32 %v172, %v175
    %v177 = vmul.f32 %v173, %v175
    %s178 = sld [smem:[#allocation2 + $0x6]]
    %v179 = vstv %s178
    %v180 = vadd.f32 %v176, %v179
    %v181 = vadd.f32 %v177, %v179
    %s182 = sld [smem:[#allocation2 + $0x2]]
    %v183 = vstv %s182
    %v184 = vmul.f32 %v183, %v33
    %v185 = vmul.f32 %v183, %v34
    %v186 = vadd.f32 %v180, %v184
    %v187 = vadd.f32 %v181, %v185
    %v188 = vadd.f32 %v186, %v187
    %189 = vadd.xlane.f32.xlu0 %v188
    %v190 = vpop.xlane.xlu0 %189
    %v191 = vmul.f32 %v190, %v38
    %v192 = vsub.f32 %v186, %v191
    %v193 = vsub.f32 %v187, %v191
    %v194 = vmul.f32 %v192, %v192
    %v195 = vmul.f32 %v193, %v193
    %v196 = vadd.f32 %v194, %v195
    %197 = vadd.xlane.f32.xlu0 %v196
    %v198 = vpop.xlane.xlu0 %197
    %v199 = vmul.f32 %v198, %v38
    %v200 = vadd.f32 %v199, 1e-05
    %v201 = vrsqrt.pop %v200
    %v202 = vmul.f32 %v192, %v201
    %v203 = vmul.f32 %v193, %v201
    %v204 = vmul.f32 %v202, 0.5
    %v205 = vmul.f32 %v203, 0.5
    %v206 = vmul.f32 %v202, 0.70710677
    %v207 = vmul.f32 %v203, 0.70710677
    %v208 = vand.u32 2147483647, %v206
    %v209 = vand.u32 2147483647, %v207
    %v210 = vmul.f32 %v208, 0.3275911
    %v211 = vmul.f32 %v209, 0.3275911
    %v212 = vadd.f32 %v210, 1.0
    %v213 = vadd.f32 %v211, 1.0
    %v214 = vrcp.pop %v212
    %v215 = vmul.f32 1.0, %v214
    %v216 = vrcp.pop %v213
    %v217 = vmul.f32 1.0, %v216
    %v218 = vmul.f32 %v215, 1.0614054
    %v219 = vmul.f32 %v217, 1.0614054
    %v220 = vadd.f32 %v218, -1.4531521
    %v221 = vadd.f32 %v219, -1.4531521
    %v222 = vmul.f32 %v220, %v215
    %v223 = vmul.f32 %v221, %v217
    %v224 = vadd.f32 %v222, 1.4214138
    %v225 = vadd.f32 %v223, 1.4214138
    %v226 = vmul.f32 %v224, %v215
    %v227 = vmul.f32 %v225, %v217
    %v228 = vadd.f32 %v226, -0.28449672
    %v229 = vadd.f32 %v227, -0.28449672
    %v230 = vmul.f32 %v228, %v215
    %v231 = vmul.f32 %v229, %v217
    %v232 = vadd.f32 %v230, 0.2548296
    %v233 = vadd.f32 %v231, 0.2548296
    %v234 = vmul.f32 %v232, %v215
    %v235 = vmul.f32 %v233, %v217
    %v236 = vsub.f32 0.0, %v208
    %v237 = vsub.f32 0.0, %v209
    %v238 = vmul.f32 %v236, %v208
    %v239 = vmul.f32 %v237, %v209
    %v240 = vmul.f32 %v238, 1.442695
    %v241 = vpow.pop %v240
    %v242 = vmul.f32 %v239, 1.442695
    %v243 = vpow.pop %v242
    %v244 = vmul.f32 %v234, %v241
    %v245 = vmul.f32 %v235, %v243
    %v246 = vsub.f32 1.0, %v244
    %v247 = vsub.f32 1.0, %v245
    %vm248 = vcmp.lt.f32.partialorder %v206, 0.0
    %vm249 = vcmp.lt.f32.partialorder %v207, 0.0
    %v250 = vsub.f32 0.0, %v246
    %v251 = vsub.f32 0.0, %v247
    %v252 = vsel %vm248, %v250, %v246
    %v253 = vsel %vm249, %v251, %v247
    %v254 = vadd.f32 %v252, 1.0
    %v255 = vadd.f32 %v253, 1.0
    %v256 = vmul.f32 %v204, %v254
    %v257 = vmul.f32 %v205, %v255
    %258 = vst [vmem:[%s3] sm:$0xff] %v256
    %259 = vst [vmem:[%s3 + $0x8] sm:$0xff] %v257
    // Predicated region
    $region18: #{coda_forward.15} parent=1 // pred_check
      _
    $region19: #{coda_forward.15} parent=1 // pred_check_branch
      %261 = sbr.rel (0) target = $region21
    $region20: #{coda_forward.15} parent=1 // pred_region
      _
    $region21: #{coda_forward.15} parent=1 // pred_fallthru
      _
    // Predicated region
    $region22: #{coda_forward.15} parent=1 // pred_check
      _
    $region23: #{coda_forward.15} parent=1 // pred_check_branch
      %263 = sbr.rel (0) target = $region25
    $region24: #{coda_forward.15} parent=1 // pred_region
      _
    $region25: #{coda_forward.15} parent=1 // pred_fallthru
      _
    %264 = vsyncpa [#allocation3], 1

</llo_original>
